<compile_context>
chip_gen: v7x
topology: tpu7x:2x2x1
jax: 0.10.0
libtpu: 0.0.40
codegen_flags: <defaults>
</compile_context>

<pallas_src>
import functools

import jax
import jax.numpy as jnp
from jax import lax
from jax.experimental import pallas as pl
from jax.experimental.pallas import tpu as pltpu

N_BLOCKS = 4      # REncoder1 = 4 x RCVResblock
EPS = 1e-5        # nn.LayerNorm default eps


# --------------------------------------------------------------------------- kernel
def _layernorm_packed(v, gamma, beta, f):
    """Per-column LayerNorm over the real half and imag half of a (2F, N) tile.

    One-pass statistics (sum & sum-of-squares): var = E[x^2] - mean^2, so the two XLU
    reductions per half can overlap and we skip a second elementwise pass.
    """
    inv_f = 1.0 / f

    def _norm(h):                                   # h: (F, N)
        s = jnp.sum(h, axis=0, keepdims=True)
        s2 = jnp.sum(h * h, axis=0, keepdims=True)
        mean = s * inv_f
        var = s2 * inv_f - mean * mean
        return (h - mean) * lax.rsqrt(var + EPS)

    out = jnp.concatenate([_norm(v[:f]), _norm(v[f:])], axis=0)
    return out * gamma + beta                       # gamma/beta: (2F, 1), lane-broadcast


def _soft_threshold_packed(v, theta, f):
    """RCVSoftThreshold on a packed (2F, N) tile with a single rsqrt.

    scale = max(1 - theta/|x|, 0) == relu(|x| - theta)/|x| for |x| > 0; the jnp.where
    guard makes the |x| == 0 case return 0 instead of NaN.
    """
    r, im = v[:f], v[f:]
    abs2 = r * r + im * im
    inv_abs = jnp.where(abs2 > 0.0, lax.rsqrt(abs2), 0.0)
    scale = jnp.maximum(1.0 - theta * inv_abs, 0.0)            # (F, N)
    return v * jnp.concatenate([scale, scale], axis=0)


def encoder1_kernel(x_ref, w_ref, g_ref, b_ref, th_ref, o_ref):
    f = x_ref.shape[0] // 2
    z = x_ref[...]                                             # (2F, TILE_N)

    # Statically unrolled over the 4 RCVResblocks; all weights are VMEM-resident.
    for blk in range(N_BLOCKS):
        identity = z

        # RCVLinear -> RCVLayerNorm -> RCVSoftThreshold
        y = jnp.dot(w_ref[2 * blk + 0], z, preferred_element_type=jnp.float32)
        y = _layernorm_packed(y, g_ref[2 * blk + 0], b_ref[2 * blk + 0], f)
        y = _soft_threshold_packed(y, th_ref[2 * blk + 0], f)

        # RCVLinear -> RCVLayerNorm
        y = jnp.dot(w_ref[2 * blk + 1], y, preferred_element_type=jnp.float32)
        y = _layernorm_packed(y, g_ref[2 * blk + 1], b_ref[2 * blk + 1], f)

        # residual add + outer RCVSoftThreshold
        z = _soft_threshold_packed(y + identity, th_ref[2 * blk + 1], f)

    o_ref[...] = z


# --------------------------------------------------------------------------- wrapper
def _pack_params(params, f):
    nb = N_BLOCKS
    wr = params["w_real"].astype(jnp.float32).reshape(nb * 2, f, f)    # (in, out)
    wi = params["w_imag"].astype(jnp.float32).reshape(nb * 2, f, f)
    wr_t = jnp.swapaxes(wr, -1, -2)
    wi_t = jnp.swapaxes(wi, -1, -2)
    # (2F, 2F) block weight:  [re_out; im_out] = W_blk @ [re_in; im_in]
    w_blk = jnp.concatenate(
        [jnp.concatenate([wr_t, -wi_t], axis=-1),
         jnp.concatenate([wi_t, wr_t], axis=-1)], axis=-2)             # (8, 2F, 2F)

    gamma = jnp.concatenate(
        [params["gamma_real"], params["gamma_imag"]], axis=-1).astype(jnp.float32)
    beta = jnp.concatenate(
        [params["beta_real"], params["beta_imag"]], axis=-1).astype(jnp.float32)
    gamma = gamma.reshape(nb * 2, 2 * f, 1)                            # (8, 2F, 1)
    beta = beta.reshape(nb * 2, 2 * f, 1)

    theta = params["theta"].astype(jnp.float32).reshape(nb * 2)        # (8,) -> SMEM
    return w_blk, gamma, beta, theta


@functools.partial(jax.jit, static_argnames=("tile_n",))
def encoder1_pallas(x, params, *, tile_n=256):
    """x: (batch, 2, F) float32 (channel 0 = real, channel 1 = imag)."""
    n, two, f = x.shape
    assert two == 2
    assert f % 8 == 0, "feature dim must be a multiple of 8"

    # (batch, 2, F) -> packed, transposed (2F, batch): batch on the 128-lane axis.
    z = jnp.transpose(x.astype(jnp.float32), (1, 2, 0)).reshape(2 * f, n)
    n_pad = pl.cdiv(n, tile_n) * tile_n
    if n_pad != n:
        z = jnp.pad(z, ((0, 0), (0, n_pad - n)))   # padded columns are independent

    w_blk, gamma, beta, theta = _pack_params(params, f)

    grid = (n_pad // tile_n,)
    act_spec = pl.BlockSpec((2 * f, tile_n), lambda i: (0, i))
    const_map = lambda i: (0, 0, 0)

    # Explicit VMEM budget: resident weights/affine params + double-buffered act tiles.
    resident_bytes = 4 * (w_blk.size + 2 * (2 * N_BLOCKS) * (2 * f) * 128)
    tile_bytes = 4 * 2 * 2 * (2 * f) * tile_n          # in + out, double-buffered
    vmem_limit = int(min(64 * 2**20, max(8 * 2**20, 4 * (resident_bytes + tile_bytes))))

    out = pl.pallas_call(
        encoder1_kernel,
        out_shape=jax.ShapeDtypeStruct((2 * f, n_pad), jnp.float32),
        grid=grid,
        in_specs=[
            act_spec,                                                   # activations
            pl.BlockSpec((2 * N_BLOCKS, 2 * f, 2 * f), const_map),      # block weights
            pl.BlockSpec((2 * N_BLOCKS, 2 * f, 1), const_map),          # gamma (packed)
            pl.BlockSpec((2 * N_BLOCKS, 2 * f, 1), const_map),          # beta  (packed)
            pl.BlockSpec(memory_space=pltpu.MemorySpace.SMEM),          # theta (8,)
        ],
        out_specs=act_spec,
        compiler_params=pltpu.CompilerParams(
            dimension_semantics=("parallel",),     # v7x: shard batch tiles over 2 TCs
            vmem_limit_bytes=vmem_limit),
    )(z, w_blk, gamma, beta, theta)

    # (2F, n_pad) -> (batch, 2, F)
    return out[:, :n].reshape(2, f, n).transpose(2, 0, 1)


# --------------------------------------------------------------- params + pure-JAX ref
def init_params(key, f):
    """Deterministic synthetic parameters with the shapes REncoder1.__init__ implies."""
    ks = jax.random.split(key, 6)
    # 4 blocks x 2 RCVLinear layers, each with real & imag (in, out) weight matrices.
    w_real = jax.random.normal(ks[0], (N_BLOCKS, 2, f, f), jnp.float32) / jnp.sqrt(f)
    w_imag = jax.random.normal(ks[1], (N_BLOCKS, 2, f, f), jnp.float32) / jnp.sqrt(f)
    # LayerNorm affine params, perturbed from the PyTorch default (gamma=1, beta=0)
    # so the packed-parameter path is actually exercised.
    gamma_real = 1.0 + 0.1 * jax.random.normal(ks[2], (N_BLOCKS, 2, f), jnp.float32)
    gamma_imag = 1.0 + 0.1 * jax.random.normal(ks[3], (N_BLOCKS, 2, f), jnp.float32)
    beta_real = 0.1 * jax.random.normal(ks[4], (N_BLOCKS, 2, f), jnp.float32)
    beta_imag = 0.1 * jax.random.normal(ks[5], (N_BLOCKS, 2, f), jnp.float32)
    # RCVSoftThreshold theta (PyTorch init is zeros(1); small nonzero exercises the clamp).
    theta = jnp.full((N_BLOCKS, 2), 0.05, jnp.float32)
    return {
        "w_real": w_real, "w_imag": w_imag,
        "gamma_real": gamma_real, "gamma_imag": gamma_imag,
        "beta_real": beta_real, "beta_imag": beta_imag,
        "theta": theta,
    }


def _layernorm_ref(v, gamma, beta):
    mean = jnp.mean(v, axis=-1, keepdims=True)
    var = jnp.mean((v - mean) ** 2, axis=-1, keepdims=True)
    return (v - mean) * lax.rsqrt(var + EPS) * gamma + beta


def _soft_threshold_ref(r, i, theta):
    abs_x = jnp.sqrt(r * r + i * i)
    b = jnp.maximum(abs_x - theta, 0.0)
    return r / abs_x * b, i / abs_x * b


def _cvlinear_ref(r, i, wr, wi):
    ac, bd, ad, bc = r @ wr, i @ wi, r @ wi, i @ wr
    return ac - bd, ad + bc


def encoder1_ref(x, params):
    """Pure-JAX reference of the PyTorch forward (for correctness check)."""
    xr = x[:, 0, :].astype(jnp.float32)
    xi = x[:, 1, :].astype(jnp.float32)
    for blk in range(N_BLOCKS):
        id_r, id_i = xr, xi
        r, i = _cvlinear_ref(xr, xi, params["w_real"][blk, 0], params["w_imag"][blk, 0])
        r = _layernorm_ref(r, params["gamma_real"][blk, 0], params["beta_real"][blk, 0])
        i = _layernorm_ref(i, params["gamma_imag"][blk, 0], params["beta_imag"][blk, 0])
        r, i = _soft_threshold_ref(r, i, params["theta"][blk, 0])
        r, i = _cvlinear_ref(r, i, params["w_real"][blk, 1], params["w_imag"][blk, 1])
        r = _layernorm_ref(r, params["gamma_real"][blk, 1], params["beta_real"][blk, 1])
        i = _layernorm_ref(i, params["gamma_imag"][blk, 1], params["beta_imag"][blk, 1])
        r, i = r + id_r, i + id_i
        xr, xi = _soft_threshold_ref(r, i, params["theta"][blk, 1])
    return jnp.stack([xr, xi], axis=1)


if __name__ == "__main__":
    key = jax.random.PRNGKey(0)
    k_x, k_p = jax.random.split(key)

    batch, in_features = 8, 32
    x = jax.random.normal(k_x, (batch, 2, in_features), jnp.float32)
    params = init_params(k_p, in_features)

    out = jax.block_until_ready(encoder1_pallas(x, params))
    ref = encoder1_ref(x, params)

    assert out.shape == (batch, 2, in_features) and out.dtype == jnp.float32
    assert bool(jnp.all(jnp.isfinite(out)))
    max_err = float(jnp.max(jnp.abs(out - ref)))
    assert max_err < 1e-3, f"max abs error {max_err}"

    print("KERNEL_OK")
</pallas_src>

<mosaic_0001>
module attributes {stable_mosaic.version = 11 : i64} {
  func.func @encoder1_kernel(%arg0: i32, %arg1: memref<64x256xf32, #tpu.memory_space<vmem>>, %arg2: memref<8x64x64xf32, #tpu.memory_space<vmem>>, %arg3: memref<8x64x1xf32, #tpu.memory_space<vmem>>, %arg4: memref<8x64x1xf32, #tpu.memory_space<vmem>>, %arg5: memref<8xf32, #tpu.memory_space<smem>>, %arg6: memref<64x256xf32, #tpu.memory_space<vmem>>) attributes {dimension_semantics = [#tpu.dimension_semantics<parallel>], iteration_bounds = array<i64: 1>, scalar_prefetch = 0 : i64, scratch_operands = 0 : i64, tpu.core_type = #tpu.core_type<tc>, window_params = [{transform_indices = @transform_0, window_bounds = array<i64: 64, 256>}, {pipeline_mode = #tpu.pipeline_mode<synchronous>, transform_indices = @transform_1, window_bounds = array<i64: 8, 64, 64>}, {pipeline_mode = #tpu.pipeline_mode<synchronous>, transform_indices = @transform_2, window_bounds = array<i64: 8, 64, 1>}, {pipeline_mode = #tpu.pipeline_mode<synchronous>, transform_indices = @transform_3, window_bounds = array<i64: 8, 64, 1>}, {transform_indices = @transform_4, window_bounds = array<i64: 8>}, {transform_indices = @transform_5, window_bounds = array<i64: 64, 256>}]} {
    %c0 = arith.constant 0 : index
    %c0_0 = arith.constant 0 : index
    %0 = vector.load %arg1[%c0, %c0_0] : memref<64x256xf32, #tpu.memory_space<vmem>>, vector<64x256xf32>
    %c0_1 = arith.constant 0 : index
    %c0_2 = arith.constant 0 : index
    %c0_3 = arith.constant 0 : index
    %1 = vector.load %arg2[%c0_1, %c0_2, %c0_3] : memref<8x64x64xf32, #tpu.memory_space<vmem>>, vector<1x64x64xf32>
    %2 = vector.shape_cast %1 : vector<1x64x64xf32> to vector<64x64xf32>
    %cst = arith.constant dense<0.000000e+00> : vector<64x256xf32>
    %3 = tpu.matmul %2, %0, %cst {dimension_numbers = #tpu.dot_dimension_numbers<[1], [0], [0], [1], [0, 0, 1, 1], [], []>} : vector<64x64xf32>, vector<64x256xf32>, vector<64x256xf32> -> vector<64x256xf32>
    %c0_4 = arith.constant 0 : index
    %c0_5 = arith.constant 0 : index
    %c0_6 = arith.constant 0 : index
    %4 = vector.load %arg3[%c0_4, %c0_5, %c0_6] : memref<8x64x1xf32, #tpu.memory_space<vmem>>, vector<1x64x1xf32>
    %5 = vector.shape_cast %4 : vector<1x64x1xf32> to vector<64x1xf32>
    %c0_7 = arith.constant 0 : index
    %c0_8 = arith.constant 0 : index
    %c0_9 = arith.constant 0 : index
    %6 = vector.load %arg4[%c0_7, %c0_8, %c0_9] : memref<8x64x1xf32, #tpu.memory_space<vmem>>, vector<1x64x1xf32>
    %7 = vector.shape_cast %6 : vector<1x64x1xf32> to vector<64x1xf32>
    %8 = vector.extract_strided_slice %3 {offsets = [0, 0], sizes = [32, 256], strides = [1, 1]} : vector<64x256xf32> to vector<32x256xf32>
    %cst_10 = arith.constant dense<0.000000e+00> : vector<256xf32>
    %9 = vector.multi_reduction <add>, %8, %cst_10 [0] : vector<32x256xf32> to vector<256xf32>
    %10 = vector.shape_cast %9 : vector<256xf32> to vector<1x256xf32>
    %11 = arith.mulf %8, %8 : vector<32x256xf32>
    %cst_11 = arith.constant dense<0.000000e+00> : vector<256xf32>
    %12 = vector.multi_reduction <add>, %11, %cst_11 [0] : vector<32x256xf32> to vector<256xf32>
    %13 = vector.shape_cast %12 : vector<256xf32> to vector<1x256xf32>
    %cst_12 = arith.constant 3.125000e-02 : f32
    %14 = vector.broadcast %cst_12 : f32 to vector<1x256xf32>
    %15 = arith.mulf %10, %14 : vector<1x256xf32>
    %cst_13 = arith.constant 3.125000e-02 : f32
    %16 = vector.broadcast %cst_13 : f32 to vector<1x256xf32>
    %17 = arith.mulf %13, %16 : vector<1x256xf32>
    %18 = arith.mulf %15, %15 : vector<1x256xf32>
    %19 = arith.subf %17, %18 : vector<1x256xf32>
    %20 = vector.broadcast %15 : vector<1x256xf32> to vector<32x256xf32>
    %21 = arith.subf %8, %20 : vector<32x256xf32>
    %cst_14 = arith.constant 9.99999974E-6 : f32
    %22 = vector.broadcast %cst_14 : f32 to vector<1x256xf32>
    %23 = arith.addf %19, %22 : vector<1x256xf32>
    %24 = math.rsqrt %23 : vector<1x256xf32>
    %25 = vector.broadcast %24 : vector<1x256xf32> to vector<32x256xf32>
    %26 = arith.mulf %21, %25 : vector<32x256xf32>
    %27 = vector.extract_strided_slice %3 {offsets = [32, 0], sizes = [32, 256], strides = [1, 1]} : vector<64x256xf32> to vector<32x256xf32>
    %cst_15 = arith.constant dense<0.000000e+00> : vector<256xf32>
    %28 = vector.multi_reduction <add>, %27, %cst_15 [0] : vector<32x256xf32> to vector<256xf32>
    %29 = vector.shape_cast %28 : vector<256xf32> to vector<1x256xf32>
    %30 = arith.mulf %27, %27 : vector<32x256xf32>
    %cst_16 = arith.constant dense<0.000000e+00> : vector<256xf32>
    %31 = vector.multi_reduction <add>, %30, %cst_16 [0] : vector<32x256xf32> to vector<256xf32>
    %32 = vector.shape_cast %31 : vector<256xf32> to vector<1x256xf32>
    %cst_17 = arith.constant 3.125000e-02 : f32
    %33 = vector.broadcast %cst_17 : f32 to vector<1x256xf32>
    %34 = arith.mulf %29, %33 : vector<1x256xf32>
    %cst_18 = arith.constant 3.125000e-02 : f32
    %35 = vector.broadcast %cst_18 : f32 to vector<1x256xf32>
    %36 = arith.mulf %32, %35 : vector<1x256xf32>
    %37 = arith.mulf %34, %34 : vector<1x256xf32>
    %38 = arith.subf %36, %37 : vector<1x256xf32>
    %39 = vector.broadcast %34 : vector<1x256xf32> to vector<32x256xf32>
    %40 = arith.subf %27, %39 : vector<32x256xf32>
    %cst_19 = arith.constant 9.99999974E-6 : f32
    %41 = vector.broadcast %cst_19 : f32 to vector<1x256xf32>
    %42 = arith.addf %38, %41 : vector<1x256xf32>
    %43 = math.rsqrt %42 : vector<1x256xf32>
    %44 = vector.broadcast %43 : vector<1x256xf32> to vector<32x256xf32>
    %45 = arith.mulf %40, %44 : vector<32x256xf32>
    %46 = tpu.concatenate %26, %45 in 0 : vector<32x256xf32>, vector<32x256xf32> -> vector<64x256xf32>
    %47 = vector.broadcast %5 : vector<64x1xf32> to vector<64x256xf32>
    %48 = arith.mulf %46, %47 : vector<64x256xf32>
    %49 = vector.broadcast %7 : vector<64x1xf32> to vector<64x256xf32>
    %50 = arith.addf %48, %49 : vector<64x256xf32>
    %c0_20 = arith.constant 0 : index
    %51 = memref.load %arg5[%c0_20] : memref<8xf32, #tpu.memory_space<smem>>
    %52 = vector.extract_strided_slice %50 {offsets = [0, 0], sizes = [32, 256], strides = [1, 1]} : vector<64x256xf32> to vector<32x256xf32>
    %53 = vector.extract_strided_slice %50 {offsets = [32, 0], sizes = [32, 256], strides = [1, 1]} : vector<64x256xf32> to vector<32x256xf32>
    %54 = arith.mulf %52, %52 : vector<32x256xf32>
    %55 = arith.mulf %53, %53 : vector<32x256xf32>
    %56 = arith.addf %54, %55 : vector<32x256xf32>
    %cst_21 = arith.constant 0.000000e+00 : f32
    %57 = vector.broadcast %cst_21 : f32 to vector<32x256xf32>
    %58 = arith.cmpf ogt, %56, %57 : vector<32x256xf32>
    %59 = math.rsqrt %56 : vector<32x256xf32>
    %cst_22 = arith.constant 0.000000e+00 : f32
    %60 = vector.broadcast %cst_22 : f32 to vector<32x256xf32>
    %61 = arith.select %58, %59, %60 : vector<32x256xi1>, vector<32x256xf32>
    %62 = vector.broadcast %51 : f32 to vector<32x256xf32>
    %63 = arith.mulf %62, %61 : vector<32x256xf32>
    %cst_23 = arith.constant 1.000000e+00 : f32
    %64 = vector.broadcast %cst_23 : f32 to vector<32x256xf32>
    %65 = arith.subf %64, %63 : vector<32x256xf32>
    %cst_24 = arith.constant 0.000000e+00 : f32
    %66 = vector.broadcast %cst_24 : f32 to vector<32x256xf32>
    %67 = arith.maximumf %65, %66 : vector<32x256xf32>
    %68 = tpu.concatenate %67, %67 in 0 : vector<32x256xf32>, vector<32x256xf32> -> vector<64x256xf32>
    %69 = arith.mulf %50, %68 : vector<64x256xf32>
    %c1 = arith.constant 1 : index
    %c0_25 = arith.constant 0 : index
    %c0_26 = arith.constant 0 : index
    %70 = vector.load %arg2[%c1, %c0_25, %c0_26] : memref<8x64x64xf32, #tpu.memory_space<vmem>>, vector<1x64x64xf32>
    %71 = vector.shape_cast %70 : vector<1x64x64xf32> to vector<64x64xf32>
    %cst_27 = arith.constant dense<0.000000e+00> : vector<64x256xf32>
    %72 = tpu.matmul %71, %69, %cst_27 {dimension_numbers = #tpu.dot_dimension_numbers<[1], [0], [0], [1], [0, 0, 1, 1], [], []>} : vector<64x64xf32>, vector<64x256xf32>, vector<64x256xf32> -> vector<64x256xf32>
    %c1_28 = arith.constant 1 : index
    %c0_29 = arith.constant 0 : index
    %c0_30 = arith.constant 0 : index
    %73 = vector.load %arg3[%c1_28, %c0_29, %c0_30] : memref<8x64x1xf32, #tpu.memory_space<vmem>>, vector<1x64x1xf32>
    %74 = vector.shape_cast %73 : vector<1x64x1xf32> to vector<64x1xf32>
    %c1_31 = arith.constant 1 : index
    %c0_32 = arith.constant 0 : index
    %c0_33 = arith.constant 0 : index
    %75 = vector.load %arg4[%c1_31, %c0_32, %c0_33] : memref<8x64x1xf32, #tpu.memory_space<vmem>>, vector<1x64x1xf32>
    %76 = vector.shape_cast %75 : vector<1x64x1xf32> to vector<64x1xf32>
    %77 = vector.extract_strided_slice %72 {offsets = [0, 0], sizes = [32, 256], strides = [1, 1]} : vector<64x256xf32> to vector<32x256xf32>
    %cst_34 = arith.constant dense<0.000000e+00> : vector<256xf32>
    %78 = vector.multi_reduction <add>, %77, %cst_34 [0] : vector<32x256xf32> to vector<256xf32>
    %79 = vector.shape_cast %78 : vector<256xf32> to vector<1x256xf32>
    %80 = arith.mulf %77, %77 : vector<32x256xf32>
    %cst_35 = arith.constant dense<0.000000e+00> : vector<256xf32>
    %81 = vector.multi_reduction <add>, %80, %cst_35 [0] : vector<32x256xf32> to vector<256xf32>
    %82 = vector.shape_cast %81 : vector<256xf32> to vector<1x256xf32>
    %cst_36 = arith.constant 3.125000e-02 : f32
    %83 = vector.broadcast %cst_36 : f32 to vector<1x256xf32>
    %84 = arith.mulf %79, %83 : vector<1x256xf32>
    %cst_37 = arith.constant 3.125000e-02 : f32
    %85 = vector.broadcast %cst_37 : f32 to vector<1x256xf32>
    %86 = arith.mulf %82, %85 : vector<1x256xf32>
    %87 = arith.mulf %84, %84 : vector<1x256xf32>
    %88 = arith.subf %86, %87 : vector<1x256xf32>
    %89 = vector.broadcast %84 : vector<1x256xf32> to vector<32x256xf32>
    %90 = arith.subf %77, %89 : vector<32x256xf32>
    %cst_38 = arith.constant 9.99999974E-6 : f32
    %91 = vector.broadcast %cst_38 : f32 to vector<1x256xf32>
    %92 = arith.addf %88, %91 : vector<1x256xf32>
    %93 = math.rsqrt %92 : vector<1x256xf32>
    %94 = vector.broadcast %93 : vector<1x256xf32> to vector<32x256xf32>
    %95 = arith.mulf %90, %94 : vector<32x256xf32>
    %96 = vector.extract_strided_slice %72 {offsets = [32, 0], sizes = [32, 256], strides = [1, 1]} : vector<64x256xf32> to vector<32x256xf32>
    %cst_39 = arith.constant dense<0.000000e+00> : vector<256xf32>
    %97 = vector.multi_reduction <add>, %96, %cst_39 [0] : vector<32x256xf32> to vector<256xf32>
    %98 = vector.shape_cast %97 : vector<256xf32> to vector<1x256xf32>
    %99 = arith.mulf %96, %96 : vector<32x256xf32>
    %cst_40 = arith.constant dense<0.000000e+00> : vector<256xf32>
    %100 = vector.multi_reduction <add>, %99, %cst_40 [0] : vector<32x256xf32> to vector<256xf32>
    %101 = vector.shape_cast %100 : vector<256xf32> to vector<1x256xf32>
    %cst_41 = arith.constant 3.125000e-02 : f32
    %102 = vector.broadcast %cst_41 : f32 to vector<1x256xf32>
    %103 = arith.mulf %98, %102 : vector<1x256xf32>
    %cst_42 = arith.constant 3.125000e-02 : f32
    %104 = vector.broadcast %cst_42 : f32 to vector<1x256xf32>
    %105 = arith.mulf %101, %104 : vector<1x256xf32>
    %106 = arith.mulf %103, %103 : vector<1x256xf32>
    %107 = arith.subf %105, %106 : vector<1x256xf32>
    %108 = vector.broadcast %103 : vector<1x256xf32> to vector<32x256xf32>
    %109 = arith.subf %96, %108 : vector<32x256xf32>
    %cst_43 = arith.constant 9.99999974E-6 : f32
    %110 = vector.broadcast %cst_43 : f32 to vector<1x256xf32>
    %111 = arith.addf %107, %110 : vector<1x256xf32>
    %112 = math.rsqrt %111 : vector<1x256xf32>
    %113 = vector.broadcast %112 : vector<1x256xf32> to vector<32x256xf32>
    %114 = arith.mulf %109, %113 : vector<32x256xf32>
    %115 = tpu.concatenate %95, %114 in 0 : vector<32x256xf32>, vector<32x256xf32> -> vector<64x256xf32>
    %116 = vector.broadcast %74 : vector<64x1xf32> to vector<64x256xf32>
    %117 = arith.mulf %115, %116 : vector<64x256xf32>
    %118 = vector.broadcast %76 : vector<64x1xf32> to vector<64x256xf32>
    %119 = arith.addf %117, %118 : vector<64x256xf32>
    %120 = arith.addf %119, %0 : vector<64x256xf32>
    %c1_44 = arith.constant 1 : index
    %121 = memref.load %arg5[%c1_44] : memref<8xf32, #tpu.memory_space<smem>>
    %122 = vector.extract_strided_slice %120 {offsets = [0, 0], sizes = [32, 256], strides = [1, 1]} : vector<64x256xf32> to vector<32x256xf32>
    %123 = vector.extract_strided_slice %120 {offsets = [32, 0], sizes = [32, 256], strides = [1, 1]} : vector<64x256xf32> to vector<32x256xf32>
    %124 = arith.mulf %122, %122 : vector<32x256xf32>
    %125 = arith.mulf %123, %123 : vector<32x256xf32>
    %126 = arith.addf %124, %125 : vector<32x256xf32>
    %cst_45 = arith.constant 0.000000e+00 : f32
    %127 = vector.broadcast %cst_45 : f32 to vector<32x256xf32>
    %128 = arith.cmpf ogt, %126, %127 : vector<32x256xf32>
    %129 = math.rsqrt %126 : vector<32x256xf32>
    %cst_46 = arith.constant 0.000000e+00 : f32
    %130 = vector.broadcast %cst_46 : f32 to vector<32x256xf32>
    %131 = arith.select %128, %129, %130 : vector<32x256xi1>, vector<32x256xf32>
    %132 = vector.broadcast %121 : f32 to vector<32x256xf32>
    %133 = arith.mulf %132, %131 : vector<32x256xf32>
    %cst_47 = arith.constant 1.000000e+00 : f32
    %134 = vector.broadcast %cst_47 : f32 to vector<32x256xf32>
    %135 = arith.subf %134, %133 : vector<32x256xf32>
    %cst_48 = arith.constant 0.000000e+00 : f32
    %136 = vector.broadcast %cst_48 : f32 to vector<32x256xf32>
    %137 = arith.maximumf %135, %136 : vector<32x256xf32>
    %138 = tpu.concatenate %137, %137 in 0 : vector<32x256xf32>, vector<32x256xf32> -> vector<64x256xf32>
    %139 = arith.mulf %120, %138 : vector<64x256xf32>
    %c2 = arith.constant 2 : index
    %c0_49 = arith.constant 0 : index
    %c0_50 = arith.constant 0 : index
    %140 = vector.load %arg2[%c2, %c0_49, %c0_50] : memref<8x64x64xf32, #tpu.memory_space<vmem>>, vector<1x64x64xf32>
    %141 = vector.shape_cast %140 : vector<1x64x64xf32> to vector<64x64xf32>
    %cst_51 = arith.constant dense<0.000000e+00> : vector<64x256xf32>
    %142 = tpu.matmul %141, %139, %cst_51 {dimension_numbers = #tpu.dot_dimension_numbers<[1], [0], [0], [1], [0, 0, 1, 1], [], []>} : vector<64x64xf32>, vector<64x256xf32>, vector<64x256xf32> -> vector<64x256xf32>
    %c2_52 = arith.constant 2 : index
    %c0_53 = arith.constant 0 : index
    %c0_54 = arith.constant 0 : index
    %143 = vector.load %arg3[%c2_52, %c0_53, %c0_54] : memref<8x64x1xf32, #tpu.memory_space<vmem>>, vector<1x64x1xf32>
    %144 = vector.shape_cast %143 : vector<1x64x1xf32> to vector<64x1xf32>
    %c2_55 = arith.constant 2 : index
    %c0_56 = arith.constant 0 : index
    %c0_57 = arith.constant 0 : index
    %145 = vector.load %arg4[%c2_55, %c0_56, %c0_57] : memref<8x64x1xf32, #tpu.memory_space<vmem>>, vector<1x64x1xf32>
    %146 = vector.shape_cast %145 : vector<1x64x1xf32> to vector<64x1xf32>
    %147 = vector.extract_strided_slice %142 {offsets = [0, 0], sizes = [32, 256], strides = [1, 1]} : vector<64x256xf32> to vector<32x256xf32>
    %cst_58 = arith.constant dense<0.000000e+00> : vector<256xf32>
    %148 = vector.multi_reduction <add>, %147, %cst_58 [0] : vector<32x256xf32> to vector<256xf32>
    %149 = vector.shape_cast %148 : vector<256xf32> to vector<1x256xf32>
    %150 = arith.mulf %147, %147 : vector<32x256xf32>
    %cst_59 = arith.constant dense<0.000000e+00> : vector<256xf32>
    %151 = vector.multi_reduction <add>, %150, %cst_59 [0] : vector<32x256xf32> to vector<256xf32>
    %152 = vector.shape_cast %151 : vector<256xf32> to vector<1x256xf32>
    %cst_60 = arith.constant 3.125000e-02 : f32
    %153 = vector.broadcast %cst_60 : f32 to vector<1x256xf32>
    %154 = arith.mulf %149, %153 : vector<1x256xf32>
    %cst_61 = arith.constant 3.125000e-02 : f32
    %155 = vector.broadcast %cst_61 : f32 to vector<1x256xf32>
    %156 = arith.mulf %152, %155 : vector<1x256xf32>
    %157 = arith.mulf %154, %154 : vector<1x256xf32>
    %158 = arith.subf %156, %157 : vector<1x256xf32>
    %159 = vector.broadcast %154 : vector<1x256xf32> to vector<32x256xf32>
    %160 = arith.subf %147, %159 : vector<32x256xf32>
    %cst_62 = arith.constant 9.99999974E-6 : f32
    %161 = vector.broadcast %cst_62 : f32 to vector<1x256xf32>
    %162 = arith.addf %158, %161 : vector<1x256xf32>
    %163 = math.rsqrt %162 : vector<1x256xf32>
    %164 = vector.broadcast %163 : vector<1x256xf32> to vector<32x256xf32>
    %165 = arith.mulf %160, %164 : vector<32x256xf32>
    %166 = vector.extract_strided_slice %142 {offsets = [32, 0], sizes = [32, 256], strides = [1, 1]} : vector<64x256xf32> to vector<32x256xf32>
    %cst_63 = arith.constant dense<0.000000e+00> : vector<256xf32>
    %167 = vector.multi_reduction <add>, %166, %cst_63 [0] : vector<32x256xf32> to vector<256xf32>
    %168 = vector.shape_cast %167 : vector<256xf32> to vector<1x256xf32>
    %169 = arith.mulf %166, %166 : vector<32x256xf32>
    %cst_64 = arith.constant dense<0.000000e+00> : vector<256xf32>
    %170 = vector.multi_reduction <add>, %169, %cst_64 [0] : vector<32x256xf32> to vector<256xf32>
    %171 = vector.shape_cast %170 : vector<256xf32> to vector<1x256xf32>
    %cst_65 = arith.constant 3.125000e-02 : f32
    %172 = vector.broadcast %cst_65 : f32 to vector<1x256xf32>
    %173 = arith.mulf %168, %172 : vector<1x256xf32>
    %cst_66 = arith.constant 3.125000e-02 : f32
    %174 = vector.broadcast %cst_66 : f32 to vector<1x256xf32>
    %175 = arith.mulf %171, %174 : vector<1x256xf32>
    %176 = arith.mulf %173, %173 : vector<1x256xf32>
    %177 = arith.subf %175, %176 : vector<1x256xf32>
    %178 = vector.broadcast %173 : vector<1x256xf32> to vector<32x256xf32>
    %179 = arith.subf %166, %178 : vector<32x256xf32>
    %cst_67 = arith.constant 9.99999974E-6 : f32
    %180 = vector.broadcast %cst_67 : f32 to vector<1x256xf32>
    %181 = arith.addf %177, %180 : vector<1x256xf32>
    %182 = math.rsqrt %181 : vector<1x256xf32>
    %183 = vector.broadcast %182 : vector<1x256xf32> to vector<32x256xf32>
    %184 = arith.mulf %179, %183 : vector<32x256xf32>
    %185 = tpu.concatenate %165, %184 in 0 : vector<32x256xf32>, vector<32x256xf32> -> vector<64x256xf32>
    %186 = vector.broadcast %144 : vector<64x1xf32> to vector<64x256xf32>
    %187 = arith.mulf %185, %186 : vector<64x256xf32>
    %188 = vector.broadcast %146 : vector<64x1xf32> to vector<64x256xf32>
    %189 = arith.addf %187, %188 : vector<64x256xf32>
    %c2_68 = arith.constant 2 : index
    %190 = memref.load %arg5[%c2_68] : memref<8xf32, #tpu.memory_space<smem>>
    %191 = vector.extract_strided_slice %189 {offsets = [0, 0], sizes = [32, 256], strides = [1, 1]} : vector<64x256xf32> to vector<32x256xf32>
    %192 = vector.extract_strided_slice %189 {offsets = [32, 0], sizes = [32, 256], strides = [1, 1]} : vector<64x256xf32> to vector<32x256xf32>
    %193 = arith.mulf %191, %191 : vector<32x256xf32>
    %194 = arith.mulf %192, %192 : vector<32x256xf32>
    %195 = arith.addf %193, %194 : vector<32x256xf32>
    %cst_69 = arith.constant 0.000000e+00 : f32
    %196 = vector.broadcast %cst_69 : f32 to vector<32x256xf32>
    %197 = arith.cmpf ogt, %195, %196 : vector<32x256xf32>
    %198 = math.rsqrt %195 : vector<32x256xf32>
    %cst_70 = arith.constant 0.000000e+00 : f32
    %199 = vector.broadcast %cst_70 : f32 to vector<32x256xf32>
    %200 = arith.select %197, %198, %199 : vector<32x256xi1>, vector<32x256xf32>
    %201 = vector.broadcast %190 : f32 to vector<32x256xf32>
    %202 = arith.mulf %201, %200 : vector<32x256xf32>
    %cst_71 = arith.constant 1.000000e+00 : f32
    %203 = vector.broadcast %cst_71 : f32 to vector<32x256xf32>
    %204 = arith.subf %203, %202 : vector<32x256xf32>
    %cst_72 = arith.constant 0.000000e+00 : f32
    %205 = vector.broadcast %cst_72 : f32 to vector<32x256xf32>
    %206 = arith.maximumf %204, %205 : vector<32x256xf32>
    %207 = tpu.concatenate %206, %206 in 0 : vector<32x256xf32>, vector<32x256xf32> -> vector<64x256xf32>
    %208 = arith.mulf %189, %207 : vector<64x256xf32>
    %c3 = arith.constant 3 : index
    %c0_73 = arith.constant 0 : index
    %c0_74 = arith.constant 0 : index
    %209 = vector.load %arg2[%c3, %c0_73, %c0_74] : memref<8x64x64xf32, #tpu.memory_space<vmem>>, vector<1x64x64xf32>
    %210 = vector.shape_cast %209 : vector<1x64x64xf32> to vector<64x64xf32>
    %cst_75 = arith.constant dense<0.000000e+00> : vector<64x256xf32>
    %211 = tpu.matmul %210, %208, %cst_75 {dimension_numbers = #tpu.dot_dimension_numbers<[1], [0], [0], [1], [0, 0, 1, 1], [], []>} : vector<64x64xf32>, vector<64x256xf32>, vector<64x256xf32> -> vector<64x256xf32>
    %c3_76 = arith.constant 3 : index
    %c0_77 = arith.constant 0 : index
    %c0_78 = arith.constant 0 : index
    %212 = vector.load %arg3[%c3_76, %c0_77, %c0_78] : memref<8x64x1xf32, #tpu.memory_space<vmem>>, vector<1x64x1xf32>
    %213 = vector.shape_cast %212 : vector<1x64x1xf32> to vector<64x1xf32>
    %c3_79 = arith.constant 3 : index
    %c0_80 = arith.constant 0 : index
    %c0_81 = arith.constant 0 : index
    %214 = vector.load %arg4[%c3_79, %c0_80, %c0_81] : memref<8x64x1xf32, #tpu.memory_space<vmem>>, vector<1x64x1xf32>
    %215 = vector.shape_cast %214 : vector<1x64x1xf32> to vector<64x1xf32>
    %216 = vector.extract_strided_slice %211 {offsets = [0, 0], sizes = [32, 256], strides = [1, 1]} : vector<64x256xf32> to vector<32x256xf32>
    %cst_82 = arith.constant dense<0.000000e+00> : vector<256xf32>
    %217 = vector.multi_reduction <add>, %216, %cst_82 [0] : vector<32x256xf32> to vector<256xf32>
    %218 = vector.shape_cast %217 : vector<256xf32> to vector<1x256xf32>
    %219 = arith.mulf %216, %216 : vector<32x256xf32>
    %cst_83 = arith.constant dense<0.000000e+00> : vector<256xf32>
    %220 = vector.multi_reduction <add>, %219, %cst_83 [0] : vector<32x256xf32> to vector<256xf32>
    %221 = vector.shape_cast %220 : vector<256xf32> to vector<1x256xf32>
    %cst_84 = arith.constant 3.125000e-02 : f32
    %222 = vector.broadcast %cst_84 : f32 to vector<1x256xf32>
    %223 = arith.mulf %218, %222 : vector<1x256xf32>
    %cst_85 = arith.constant 3.125000e-02 : f32
    %224 = vector.broadcast %cst_85 : f32 to vector<1x256xf32>
    %225 = arith.mulf %221, %224 : vector<1x256xf32>
    %226 = arith.mulf %223, %223 : vector<1x256xf32>
    %227 = arith.subf %225, %226 : vector<1x256xf32>
    %228 = vector.broadcast %223 : vector<1x256xf32> to vector<32x256xf32>
    %229 = arith.subf %216, %228 : vector<32x256xf32>
    %cst_86 = arith.constant 9.99999974E-6 : f32
    %230 = vector.broadcast %cst_86 : f32 to vector<1x256xf32>
    %231 = arith.addf %227, %230 : vector<1x256xf32>
    %232 = math.rsqrt %231 : vector<1x256xf32>
    %233 = vector.broadcast %232 : vector<1x256xf32> to vector<32x256xf32>
    %234 = arith.mulf %229, %233 : vector<32x256xf32>
    %235 = vector.extract_strided_slice %211 {offsets = [32, 0], sizes = [32, 256], strides = [1, 1]} : vector<64x256xf32> to vector<32x256xf32>
    %cst_87 = arith.constant dense<0.000000e+00> : vector<256xf32>
    %236 = vector.multi_reduction <add>, %235, %cst_87 [0] : vector<32x256xf32> to vector<256xf32>
    %237 = vector.shape_cast %236 : vector<256xf32> to vector<1x256xf32>
    %238 = arith.mulf %235, %235 : vector<32x256xf32>
    %cst_88 = arith.constant dense<0.000000e+00> : vector<256xf32>
    %239 = vector.multi_reduction <add>, %238, %cst_88 [0] : vector<32x256xf32> to vector<256xf32>
    %240 = vector.shape_cast %239 : vector<256xf32> to vector<1x256xf32>
    %cst_89 = arith.constant 3.125000e-02 : f32
    %241 = vector.broadcast %cst_89 : f32 to vector<1x256xf32>
    %242 = arith.mulf %237, %241 : vector<1x256xf32>
    %cst_90 = arith.constant 3.125000e-02 : f32
    %243 = vector.broadcast %cst_90 : f32 to vector<1x256xf32>
    %244 = arith.mulf %240, %243 : vector<1x256xf32>
    %245 = arith.mulf %242, %242 : vector<1x256xf32>
    %246 = arith.subf %244, %245 : vector<1x256xf32>
    %247 = vector.broadcast %242 : vector<1x256xf32> to vector<32x256xf32>
    %248 = arith.subf %235, %247 : vector<32x256xf32>
    %cst_91 = arith.constant 9.99999974E-6 : f32
    %249 = vector.broadcast %cst_91 : f32 to vector<1x256xf32>
    %250 = arith.addf %246, %249 : vector<1x256xf32>
    %251 = math.rsqrt %250 : vector<1x256xf32>
    %252 = vector.broadcast %251 : vector<1x256xf32> to vector<32x256xf32>
    %253 = arith.mulf %248, %252 : vector<32x256xf32>
    %254 = tpu.concatenate %234, %253 in 0 : vector<32x256xf32>, vector<32x256xf32> -> vector<64x256xf32>
    %255 = vector.broadcast %213 : vector<64x1xf32> to vector<64x256xf32>
    %256 = arith.mulf %254, %255 : vector<64x256xf32>
    %257 = vector.broadcast %215 : vector<64x1xf32> to vector<64x256xf32>
    %258 = arith.addf %256, %257 : vector<64x256xf32>
    %259 = arith.addf %258, %139 : vector<64x256xf32>
    %c3_92 = arith.constant 3 : index
    %260 = memref.load %arg5[%c3_92] : memref<8xf32, #tpu.memory_space<smem>>
    %261 = vector.extract_strided_slice %259 {offsets = [0, 0], sizes = [32, 256], strides = [1, 1]} : vector<64x256xf32> to vector<32x256xf32>
    %262 = vector.extract_strided_slice %259 {offsets = [32, 0], sizes = [32, 256], strides = [1, 1]} : vector<64x256xf32> to vector<32x256xf32>
    %263 = arith.mulf %261, %261 : vector<32x256xf32>
    %264 = arith.mulf %262, %262 : vector<32x256xf32>
    %265 = arith.addf %263, %264 : vector<32x256xf32>
    %cst_93 = arith.constant 0.000000e+00 : f32
    %266 = vector.broadcast %cst_93 : f32 to vector<32x256xf32>
    %267 = arith.cmpf ogt, %265, %266 : vector<32x256xf32>
    %268 = math.rsqrt %265 : vector<32x256xf32>
    %cst_94 = arith.constant 0.000000e+00 : f32
    %269 = vector.broadcast %cst_94 : f32 to vector<32x256xf32>
    %270 = arith.select %267, %268, %269 : vector<32x256xi1>, vector<32x256xf32>
    %271 = vector.broadcast %260 : f32 to vector<32x256xf32>
    %272 = arith.mulf %271, %270 : vector<32x256xf32>
    %cst_95 = arith.constant 1.000000e+00 : f32
    %273 = vector.broadcast %cst_95 : f32 to vector<32x256xf32>
    %274 = arith.subf %273, %272 : vector<32x256xf32>
    %cst_96 = arith.constant 0.000000e+00 : f32
    %275 = vector.broadcast %cst_96 : f32 to vector<32x256xf32>
    %276 = arith.maximumf %274, %275 : vector<32x256xf32>
    %277 = tpu.concatenate %276, %276 in 0 : vector<32x256xf32>, vector<32x256xf32> -> vector<64x256xf32>
    %278 = arith.mulf %259, %277 : vector<64x256xf32>
    %c4 = arith.constant 4 : index
    %c0_97 = arith.constant 0 : index
    %c0_98 = arith.constant 0 : index
    %279 = vector.load %arg2[%c4, %c0_97, %c0_98] : memref<8x64x64xf32, #tpu.memory_space<vmem>>, vector<1x64x64xf32>
    %280 = vector.shape_cast %279 : vector<1x64x64xf32> to vector<64x64xf32>
    %cst_99 = arith.constant dense<0.000000e+00> : vector<64x256xf32>
    %281 = tpu.matmul %280, %278, %cst_99 {dimension_numbers = #tpu.dot_dimension_numbers<[1], [0], [0], [1], [0, 0, 1, 1], [], []>} : vector<64x64xf32>, vector<64x256xf32>, vector<64x256xf32> -> vector<64x256xf32>
    %c4_100 = arith.constant 4 : index
    %c0_101 = arith.constant 0 : index
    %c0_102 = arith.constant 0 : index
    %282 = vector.load %arg3[%c4_100, %c0_101, %c0_102] : memref<8x64x1xf32, #tpu.memory_space<vmem>>, vector<1x64x1xf32>
    %283 = vector.shape_cast %282 : vector<1x64x1xf32> to vector<64x1xf32>
    %c4_103 = arith.constant 4 : index
    %c0_104 = arith.constant 0 : index
    %c0_105 = arith.constant 0 : index
    %284 = vector.load %arg4[%c4_103, %c0_104, %c0_105] : memref<8x64x1xf32, #tpu.memory_space<vmem>>, vector<1x64x1xf32>
    %285 = vector.shape_cast %284 : vector<1x64x1xf32> to vector<64x1xf32>
    %286 = vector.extract_strided_slice %281 {offsets = [0, 0], sizes = [32, 256], strides = [1, 1]} : vector<64x256xf32> to vector<32x256xf32>
    %cst_106 = arith.constant dense<0.000000e+00> : vector<256xf32>
    %287 = vector.multi_reduction <add>, %286, %cst_106 [0] : vector<32x256xf32> to vector<256xf32>
    %288 = vector.shape_cast %287 : vector<256xf32> to vector<1x256xf32>
    %289 = arith.mulf %286, %286 : vector<32x256xf32>
    %cst_107 = arith.constant dense<0.000000e+00> : vector<256xf32>
    %290 = vector.multi_reduction <add>, %289, %cst_107 [0] : vector<32x256xf32> to vector<256xf32>
    %291 = vector.shape_cast %290 : vector<256xf32> to vector<1x256xf32>
    %cst_108 = arith.constant 3.125000e-02 : f32
    %292 = vector.broadcast %cst_108 : f32 to vector<1x256xf32>
    %293 = arith.mulf %288, %292 : vector<1x256xf32>
    %cst_109 = arith.constant 3.125000e-02 : f32
    %294 = vector.broadcast %cst_109 : f32 to vector<1x256xf32>
    %295 = arith.mulf %291, %294 : vector<1x256xf32>
    %296 = arith.mulf %293, %293 : vector<1x256xf32>
    %297 = arith.subf %295, %296 : vector<1x256xf32>
    %298 = vector.broadcast %293 : vector<1x256xf32> to vector<32x256xf32>
    %299 = arith.subf %286, %298 : vector<32x256xf32>
    %cst_110 = arith.constant 9.99999974E-6 : f32
    %300 = vector.broadcast %cst_110 : f32 to vector<1x256xf32>
    %301 = arith.addf %297, %300 : vector<1x256xf32>
    %302 = math.rsqrt %301 : vector<1x256xf32>
    %303 = vector.broadcast %302 : vector<1x256xf32> to vector<32x256xf32>
    %304 = arith.mulf %299, %303 : vector<32x256xf32>
    %305 = vector.extract_strided_slice %281 {offsets = [32, 0], sizes = [32, 256], strides = [1, 1]} : vector<64x256xf32> to vector<32x256xf32>
    %cst_111 = arith.constant dense<0.000000e+00> : vector<256xf32>
    %306 = vector.multi_reduction <add>, %305, %cst_111 [0] : vector<32x256xf32> to vector<256xf32>
    %307 = vector.shape_cast %306 : vector<256xf32> to vector<1x256xf32>
    %308 = arith.mulf %305, %305 : vector<32x256xf32>
    %cst_112 = arith.constant dense<0.000000e+00> : vector<256xf32>
    %309 = vector.multi_reduction <add>, %308, %cst_112 [0] : vector<32x256xf32> to vector<256xf32>
    %310 = vector.shape_cast %309 : vector<256xf32> to vector<1x256xf32>
    %cst_113 = arith.constant 3.125000e-02 : f32
    %311 = vector.broadcast %cst_113 : f32 to vector<1x256xf32>
    %312 = arith.mulf %307, %311 : vector<1x256xf32>
    %cst_114 = arith.constant 3.125000e-02 : f32
    %313 = vector.broadcast %cst_114 : f32 to vector<1x256xf32>
    %314 = arith.mulf %310, %313 : vector<1x256xf32>
    %315 = arith.mulf %312, %312 : vector<1x256xf32>
    %316 = arith.subf %314, %315 : vector<1x256xf32>
    %317 = vector.broadcast %312 : vector<1x256xf32> to vector<32x256xf32>
    %318 = arith.subf %305, %317 : vector<32x256xf32>
    %cst_115 = arith.constant 9.99999974E-6 : f32
    %319 = vector.broadcast %cst_115 : f32 to vector<1x256xf32>
    %320 = arith.addf %316, %319 : vector<1x256xf32>
    %321 = math.rsqrt %320 : vector<1x256xf32>
    %322 = vector.broadcast %321 : vector<1x256xf32> to vector<32x256xf32>
    %323 = arith.mulf %318, %322 : vector<32x256xf32>
    %324 = tpu.concatenate %304, %323 in 0 : vector<32x256xf32>, vector<32x256xf32> -> vector<64x256xf32>
    %325 = vector.broadcast %283 : vector<64x1xf32> to vector<64x256xf32>
    %326 = arith.mulf %324, %325 : vector<64x256xf32>
    %327 = vector.broadcast %285 : vector<64x1xf32> to vector<64x256xf32>
    %328 = arith.addf %326, %327 : vector<64x256xf32>
    %c4_116 = arith.constant 4 : index
    %329 = memref.load %arg5[%c4_116] : memref<8xf32, #tpu.memory_space<smem>>
    %330 = vector.extract_strided_slice %328 {offsets = [0, 0], sizes = [32, 256], strides = [1, 1]} : vector<64x256xf32> to vector<32x256xf32>
    %331 = vector.extract_strided_slice %328 {offsets = [32, 0], sizes = [32, 256], strides = [1, 1]} : vector<64x256xf32> to vector<32x256xf32>
    %332 = arith.mulf %330, %330 : vector<32x256xf32>
    %333 = arith.mulf %331, %331 : vector<32x256xf32>
    %334 = arith.addf %332, %333 : vector<32x256xf32>
    %cst_117 = arith.constant 0.000000e+00 : f32
    %335 = vector.broadcast %cst_117 : f32 to vector<32x256xf32>
    %336 = arith.cmpf ogt, %334, %335 : vector<32x256xf32>
    %337 = math.rsqrt %334 : vector<32x256xf32>
    %cst_118 = arith.constant 0.000000e+00 : f32
    %338 = vector.broadcast %cst_118 : f32 to vector<32x256xf32>
    %339 = arith.select %336, %337, %338 : vector<32x256xi1>, vector<32x256xf32>
    %340 = vector.broadcast %329 : f32 to vector<32x256xf32>
    %341 = arith.mulf %340, %339 : vector<32x256xf32>
    %cst_119 = arith.constant 1.000000e+00 : f32
    %342 = vector.broadcast %cst_119 : f32 to vector<32x256xf32>
    %343 = arith.subf %342, %341 : vector<32x256xf32>
    %cst_120 = arith.constant 0.000000e+00 : f32
    %344 = vector.broadcast %cst_120 : f32 to vector<32x256xf32>
    %345 = arith.maximumf %343, %344 : vector<32x256xf32>
    %346 = tpu.concatenate %345, %345 in 0 : vector<32x256xf32>, vector<32x256xf32> -> vector<64x256xf32>
    %347 = arith.mulf %328, %346 : vector<64x256xf32>
    %c5 = arith.constant 5 : index
    %c0_121 = arith.constant 0 : index
    %c0_122 = arith.constant 0 : index
    %348 = vector.load %arg2[%c5, %c0_121, %c0_122] : memref<8x64x64xf32, #tpu.memory_space<vmem>>, vector<1x64x64xf32>
    %349 = vector.shape_cast %348 : vector<1x64x64xf32> to vector<64x64xf32>
    %cst_123 = arith.constant dense<0.000000e+00> : vector<64x256xf32>
    %350 = tpu.matmul %349, %347, %cst_123 {dimension_numbers = #tpu.dot_dimension_numbers<[1], [0], [0], [1], [0, 0, 1, 1], [], []>} : vector<64x64xf32>, vector<64x256xf32>, vector<64x256xf32> -> vector<64x256xf32>
    %c5_124 = arith.constant 5 : index
    %c0_125 = arith.constant 0 : index
    %c0_126 = arith.constant 0 : index
    %351 = vector.load %arg3[%c5_124, %c0_125, %c0_126] : memref<8x64x1xf32, #tpu.memory_space<vmem>>, vector<1x64x1xf32>
    %352 = vector.shape_cast %351 : vector<1x64x1xf32> to vector<64x1xf32>
    %c5_127 = arith.constant 5 : index
    %c0_128 = arith.constant 0 : index
    %c0_129 = arith.constant 0 : index
    %353 = vector.load %arg4[%c5_127, %c0_128, %c0_129] : memref<8x64x1xf32, #tpu.memory_space<vmem>>, vector<1x64x1xf32>
    %354 = vector.shape_cast %353 : vector<1x64x1xf32> to vector<64x1xf32>
    %355 = vector.extract_strided_slice %350 {offsets = [0, 0], sizes = [32, 256], strides = [1, 1]} : vector<64x256xf32> to vector<32x256xf32>
    %cst_130 = arith.constant dense<0.000000e+00> : vector<256xf32>
    %356 = vector.multi_reduction <add>, %355, %cst_130 [0] : vector<32x256xf32> to vector<256xf32>
    %357 = vector.shape_cast %356 : vector<256xf32> to vector<1x256xf32>
    %358 = arith.mulf %355, %355 : vector<32x256xf32>
    %cst_131 = arith.constant dense<0.000000e+00> : vector<256xf32>
    %359 = vector.multi_reduction <add>, %358, %cst_131 [0] : vector<32x256xf32> to vector<256xf32>
    %360 = vector.shape_cast %359 : vector<256xf32> to vector<1x256xf32>
    %cst_132 = arith.constant 3.125000e-02 : f32
    %361 = vector.broadcast %cst_132 : f32 to vector<1x256xf32>
    %362 = arith.mulf %357, %361 : vector<1x256xf32>
    %cst_133 = arith.constant 3.125000e-02 : f32
    %363 = vector.broadcast %cst_133 : f32 to vector<1x256xf32>
    %364 = arith.mulf %360, %363 : vector<1x256xf32>
    %365 = arith.mulf %362, %362 : vector<1x256xf32>
    %366 = arith.subf %364, %365 : vector<1x256xf32>
    %367 = vector.broadcast %362 : vector<1x256xf32> to vector<32x256xf32>
    %368 = arith.subf %355, %367 : vector<32x256xf32>
    %cst_134 = arith.constant 9.99999974E-6 : f32
    %369 = vector.broadcast %cst_134 : f32 to vector<1x256xf32>
    %370 = arith.addf %366, %369 : vector<1x256xf32>
    %371 = math.rsqrt %370 : vector<1x256xf32>
    %372 = vector.broadcast %371 : vector<1x256xf32> to vector<32x256xf32>
    %373 = arith.mulf %368, %372 : vector<32x256xf32>
    %374 = vector.extract_strided_slice %350 {offsets = [32, 0], sizes = [32, 256], strides = [1, 1]} : vector<64x256xf32> to vector<32x256xf32>
    %cst_135 = arith.constant dense<0.000000e+00> : vector<256xf32>
    %375 = vector.multi_reduction <add>, %374, %cst_135 [0] : vector<32x256xf32> to vector<256xf32>
    %376 = vector.shape_cast %375 : vector<256xf32> to vector<1x256xf32>
    %377 = arith.mulf %374, %374 : vector<32x256xf32>
    %cst_136 = arith.constant dense<0.000000e+00> : vector<256xf32>
    %378 = vector.multi_reduction <add>, %377, %cst_136 [0] : vector<32x256xf32> to vector<256xf32>
    %379 = vector.shape_cast %378 : vector<256xf32> to vector<1x256xf32>
    %cst_137 = arith.constant 3.125000e-02 : f32
    %380 = vector.broadcast %cst_137 : f32 to vector<1x256xf32>
    %381 = arith.mulf %376, %380 : vector<1x256xf32>
    %cst_138 = arith.constant 3.125000e-02 : f32
    %382 = vector.broadcast %cst_138 : f32 to vector<1x256xf32>
    %383 = arith.mulf %379, %382 : vector<1x256xf32>
    %384 = arith.mulf %381, %381 : vector<1x256xf32>
    %385 = arith.subf %383, %384 : vector<1x256xf32>
    %386 = vector.broadcast %381 : vector<1x256xf32> to vector<32x256xf32>
    %387 = arith.subf %374, %386 : vector<32x256xf32>
    %cst_139 = arith.constant 9.99999974E-6 : f32
    %388 = vector.broadcast %cst_139 : f32 to vector<1x256xf32>
    %389 = arith.addf %385, %388 : vector<1x256xf32>
    %390 = math.rsqrt %389 : vector<1x256xf32>
    %391 = vector.broadcast %390 : vector<1x256xf32> to vector<32x256xf32>
    %392 = arith.mulf %387, %391 : vector<32x256xf32>
    %393 = tpu.concatenate %373, %392 in 0 : vector<32x256xf32>, vector<32x256xf32> -> vector<64x256xf32>
    %394 = vector.broadcast %352 : vector<64x1xf32> to vector<64x256xf32>
    %395 = arith.mulf %393, %394 : vector<64x256xf32>
    %396 = vector.broadcast %354 : vector<64x1xf32> to vector<64x256xf32>
    %397 = arith.addf %395, %396 : vector<64x256xf32>
    %398 = arith.addf %397, %278 : vector<64x256xf32>
    %c5_140 = arith.constant 5 : index
    %399 = memref.load %arg5[%c5_140] : memref<8xf32, #tpu.memory_space<smem>>
    %400 = vector.extract_strided_slice %398 {offsets = [0, 0], sizes = [32, 256], strides = [1, 1]} : vector<64x256xf32> to vector<32x256xf32>
    %401 = vector.extract_strided_slice %398 {offsets = [32, 0], sizes = [32, 256], strides = [1, 1]} : vector<64x256xf32> to vector<32x256xf32>
    %402 = arith.mulf %400, %400 : vector<32x256xf32>
    %403 = arith.mulf %401, %401 : vector<32x256xf32>
    %404 = arith.addf %402, %403 : vector<32x256xf32>
    %cst_141 = arith.constant 0.000000e+00 : f32
    %405 = vector.broadcast %cst_141 : f32 to vector<32x256xf32>
    %406 = arith.cmpf ogt, %404, %405 : vector<32x256xf32>
    %407 = math.rsqrt %404 : vector<32x256xf32>
    %cst_142 = arith.constant 0.000000e+00 : f32
    %408 = vector.broadcast %cst_142 : f32 to vector<32x256xf32>
    %409 = arith.select %406, %407, %408 : vector<32x256xi1>, vector<32x256xf32>
    %410 = vector.broadcast %399 : f32 to vector<32x256xf32>
    %411 = arith.mulf %410, %409 : vector<32x256xf32>
    %cst_143 = arith.constant 1.000000e+00 : f32
    %412 = vector.broadcast %cst_143 : f32 to vector<32x256xf32>
    %413 = arith.subf %412, %411 : vector<32x256xf32>
    %cst_144 = arith.constant 0.000000e+00 : f32
    %414 = vector.broadcast %cst_144 : f32 to vector<32x256xf32>
    %415 = arith.maximumf %413, %414 : vector<32x256xf32>
    %416 = tpu.concatenate %415, %415 in 0 : vector<32x256xf32>, vector<32x256xf32> -> vector<64x256xf32>
    %417 = arith.mulf %398, %416 : vector<64x256xf32>
    %c6 = arith.constant 6 : index
    %c0_145 = arith.constant 0 : index
    %c0_146 = arith.constant 0 : index
    %418 = vector.load %arg2[%c6, %c0_145, %c0_146] : memref<8x64x64xf32, #tpu.memory_space<vmem>>, vector<1x64x64xf32>
    %419 = vector.shape_cast %418 : vector<1x64x64xf32> to vector<64x64xf32>
    %cst_147 = arith.constant dense<0.000000e+00> : vector<64x256xf32>
    %420 = tpu.matmul %419, %417, %cst_147 {dimension_numbers = #tpu.dot_dimension_numbers<[1], [0], [0], [1], [0, 0, 1, 1], [], []>} : vector<64x64xf32>, vector<64x256xf32>, vector<64x256xf32> -> vector<64x256xf32>
    %c6_148 = arith.constant 6 : index
    %c0_149 = arith.constant 0 : index
    %c0_150 = arith.constant 0 : index
    %421 = vector.load %arg3[%c6_148, %c0_149, %c0_150] : memref<8x64x1xf32, #tpu.memory_space<vmem>>, vector<1x64x1xf32>
    %422 = vector.shape_cast %421 : vector<1x64x1xf32> to vector<64x1xf32>
    %c6_151 = arith.constant 6 : index
    %c0_152 = arith.constant 0 : index
    %c0_153 = arith.constant 0 : index
    %423 = vector.load %arg4[%c6_151, %c0_152, %c0_153] : memref<8x64x1xf32, #tpu.memory_space<vmem>>, vector<1x64x1xf32>
    %424 = vector.shape_cast %423 : vector<1x64x1xf32> to vector<64x1xf32>
    %425 = vector.extract_strided_slice %420 {offsets = [0, 0], sizes = [32, 256], strides = [1, 1]} : vector<64x256xf32> to vector<32x256xf32>
    %cst_154 = arith.constant dense<0.000000e+00> : vector<256xf32>
    %426 = vector.multi_reduction <add>, %425, %cst_154 [0] : vector<32x256xf32> to vector<256xf32>
    %427 = vector.shape_cast %426 : vector<256xf32> to vector<1x256xf32>
    %428 = arith.mulf %425, %425 : vector<32x256xf32>
    %cst_155 = arith.constant dense<0.000000e+00> : vector<256xf32>
    %429 = vector.multi_reduction <add>, %428, %cst_155 [0] : vector<32x256xf32> to vector<256xf32>
    %430 = vector.shape_cast %429 : vector<256xf32> to vector<1x256xf32>
    %cst_156 = arith.constant 3.125000e-02 : f32
    %431 = vector.broadcast %cst_156 : f32 to vector<1x256xf32>
    %432 = arith.mulf %427, %431 : vector<1x256xf32>
    %cst_157 = arith.constant 3.125000e-02 : f32
    %433 = vector.broadcast %cst_157 : f32 to vector<1x256xf32>
    %434 = arith.mulf %430, %433 : vector<1x256xf32>
    %435 = arith.mulf %432, %432 : vector<1x256xf32>
    %436 = arith.subf %434, %435 : vector<1x256xf32>
    %437 = vector.broadcast %432 : vector<1x256xf32> to vector<32x256xf32>
    %438 = arith.subf %425, %437 : vector<32x256xf32>
    %cst_158 = arith.constant 9.99999974E-6 : f32
    %439 = vector.broadcast %cst_158 : f32 to vector<1x256xf32>
    %440 = arith.addf %436, %439 : vector<1x256xf32>
    %441 = math.rsqrt %440 : vector<1x256xf32>
    %442 = vector.broadcast %441 : vector<1x256xf32> to vector<32x256xf32>
    %443 = arith.mulf %438, %442 : vector<32x256xf32>
    %444 = vector.extract_strided_slice %420 {offsets = [32, 0], sizes = [32, 256], strides = [1, 1]} : vector<64x256xf32> to vector<32x256xf32>
    %cst_159 = arith.constant dense<0.000000e+00> : vector<256xf32>
    %445 = vector.multi_reduction <add>, %444, %cst_159 [0] : vector<32x256xf32> to vector<256xf32>
    %446 = vector.shape_cast %445 : vector<256xf32> to vector<1x256xf32>
    %447 = arith.mulf %444, %444 : vector<32x256xf32>
    %cst_160 = arith.constant dense<0.000000e+00> : vector<256xf32>
    %448 = vector.multi_reduction <add>, %447, %cst_160 [0] : vector<32x256xf32> to vector<256xf32>
    %449 = vector.shape_cast %448 : vector<256xf32> to vector<1x256xf32>
    %cst_161 = arith.constant 3.125000e-02 : f32
    %450 = vector.broadcast %cst_161 : f32 to vector<1x256xf32>
    %451 = arith.mulf %446, %450 : vector<1x256xf32>
    %cst_162 = arith.constant 3.125000e-02 : f32
    %452 = vector.broadcast %cst_162 : f32 to vector<1x256xf32>
    %453 = arith.mulf %449, %452 : vector<1x256xf32>
    %454 = arith.mulf %451, %451 : vector<1x256xf32>
    %455 = arith.subf %453, %454 : vector<1x256xf32>
    %456 = vector.broadcast %451 : vector<1x256xf32> to vector<32x256xf32>
    %457 = arith.subf %444, %456 : vector<32x256xf32>
    %cst_163 = arith.constant 9.99999974E-6 : f32
    %458 = vector.broadcast %cst_163 : f32 to vector<1x256xf32>
    %459 = arith.addf %455, %458 : vector<1x256xf32>
    %460 = math.rsqrt %459 : vector<1x256xf32>
    %461 = vector.broadcast %460 : vector<1x256xf32> to vector<32x256xf32>
    %462 = arith.mulf %457, %461 : vector<32x256xf32>
    %463 = tpu.concatenate %443, %462 in 0 : vector<32x256xf32>, vector<32x256xf32> -> vector<64x256xf32>
    %464 = vector.broadcast %422 : vector<64x1xf32> to vector<64x256xf32>
    %465 = arith.mulf %463, %464 : vector<64x256xf32>
    %466 = vector.broadcast %424 : vector<64x1xf32> to vector<64x256xf32>
    %467 = arith.addf %465, %466 : vector<64x256xf32>
    %c6_164 = arith.constant 6 : index
    %468 = memref.load %arg5[%c6_164] : memref<8xf32, #tpu.memory_space<smem>>
    %469 = vector.extract_strided_slice %467 {offsets = [0, 0], sizes = [32, 256], strides = [1, 1]} : vector<64x256xf32> to vector<32x256xf32>
    %470 = vector.extract_strided_slice %467 {offsets = [32, 0], sizes = [32, 256], strides = [1, 1]} : vector<64x256xf32> to vector<32x256xf32>
    %471 = arith.mulf %469, %469 : vector<32x256xf32>
    %472 = arith.mulf %470, %470 : vector<32x256xf32>
    %473 = arith.addf %471, %472 : vector<32x256xf32>
    %cst_165 = arith.constant 0.000000e+00 : f32
    %474 = vector.broadcast %cst_165 : f32 to vector<32x256xf32>
    %475 = arith.cmpf ogt, %473, %474 : vector<32x256xf32>
    %476 = math.rsqrt %473 : vector<32x256xf32>
    %cst_166 = arith.constant 0.000000e+00 : f32
    %477 = vector.broadcast %cst_166 : f32 to vector<32x256xf32>
    %478 = arith.select %475, %476, %477 : vector<32x256xi1>, vector<32x256xf32>
    %479 = vector.broadcast %468 : f32 to vector<32x256xf32>
    %480 = arith.mulf %479, %478 : vector<32x256xf32>
    %cst_167 = arith.constant 1.000000e+00 : f32
    %481 = vector.broadcast %cst_167 : f32 to vector<32x256xf32>
    %482 = arith.subf %481, %480 : vector<32x256xf32>
    %cst_168 = arith.constant 0.000000e+00 : f32
    %483 = vector.broadcast %cst_168 : f32 to vector<32x256xf32>
    %484 = arith.maximumf %482, %483 : vector<32x256xf32>
    %485 = tpu.concatenate %484, %484 in 0 : vector<32x256xf32>, vector<32x256xf32> -> vector<64x256xf32>
    %486 = arith.mulf %467, %485 : vector<64x256xf32>
    %c7 = arith.constant 7 : index
    %c0_169 = arith.constant 0 : index
    %c0_170 = arith.constant 0 : index
    %487 = vector.load %arg2[%c7, %c0_169, %c0_170] : memref<8x64x64xf32, #tpu.memory_space<vmem>>, vector<1x64x64xf32>
    %488 = vector.shape_cast %487 : vector<1x64x64xf32> to vector<64x64xf32>
    %cst_171 = arith.constant dense<0.000000e+00> : vector<64x256xf32>
    %489 = tpu.matmul %488, %486, %cst_171 {dimension_numbers = #tpu.dot_dimension_numbers<[1], [0], [0], [1], [0, 0, 1, 1], [], []>} : vector<64x64xf32>, vector<64x256xf32>, vector<64x256xf32> -> vector<64x256xf32>
    %c7_172 = arith.constant 7 : index
    %c0_173 = arith.constant 0 : index
    %c0_174 = arith.constant 0 : index
    %490 = vector.load %arg3[%c7_172, %c0_173, %c0_174] : memref<8x64x1xf32, #tpu.memory_space<vmem>>, vector<1x64x1xf32>
    %491 = vector.shape_cast %490 : vector<1x64x1xf32> to vector<64x1xf32>
    %c7_175 = arith.constant 7 : index
    %c0_176 = arith.constant 0 : index
    %c0_177 = arith.constant 0 : index
    %492 = vector.load %arg4[%c7_175, %c0_176, %c0_177] : memref<8x64x1xf32, #tpu.memory_space<vmem>>, vector<1x64x1xf32>
    %493 = vector.shape_cast %492 : vector<1x64x1xf32> to vector<64x1xf32>
    %494 = vector.extract_strided_slice %489 {offsets = [0, 0], sizes = [32, 256], strides = [1, 1]} : vector<64x256xf32> to vector<32x256xf32>
    %cst_178 = arith.constant dense<0.000000e+00> : vector<256xf32>
    %495 = vector.multi_reduction <add>, %494, %cst_178 [0] : vector<32x256xf32> to vector<256xf32>
    %496 = vector.shape_cast %495 : vector<256xf32> to vector<1x256xf32>
    %497 = arith.mulf %494, %494 : vector<32x256xf32>
    %cst_179 = arith.constant dense<0.000000e+00> : vector<256xf32>
    %498 = vector.multi_reduction <add>, %497, %cst_179 [0] : vector<32x256xf32> to vector<256xf32>
    %499 = vector.shape_cast %498 : vector<256xf32> to vector<1x256xf32>
    %cst_180 = arith.constant 3.125000e-02 : f32
    %500 = vector.broadcast %cst_180 : f32 to vector<1x256xf32>
    %501 = arith.mulf %496, %500 : vector<1x256xf32>
    %cst_181 = arith.constant 3.125000e-02 : f32
    %502 = vector.broadcast %cst_181 : f32 to vector<1x256xf32>
    %503 = arith.mulf %499, %502 : vector<1x256xf32>
    %504 = arith.mulf %501, %501 : vector<1x256xf32>
    %505 = arith.subf %503, %504 : vector<1x256xf32>
    %506 = vector.broadcast %501 : vector<1x256xf32> to vector<32x256xf32>
    %507 = arith.subf %494, %506 : vector<32x256xf32>
    %cst_182 = arith.constant 9.99999974E-6 : f32
    %508 = vector.broadcast %cst_182 : f32 to vector<1x256xf32>
    %509 = arith.addf %505, %508 : vector<1x256xf32>
    %510 = math.rsqrt %509 : vector<1x256xf32>
    %511 = vector.broadcast %510 : vector<1x256xf32> to vector<32x256xf32>
    %512 = arith.mulf %507, %511 : vector<32x256xf32>
    %513 = vector.extract_strided_slice %489 {offsets = [32, 0], sizes = [32, 256], strides = [1, 1]} : vector<64x256xf32> to vector<32x256xf32>
    %cst_183 = arith.constant dense<0.000000e+00> : vector<256xf32>
    %514 = vector.multi_reduction <add>, %513, %cst_183 [0] : vector<32x256xf32> to vector<256xf32>
    %515 = vector.shape_cast %514 : vector<256xf32> to vector<1x256xf32>
    %516 = arith.mulf %513, %513 : vector<32x256xf32>
    %cst_184 = arith.constant dense<0.000000e+00> : vector<256xf32>
    %517 = vector.multi_reduction <add>, %516, %cst_184 [0] : vector<32x256xf32> to vector<256xf32>
    %518 = vector.shape_cast %517 : vector<256xf32> to vector<1x256xf32>
    %cst_185 = arith.constant 3.125000e-02 : f32
    %519 = vector.broadcast %cst_185 : f32 to vector<1x256xf32>
    %520 = arith.mulf %515, %519 : vector<1x256xf32>
    %cst_186 = arith.constant 3.125000e-02 : f32
    %521 = vector.broadcast %cst_186 : f32 to vector<1x256xf32>
    %522 = arith.mulf %518, %521 : vector<1x256xf32>
    %523 = arith.mulf %520, %520 : vector<1x256xf32>
    %524 = arith.subf %522, %523 : vector<1x256xf32>
    %525 = vector.broadcast %520 : vector<1x256xf32> to vector<32x256xf32>
    %526 = arith.subf %513, %525 : vector<32x256xf32>
    %cst_187 = arith.constant 9.99999974E-6 : f32
    %527 = vector.broadcast %cst_187 : f32 to vector<1x256xf32>
    %528 = arith.addf %524, %527 : vector<1x256xf32>
    %529 = math.rsqrt %528 : vector<1x256xf32>
    %530 = vector.broadcast %529 : vector<1x256xf32> to vector<32x256xf32>
    %531 = arith.mulf %526, %530 : vector<32x256xf32>
    %532 = tpu.concatenate %512, %531 in 0 : vector<32x256xf32>, vector<32x256xf32> -> vector<64x256xf32>
    %533 = vector.broadcast %491 : vector<64x1xf32> to vector<64x256xf32>
    %534 = arith.mulf %532, %533 : vector<64x256xf32>
    %535 = vector.broadcast %493 : vector<64x1xf32> to vector<64x256xf32>
    %536 = arith.addf %534, %535 : vector<64x256xf32>
    %537 = arith.addf %536, %417 : vector<64x256xf32>
    %c7_188 = arith.constant 7 : index
    %538 = memref.load %arg5[%c7_188] : memref<8xf32, #tpu.memory_space<smem>>
    %539 = vector.extract_strided_slice %537 {offsets = [0, 0], sizes = [32, 256], strides = [1, 1]} : vector<64x256xf32> to vector<32x256xf32>
    %540 = vector.extract_strided_slice %537 {offsets = [32, 0], sizes = [32, 256], strides = [1, 1]} : vector<64x256xf32> to vector<32x256xf32>
    %541 = arith.mulf %539, %539 : vector<32x256xf32>
    %542 = arith.mulf %540, %540 : vector<32x256xf32>
    %543 = arith.addf %541, %542 : vector<32x256xf32>
    %cst_189 = arith.constant 0.000000e+00 : f32
    %544 = vector.broadcast %cst_189 : f32 to vector<32x256xf32>
    %545 = arith.cmpf ogt, %543, %544 : vector<32x256xf32>
    %546 = math.rsqrt %543 : vector<32x256xf32>
    %cst_190 = arith.constant 0.000000e+00 : f32
    %547 = vector.broadcast %cst_190 : f32 to vector<32x256xf32>
    %548 = arith.select %545, %546, %547 : vector<32x256xi1>, vector<32x256xf32>
    %549 = vector.broadcast %538 : f32 to vector<32x256xf32>
    %550 = arith.mulf %549, %548 : vector<32x256xf32>
    %cst_191 = arith.constant 1.000000e+00 : f32
    %551 = vector.broadcast %cst_191 : f32 to vector<32x256xf32>
    %552 = arith.subf %551, %550 : vector<32x256xf32>
    %cst_192 = arith.constant 0.000000e+00 : f32
    %553 = vector.broadcast %cst_192 : f32 to vector<32x256xf32>
    %554 = arith.maximumf %552, %553 : vector<32x256xf32>
    %555 = tpu.concatenate %554, %554 in 0 : vector<32x256xf32>, vector<32x256xf32> -> vector<64x256xf32>
    %556 = arith.mulf %537, %555 : vector<64x256xf32>
    %c0_193 = arith.constant 0 : index
    %c0_194 = arith.constant 0 : index
    %557 = vector.load %arg6[%c0_193, %c0_194] : memref<64x256xf32, #tpu.memory_space<vmem>>, vector<64x256xf32>
    tpu.vector_store %arg6[%c0_193, %c0_194], %556 {strides = array<i32>} : memref<64x256xf32, #tpu.memory_space<vmem>>, vector<64x256xf32>,
    return
  }
  func.func @transform_0(%arg0: i32) -> (i32, i32) {
    %c0_i32 = arith.constant 0 : i32
    %c0_i32_0 = arith.constant 0 : i32
    return %c0_i32, %arg0 : i32, i32
  }
  func.func @transform_1(%arg0: i32) -> (i32, i32, i32) {
    %c0_i32 = arith.constant 0 : i32
    %c0_i32_0 = arith.constant 0 : i32
    %c0_i32_1 = arith.constant 0 : i32
    %c0_i32_2 = arith.constant 0 : i32
    return %c0_i32, %c0_i32_0, %c0_i32_1 : i32, i32, i32
  }
  func.func @transform_2(%arg0: i32) -> (i32, i32, i32) {
    %c0_i32 = arith.constant 0 : i32
    %c0_i32_0 = arith.constant 0 : i32
    %c0_i32_1 = arith.constant 0 : i32
    %c0_i32_2 = arith.constant 0 : i32
    return %c0_i32, %c0_i32_0, %c0_i32_1 : i32, i32, i32
  }
  func.func @transform_3(%arg0: i32) -> (i32, i32, i32) {
    %c0_i32 = arith.constant 0 : i32
    %c0_i32_0 = arith.constant 0 : i32
    %c0_i32_1 = arith.constant 0 : i32
    %c0_i32_2 = arith.constant 0 : i32
    return %c0_i32, %c0_i32_0, %c0_i32_1 : i32, i32, i32
  }
  func.func @transform_4(%arg0: i32) -> i32 {
    %c0_i32 = arith.constant 0 : i32
    %c0_i32_0 = arith.constant 0 : i32
    return %c0_i32 : i32
  }
  func.func @transform_5(%arg0: i32) -> (i32, i32) {
    %c0_i32 = arith.constant 0 : i32
    %c0_i32_0 = arith.constant 0 : i32
    return %c0_i32, %arg0 : i32, i32
  }
}

</mosaic_0001>

<llo_original>
// kernel: neg.1
$region0: #{neg.1}
  #allocation0 [shape = 's32[1]{0}', space=sflag, size = 0x4, scoped, tag = 'scoped memory for neg.1']
  %s0 = inlined_call_operand.vmem [shape: f32[8,32,32], index: 0, kind: input, shape index: {}]
  %s1 = inlined_call_operand.vmem [shape: f32[8,32,32], index: 1, kind: output, shape index: {}]
  %v2 = vld [vmem:[%s0] sm:$0xff]
  %3 = xla_tuple %v2
  %4 = xla_tuple %3
  %v5 = vxor.u32 %v2, 2147483648
  %6 = xla_tuple %v5
  %7 = vst [vmem:[%s1] sm:$0xff] %v5
  %s8 = scalar_lea.vmem %s0, 32
  %v9 = vld [vmem:[%s8] sm:$0xff]
  %10 = xla_tuple %v9
  %11 = xla_tuple %10
  %v12 = vxor.u32 %v9, 2147483648
  %13 = xla_tuple %v12
  %s14 = scalar_lea.vmem %s1, 32
  %15 = vst [vmem:[%s14] sm:$0xff] %v12
  %s16 = scalar_lea.vmem %s0, 64
  %v17 = vld [vmem:[%s16] sm:$0xff]
  %18 = xla_tuple %v17
  %19 = xla_tuple %18
  %v20 = vxor.u32 %v17, 2147483648
  %21 = xla_tuple %v20
  %s22 = scalar_lea.vmem %s1, 64
  %23 = vst [vmem:[%s22] sm:$0xff] %v20
  %s24 = scalar_lea.vmem %s0, 96
  %v25 = vld [vmem:[%s24] sm:$0xff]
  %26 = xla_tuple %v25
  %27 = xla_tuple %26
  %v28 = vxor.u32 %v25, 2147483648
  %29 = xla_tuple %v28
  %s30 = scalar_lea.vmem %s1, 96
  %31 = vst [vmem:[%s30] sm:$0xff] %v28
  %s32 = scalar_lea.vmem %s0, 128
  %v33 = vld [vmem:[%s32] sm:$0xff]
  %34 = xla_tuple %v33
  %35 = xla_tuple %34
  %v36 = vxor.u32 %v33, 2147483648
  %37 = xla_tuple %v36
  %s38 = scalar_lea.vmem %s1, 128
  %39 = vst [vmem:[%s38] sm:$0xff] %v36
  %s40 = scalar_lea.vmem %s0, 160
  %v41 = vld [vmem:[%s40] sm:$0xff]
  %42 = xla_tuple %v41
  %43 = xla_tuple %42
  %v44 = vxor.u32 %v41, 2147483648
  %45 = xla_tuple %v44
  %s46 = scalar_lea.vmem %s1, 160
  %47 = vst [vmem:[%s46] sm:$0xff] %v44
  %s48 = scalar_lea.vmem %s0, 192
  %v49 = vld [vmem:[%s48] sm:$0xff]
  %50 = xla_tuple %v49
  %51 = xla_tuple %50
  %v52 = vxor.u32 %v49, 2147483648
  %53 = xla_tuple %v52
  %s54 = scalar_lea.vmem %s1, 192
  %55 = vst [vmem:[%s54] sm:$0xff] %v52
  %s56 = scalar_lea.vmem %s0, 224
  %v57 = vld [vmem:[%s56] sm:$0xff]
  %58 = xla_tuple %v57
  %59 = xla_tuple %58
  %v60 = vxor.u32 %v57, 2147483648
  %61 = xla_tuple %v60
  %s62 = scalar_lea.vmem %s1, 224
  %63 = vst [vmem:[%s62] sm:$0xff] %v60
  %s64 = scalar_lea.vmem %s0, 8
  %v65 = vld [vmem:[%s64] sm:$0xff]
  %66 = xla_tuple %v65
  %67 = xla_tuple %66
  %v68 = vxor.u32 %v65, 2147483648
  %69 = xla_tuple %v68
  %s70 = scalar_lea.vmem %s1, 8
  %71 = vst [vmem:[%s70] sm:$0xff] %v68
  %s72 = scalar_lea.vmem %s0, 40
  %v73 = vld [vmem:[%s72] sm:$0xff]
  %74 = xla_tuple %v73
  %75 = xla_tuple %74
  %v76 = vxor.u32 %v73, 2147483648
  %77 = xla_tuple %v76
  %s78 = scalar_lea.vmem %s1, 40
  %79 = vst [vmem:[%s78] sm:$0xff] %v76
  %s80 = scalar_lea.vmem %s0, 72
  %v81 = vld [vmem:[%s80] sm:$0xff]
  %82 = xla_tuple %v81
  %83 = xla_tuple %82
  %v84 = vxor.u32 %v81, 2147483648
  %85 = xla_tuple %v84
  %s86 = scalar_lea.vmem %s1, 72
  %87 = vst [vmem:[%s86] sm:$0xff] %v84
  %s88 = scalar_lea.vmem %s0, 104
  %v89 = vld [vmem:[%s88] sm:$0xff]
  %90 = xla_tuple %v89
  %91 = xla_tuple %90
  %v92 = vxor.u32 %v89, 2147483648
  %93 = xla_tuple %v92
  %s94 = scalar_lea.vmem %s1, 104
  %95 = vst [vmem:[%s94] sm:$0xff] %v92
  %s96 = scalar_lea.vmem %s0, 136
  %v97 = vld [vmem:[%s96] sm:$0xff]
  %98 = xla_tuple %v97
  %99 = xla_tuple %98
  %v100 = vxor.u32 %v97, 2147483648
  %101 = xla_tuple %v100
  %s102 = scalar_lea.vmem %s1, 136
  %103 = vst [vmem:[%s102] sm:$0xff] %v100
  %s104 = scalar_lea.vmem %s0, 168
  %v105 = vld [vmem:[%s104] sm:$0xff]
  %106 = xla_tuple %v105
  %107 = xla_tuple %106
  %v108 = vxor.u32 %v105, 2147483648
  %109 = xla_tuple %v108
  %s110 = scalar_lea.vmem %s1, 168
  %111 = vst [vmem:[%s110] sm:$0xff] %v108
  %s112 = scalar_lea.vmem %s0, 200
  %v113 = vld [vmem:[%s112] sm:$0xff]
  %114 = xla_tuple %v113
  %115 = xla_tuple %114
  %v116 = vxor.u32 %v113, 2147483648
  %117 = xla_tuple %v116
  %s118 = scalar_lea.vmem %s1, 200
  %119 = vst [vmem:[%s118] sm:$0xff] %v116
  %s120 = scalar_lea.vmem %s0, 232
  %v121 = vld [vmem:[%s120] sm:$0xff]
  %122 = xla_tuple %v121
  %123 = xla_tuple %122
  %v124 = vxor.u32 %v121, 2147483648
  %125 = xla_tuple %v124
  %s126 = scalar_lea.vmem %s1, 232
  %127 = vst [vmem:[%s126] sm:$0xff] %v124
  %s128 = scalar_lea.vmem %s0, 16
  %v129 = vld [vmem:[%s128] sm:$0xff]
  %130 = xla_tuple %v129
  %131 = xla_tuple %130
  %v132 = vxor.u32 %v129, 2147483648
  %133 = xla_tuple %v132
  %s134 = scalar_lea.vmem %s1, 16
  %135 = vst [vmem:[%s134] sm:$0xff] %v132
  %s136 = scalar_lea.vmem %s0, 48
  %v137 = vld [vmem:[%s136] sm:$0xff]
  %138 = xla_tuple %v137
  %139 = xla_tuple %138
  %v140 = vxor.u32 %v137, 2147483648
  %141 = xla_tuple %v140
  %s142 = scalar_lea.vmem %s1, 48
  %143 = vst [vmem:[%s142] sm:$0xff] %v140
  %s144 = scalar_lea.vmem %s0, 80
  %v145 = vld [vmem:[%s144] sm:$0xff]
  %146 = xla_tuple %v145
  %147 = xla_tuple %146
  %v148 = vxor.u32 %v145, 2147483648
  %149 = xla_tuple %v148
  %s150 = scalar_lea.vmem %s1, 80
  %151 = vst [vmem:[%s150] sm:$0xff] %v148
  %s152 = scalar_lea.vmem %s0, 112
  %v153 = vld [vmem:[%s152] sm:$0xff]
  %154 = xla_tuple %v153
  %155 = xla_tuple %154
  %v156 = vxor.u32 %v153, 2147483648
  %157 = xla_tuple %v156
  %s158 = scalar_lea.vmem %s1, 112
  %159 = vst [vmem:[%s158] sm:$0xff] %v156
  %s160 = scalar_lea.vmem %s0, 144
  %v161 = vld [vmem:[%s160] sm:$0xff]
  %162 = xla_tuple %v161
  %163 = xla_tuple %162
  %v164 = vxor.u32 %v161, 2147483648
  %165 = xla_tuple %v164
  %s166 = scalar_lea.vmem %s1, 144
  %167 = vst [vmem:[%s166] sm:$0xff] %v164
  %s168 = scalar_lea.vmem %s0, 176
  %v169 = vld [vmem:[%s168] sm:$0xff]
  %170 = xla_tuple %v169
  %171 = xla_tuple %170
  %v172 = vxor.u32 %v169, 2147483648
  %173 = xla_tuple %v172
  %s174 = scalar_lea.vmem %s1, 176
  %175 = vst [vmem:[%s174] sm:$0xff] %v172
  %s176 = scalar_lea.vmem %s0, 208
  %v177 = vld [vmem:[%s176] sm:$0xff]
  %178 = xla_tuple %v177
  %179 = xla_tuple %178
  %v180 = vxor.u32 %v177, 2147483648
  %181 = xla_tuple %v180
  %s182 = scalar_lea.vmem %s1, 208
  %183 = vst [vmem:[%s182] sm:$0xff] %v180
  %s184 = scalar_lea.vmem %s0, 240
  %v185 = vld [vmem:[%s184] sm:$0xff]
  %186 = xla_tuple %v185
  %187 = xla_tuple %186
  %v188 = vxor.u32 %v185, 2147483648
  %189 = xla_tuple %v188
  %s190 = scalar_lea.vmem %s1, 240
  %191 = vst [vmem:[%s190] sm:$0xff] %v188
  %s192 = scalar_lea.vmem %s0, 24
  %v193 = vld [vmem:[%s192] sm:$0xff]
  %194 = xla_tuple %v193
  %195 = xla_tuple %194
  %v196 = vxor.u32 %v193, 2147483648
  %197 = xla_tuple %v196
  %s198 = scalar_lea.vmem %s1, 24
  %199 = vst [vmem:[%s198] sm:$0xff] %v196
  %s200 = scalar_lea.vmem %s0, 56
  %v201 = vld [vmem:[%s200] sm:$0xff]
  %202 = xla_tuple %v201
  %203 = xla_tuple %202
  %v204 = vxor.u32 %v201, 2147483648
  %205 = xla_tuple %v204
  %s206 = scalar_lea.vmem %s1, 56
  %207 = vst [vmem:[%s206] sm:$0xff] %v204
  %s208 = scalar_lea.vmem %s0, 88
  %v209 = vld [vmem:[%s208] sm:$0xff]
  %210 = xla_tuple %v209
  %211 = xla_tuple %210
  %v212 = vxor.u32 %v209, 2147483648
  %213 = xla_tuple %v212
  %s214 = scalar_lea.vmem %s1, 88
  %215 = vst [vmem:[%s214] sm:$0xff] %v212
  %s216 = scalar_lea.vmem %s0, 120
  %v217 = vld [vmem:[%s216] sm:$0xff]
  %218 = xla_tuple %v217
  %219 = xla_tuple %218
  %v220 = vxor.u32 %v217, 2147483648
  %221 = xla_tuple %v220
  %s222 = scalar_lea.vmem %s1, 120
  %223 = vst [vmem:[%s222] sm:$0xff] %v220
  %s224 = scalar_lea.vmem %s0, 152
  %v225 = vld [vmem:[%s224] sm:$0xff]
  %226 = xla_tuple %v225
  %227 = xla_tuple %226
  %v228 = vxor.u32 %v225, 2147483648
  %229 = xla_tuple %v228
  %s230 = scalar_lea.vmem %s1, 152
  %231 = vst [vmem:[%s230] sm:$0xff] %v228
  %s232 = scalar_lea.vmem %s0, 184
  %v233 = vld [vmem:[%s232] sm:$0xff]
  %234 = xla_tuple %v233
  %235 = xla_tuple %234
  %v236 = vxor.u32 %v233, 2147483648
  %237 = xla_tuple %v236
  %s238 = scalar_lea.vmem %s1, 184
  %239 = vst [vmem:[%s238] sm:$0xff] %v236
  %s240 = scalar_lea.vmem %s0, 216
  %v241 = vld [vmem:[%s240] sm:$0xff]
  %242 = xla_tuple %v241
  %243 = xla_tuple %242
  %v244 = vxor.u32 %v241, 2147483648
  %245 = xla_tuple %v244
  %s246 = scalar_lea.vmem %s1, 216
  %247 = vst [vmem:[%s246] sm:$0xff] %v244
  %s248 = scalar_lea.vmem %s0, 248
  %v249 = vld [vmem:[%s248] sm:$0xff]
  %250 = xla_tuple %v249
  %251 = xla_tuple %250
  %v252 = vxor.u32 %v249, 2147483648
  %253 = xla_tuple %v252
  %s254 = scalar_lea.vmem %s1, 248
  %255 = vst [vmem:[%s254] sm:$0xff] %v252

// kernel: encoder1_pallas.1
$region0: #{encoder1_pallas.1}
  #allocation0 [shape = 'u32[]', space=smem, size = 0x4, offset = 0x4, fixed_abs, tag = 'smem constant byte address 0x4 - core index']
  #allocation1 [shape = 'u32[144,128]{1,0:T(1,128)}', space=vmem, size = 0x12000, scoped, tag = 'internal scratch']
  %s0 = inlined_call_operand.vmem [shape: f32[64,256], index: 0, kind: input, shape index: {}]
  %s1 = inlined_call_operand.vmem [shape: f32[8,64,64], index: 1, kind: input, shape index: {}]
  %s2 = inlined_call_operand.vmem [shape: f32[8,64,1], index: 2, kind: input, shape index: {}]
  %s3 = inlined_call_operand.vmem [shape: f32[8,64,1], index: 3, kind: input, shape index: {}]
  %s4 = inlined_call_operand.vmem [shape: f32[8], index: 4, kind: input, shape index: {}]
  %s5 = inlined_call_operand.vmem [shape: f32[64,256], index: 5, kind: output, shape index: {}]
  %s6 = sld [smem:[#allocation0]]
  $region34: #{encoder1_pallas.1} parent=0
    _
  %s8 = ssub.s32 1, %s6
  %s9 = scalar_select 0, %s8, %s6
  $region1: #{encoder1_pallas.1} parent=0
    #allocation2 [shape = 'u8[512]{0}', space=smem, size = 0x200, scoped, tag = 'input window, operand 4, single buffered']
    #allocation3 [shape = 's32[1]{0}', space=sflag, size = 0x4, scoped, tag = 'scoped memory for encoder1_pallas.1']
    %10 = vsyncpa [#allocation3], 0
    // Predicated region
    $region2: #{encoder1_pallas.1} parent=1 // pred_check
      _
    $region3: #{encoder1_pallas.1} parent=1 // pred_check_branch
      %12 = sbr.rel (0) target = $region5
    $region4: #{encoder1_pallas.1} parent=1 // pred_region
      _
    $region5: #{encoder1_pallas.1} parent=1 // pred_fallthru
      _
    // Predicated region
    $region6: #{encoder1_pallas.1} parent=1 // pred_check
      _
    $region7: #{encoder1_pallas.1} parent=1 // pred_check_branch
      %14 = sbr.rel (0) target = $region9
    $region8: #{encoder1_pallas.1} parent=1 // pred_region
      _
    $region9: #{encoder1_pallas.1} parent=1 // pred_fallthru
      _
    // Predicated region
    $region10: #{encoder1_pallas.1} parent=1 // pred_check
      _
    $region11: #{encoder1_pallas.1} parent=1 // pred_check_branch
      %16 = sbr.rel (0) target = $region13
    $region12: #{encoder1_pallas.1} parent=1 // pred_region
      _
    $region13: #{encoder1_pallas.1} parent=1 // pred_fallthru
      _
    // Predicated region
    $region14: #{encoder1_pallas.1} parent=1 // pred_check
      _
    $region15: #{encoder1_pallas.1} parent=1 // pred_check_branch
      %18 = sbr.rel (0) target = $region17
    $region16: #{encoder1_pallas.1} parent=1 // pred_region
      _
    $region17: #{encoder1_pallas.1} parent=1 // pred_fallthru
      _
    // Predicated region
    $region18: #{encoder1_pallas.1} parent=1 // pred_check
      _
    $region19: #{encoder1_pallas.1} parent=1 // pred_check_branch
      %20 = sbr.rel (0) target = $region21
    $region20: #{encoder1_pallas.1} parent=1 // pred_region
      %s22 = ssub.s32 16, 16
      %23 = vsyncadd [#allocation3], %s22
      %s25 = sshll.u32 %s4, 4
      %s26 = int_to_ptr.vmem [resolvable:$true] %s25
      %28 = dma.vmem_to_smem %s26, 16, [#allocation2], [#allocation3]
    $region21: #{encoder1_pallas.1} parent=1 // pred_fallthru
      _
    // Predicated region
    $region22: #{encoder1_pallas.1} parent=1 // pred_check
      _
    $region23: #{encoder1_pallas.1} parent=1 // pred_check_branch
      %30 = sbr.rel (0) target = $region25
    $region24: #{encoder1_pallas.1} parent=1 // pred_region
      %31 = dma.done [#allocation3], 16
    $region25: #{encoder1_pallas.1} parent=1 // pred_fallthru
      _
    %32 = sfence
    %v33 = vld [vmem:[%s0] sm:$0xff]
    %v34 = vld [vmem:[%s0 + $0x8] sm:$0xff]
    %v35 = vld [vmem:[%s0 + $0x10] sm:$0xff]
    %v36 = vld [vmem:[%s0 + $0x18] sm:$0xff]
    %v37 = vld [vmem:[%s0 + $0x20] sm:$0xff]
    %v38 = vld [vmem:[%s0 + $0x28] sm:$0xff]
    %v39 = vld [vmem:[%s0 + $0x30] sm:$0xff]
    %v40 = vld [vmem:[%s0 + $0x38] sm:$0xff]
    %v41 = vld [vmem:[%s0 + $0x40] sm:$0xff]
    %v42 = vld [vmem:[%s0 + $0x48] sm:$0xff]
    %v43 = vld [vmem:[%s0 + $0x50] sm:$0xff]
    %v44 = vld [vmem:[%s0 + $0x58] sm:$0xff]
    %v45 = vld [vmem:[%s0 + $0x60] sm:$0xff]
    %v46 = vld [vmem:[%s0 + $0x68] sm:$0xff]
    %v47 = vld [vmem:[%s0 + $0x70] sm:$0xff]
    %v48 = vld [vmem:[%s0 + $0x78] sm:$0xff]
    %v49 = vld [vmem:[%s1] sm:$0xff]
    %v50 = vld [vmem:[%s1 + $0x8] sm:$0xff]
    %v51 = vld [vmem:[%s1 + $0x10] sm:$0xff]
    %v52 = vld [vmem:[%s1 + $0x18] sm:$0xff]
    %v53 = vld [vmem:[%s1 + $0x20] sm:$0xff]
    %v54 = vld [vmem:[%s1 + $0x28] sm:$0xff]
    %v55 = vld [vmem:[%s1 + $0x30] sm:$0xff]
    %v56 = vld [vmem:[%s1 + $0x38] sm:$0xff]
    %vm57 = vcmask 523264
    %v59 = vsel %vm57, %v49, 0
    %v62 = vsel %vm57, %v50, 0
    %v65 = vsel %vm57, %v51, 0
    %v68 = vsel %vm57, %v52, 0
    %v71 = vsel %vm57, %v53, 0
    %v74 = vsel %vm57, %v54, 0
    %v77 = vsel %vm57, %v55, 0
    %v80 = vsel %vm57, %v56, 0
    %82 = vmatprep.subr.mxu0 %v34
    %83 = vmatpush1.msra.mxu0 %v33
    %84 = vmatprep.subr.mxu0 %v36
    %85 = vmatpush1.msra.mxu0 %v35
    %86 = vmatprep.subr.mxu0 %v38
    %87 = vmatpush1.msra.mxu0 %v37
    %88 = vmatprep.subr.mxu0 %v40
    %89 = vmatpush1.msra.mxu0 %v39
    %90 = vmatprep.subr.mxu0 %v42
    %91 = vmatpush1.msra.mxu0 %v41
    %92 = vmatprep.subr.mxu0 %v44
    %93 = vmatpush1.msra.mxu0 %v43
    %94 = vmatprep.subr.mxu0 %v46
    %95 = vmatpush1.msra.mxu0 %v45
    %96 = vmatprep.subr.mxu0 %v48
    %97 = vmatpush1.msra.mxu0 %v47
    %98 = vmatprep.subr.mxu0 0.0
    %99 = vmatpush1.msra.mxu0 0.0
    %100 = vmatprep.subr.mxu0 0.0
    %101 = vmatpush1.msra.mxu0 0.0
    %102 = vmatprep.subr.mxu0 0.0
    %103 = vmatpush1.msra.mxu0 0.0
    %104 = vmatprep.subr.mxu0 0.0
    %105 = vmatpush1.msra.mxu0 0.0
    %106 = vmatprep.subr.mxu0 0.0
    %107 = vmatpush1.msra.mxu0 0.0
    %108 = vmatprep.subr.mxu0 0.0
    %109 = vmatpush1.msra.mxu0 0.0
    %110 = vmatprep.subr.mxu0 0.0
    %111 = vmatpush1.msra.mxu0 0.0
    %112 = vmatprep.subr.mxu0 0.0
    %113 = vmatpush1.msra.mxu0 0.0
    %114 = vmatprep.subr.mxu0 0.0
    %115 = vmatpush1.msra.mxu0 0.0
    %116 = vmatprep.subr.mxu0 0.0
    %117 = vmatpush1.msra.mxu0 0.0
    %118 = vmatprep.subr.mxu0 0.0
    %119 = vmatpush1.msra.mxu0 0.0
    %120 = vmatprep.subr.mxu0 0.0
    %121 = vmatpush1.msra.mxu0 0.0
    %122 = vmatprep.subr.mxu0 0.0
    %123 = vmatpush1.msra.mxu0 0.0
    %124 = vmatprep.subr.mxu0 0.0
    %125 = vmatpush1.msra.mxu0 0.0
    %126 = vmatprep.subr.mxu0 0.0
    %127 = vmatpush1.msra.mxu0 0.0
    %128 = vmatprep.subr.mxu0 0.0
    %129 = vmatpush1.msra.mxu0 0.0
    %130 = vmatprep.subr.mxu0 0.0
    %131 = vmatpush1.msra.mxu0 0.0
    %132 = vmatprep.subr.mxu0 0.0
    %133 = vmatpush1.msra.mxu0 0.0
    %134 = vmatprep.subr.mxu0 0.0
    %135 = vmatpush1.msra.mxu0 0.0
    %136 = vmatprep.subr.mxu0 0.0
    %137 = vmatpush1.msra.mxu0 0.0
    %138 = vmatprep.subr.mxu0 0.0
    %139 = vmatpush1.msra.mxu0 0.0
    %140 = vmatprep.subr.mxu0 0.0
    %141 = vmatpush1.msra.mxu0 0.0
    %142 = vmatprep.subr.mxu0 0.0
    %143 = vmatpush1.msra.mxu0 0.0
    %144 = vmatprep.subr.mxu0 0.0
    %145 = vmatpush1.msra.mxu0 0.0
    %146 = vmatprep.mubr.f32.mxu0 0.0
    %147 = vmatmul.mubr.f32.gmra.mrb[0].mxu0 %v59
    %v148 = vpop.f32.mrb[0].mxu0
    %v149 = vadd.f32 0.0, %v148
    %v150 = vpop.f32.mrb[0].mxu0
    %v151 = vadd.f32 0.0, %v150
    %152 = vmatprep.mubr.f32.mxu0 0.0
    %153 = vmatmul.mubr.f32.gmra.mrb[0].mxu0 %v62
    %v154 = vpop.f32.mrb[0].mxu0
    %v155 = vadd.f32 0.0, %v154
    %v156 = vpop.f32.mrb[0].mxu0
    %v157 = vadd.f32 0.0, %v156
    %158 = vmatprep.mubr.f32.mxu0 0.0
    %159 = vmatmul.mubr.f32.gmra.mrb[0].mxu0 %v65
    %v160 = vpop.f32.mrb[0].mxu0
    %v161 = vadd.f32 0.0, %v160
    %v162 = vpop.f32.mrb[0].mxu0
    %v163 = vadd.f32 0.0, %v162
    %164 = vmatprep.mubr.f32.mxu0 0.0
    %165 = vmatmul.mubr.f32.gmra.mrb[0].mxu0 %v68
    %v166 = vpop.f32.mrb[0].mxu0
    %v167 = vadd.f32 0.0, %v166
    %v168 = vpop.f32.mrb[0].mxu0
    %v169 = vadd.f32 0.0, %v168
    %170 = vmatprep.mubr.f32.mxu0 0.0
    %171 = vmatmul.mubr.f32.gmra.mrb[0].mxu0 %v71
    %v172 = vpop.f32.mrb[0].mxu0
    %v173 = vadd.f32 0.0, %v172
    %v174 = vpop.f32.mrb[0].mxu0
    %v175 = vadd.f32 0.0, %v174
    %176 = vmatprep.mubr.f32.mxu0 0.0
    %177 = vmatmul.mubr.f32.gmra.mrb[0].mxu0 %v74
    %v178 = vpop.f32.mrb[0].mxu0
    %v179 = vadd.f32 0.0, %v178
    %v180 = vpop.f32.mrb[0].mxu0
    %v181 = vadd.f32 0.0, %v180
    %182 = vmatprep.mubr.f32.mxu0 0.0
    %183 = vmatmul.mubr.f32.gmra.mrb[0].mxu0 %v77
    %v184 = vpop.f32.mrb[0].mxu0
    %v185 = vadd.f32 0.0, %v184
    %v186 = vpop.f32.mrb[0].mxu0
    %v187 = vadd.f32 0.0, %v186
    %188 = vmatprep.mubr.f32.mxu0 0.0
    %189 = vmatmul.mubr.f32.gmra.mrb[0].mxu0 %v80
    %v190 = vpop.f32.mrb[0].mxu0
    %v191 = vadd.f32 0.0, %v190
    %v192 = vpop.f32.mrb[0].mxu0
    %v193 = vadd.f32 0.0, %v192
    %194 = vdwg.mxu0
    %v195 = vld [vmem:[%s2] sm:$0xff]
    %v196 = vld [vmem:[%s2 + $0x8] sm:$0xff]
    %v197 = vld [vmem:[%s2 + $0x10] sm:$0xff]
    %v198 = vld [vmem:[%s2 + $0x18] sm:$0xff]
    %v199 = vld [vmem:[%s2 + $0x20] sm:$0xff]
    %v200 = vld [vmem:[%s2 + $0x28] sm:$0xff]
    %v201 = vld [vmem:[%s2 + $0x30] sm:$0xff]
    %v202 = vld [vmem:[%s2 + $0x38] sm:$0xff]
    %v203 = vld [vmem:[%s3] sm:$0xff]
    %v204 = vld [vmem:[%s3 + $0x8] sm:$0xff]
    %v205 = vld [vmem:[%s3 + $0x10] sm:$0xff]
    %v206 = vld [vmem:[%s3 + $0x18] sm:$0xff]
    %v207 = vld [vmem:[%s3 + $0x20] sm:$0xff]
    %v208 = vld [vmem:[%s3 + $0x28] sm:$0xff]
    %v209 = vld [vmem:[%s3 + $0x30] sm:$0xff]
    %v210 = vld [vmem:[%s3 + $0x38] sm:$0xff]
    %v211 = vadd.f32 %v149, %v155
    %v212 = vadd.f32 %v211, %v161
    %v213 = vadd.f32 %v212, %v167
    %v214 = vrot.slane %v213, 4
    %v215 = vadd.f32 %v213, %v214
    %v216 = vrot.slane %v215, 2
    %v217 = vadd.f32 %v215, %v216
    %v218 = vrot.slane %v217, 1
    %v219 = vadd.f32 %v217, %v218
    %v220 = vadd.f32 %v151, %v157
    %v221 = vadd.f32 %v220, %v163
    %v222 = vadd.f32 %v221, %v169
    %v223 = vrot.slane %v222, 4
    %v224 = vadd.f32 %v222, %v223
    %v225 = vrot.slane %v224, 2
    %v226 = vadd.f32 %v224, %v225
    %v227 = vrot.slane %v226, 1
    %v228 = vadd.f32 %v226, %v227
    %v229 = vmul.f32 %v149, %v149
    %v230 = vmul.f32 %v151, %v151
    %v231 = vmul.f32 %v155, %v155
    %v232 = vmul.f32 %v157, %v157
    %v233 = vmul.f32 %v161, %v161
    %v234 = vmul.f32 %v163, %v163
    %v235 = vmul.f32 %v167, %v167
    %v236 = vmul.f32 %v169, %v169
    %v237 = vadd.f32 %v229, %v231
    %v238 = vadd.f32 %v237, %v233
    %v239 = vadd.f32 %v238, %v235
    %v240 = vrot.slane %v239, 4
    %v241 = vadd.f32 %v239, %v240
    %v242 = vrot.slane %v241, 2
    %v243 = vadd.f32 %v241, %v242
    %v244 = vrot.slane %v243, 1
    %v245 = vadd.f32 %v243, %v244
    %v246 = vadd.f32 %v230, %v232
    %v247 = vadd.f32 %v246, %v234
    %v248 = vadd.f32 %v247, %v236
    %v249 = vrot.slane %v248, 4
    %v250 = vadd.f32 %v248, %v249
    %v251 = vrot.slane %v250, 2
    %v252 = vadd.f32 %v250, %v251
    %v253 = vrot.slane %v252, 1
    %v254 = vadd.f32 %v252, %v253
    %v255 = vmul.f32 %v219, 0.03125
    %v256 = vmul.f32 %v228, 0.03125
    %v257 = vmul.f32 %v245, 0.03125
    %v258 = vmul.f32 %v254, 0.03125
    %v259 = vmul.f32 %v255, %v255
    %v260 = vmul.f32 %v256, %v256
    %v261 = vsub.f32 %v257, %v259
    %v262 = vsub.f32 %v258, %v260
    %v263 = vsub.f32 %v149, %v255
    %v264 = vsub.f32 %v151, %v256
    %v265 = vsub.f32 %v155, %v255
    %v266 = vsub.f32 %v157, %v256
    %v267 = vsub.f32 %v161, %v255
    %v268 = vsub.f32 %v163, %v256
    %v269 = vsub.f32 %v167, %v255
    %v270 = vsub.f32 %v169, %v256
    %v271 = vadd.f32 %v261, 1e-05
    %v272 = vadd.f32 %v262, 1e-05
    %v273 = vrsqrt.pop %v271
    %v274 = vrsqrt.pop %v272
    %v275 = vmul.f32 %v263, %v273
    %v276 = vmul.f32 %v264, %v274
    %v277 = vmul.f32 %v265, %v273
    %v278 = vmul.f32 %v266, %v274
    %v279 = vmul.f32 %v267, %v273
    %v280 = vmul.f32 %v268, %v274
    %v281 = vmul.f32 %v269, %v273
    %v282 = vmul.f32 %v270, %v274
    %v283 = vadd.f32 %v173, %v179
    %v284 = vadd.f32 %v283, %v185
    %v285 = vadd.f32 %v284, %v191
    %v286 = vrot.slane %v285, 4
    %v287 = vadd.f32 %v285, %v286
    %v288 = vrot.slane %v287, 2
    %v289 = vadd.f32 %v287, %v288
    %v290 = vrot.slane %v289, 1
    %v291 = vadd.f32 %v289, %v290
    %v292 = vadd.f32 %v175, %v181
    %v293 = vadd.f32 %v292, %v187
    %v294 = vadd.f32 %v293, %v193
    %v295 = vrot.slane %v294, 4
    %v296 = vadd.f32 %v294, %v295
    %v297 = vrot.slane %v296, 2
    %v298 = vadd.f32 %v296, %v297
    %v299 = vrot.slane %v298, 1
    %v300 = vadd.f32 %v298, %v299
    %v301 = vmul.f32 %v173, %v173
    %v302 = vmul.f32 %v175, %v175
    %v303 = vmul.f32 %v179, %v179
    %v304 = vmul.f32 %v181, %v181
    %v305 = vmul.f32 %v185, %v185
    %v306 = vmul.f32 %v187, %v187
    %v307 = vmul.f32 %v191, %v191
    %v308 = vmul.f32 %v193, %v193
    %v309 = vadd.f32 %v301, %v303
    %v310 = vadd.f32 %v309, %v305
    %v311 = vadd.f32 %v310, %v307
    %v312 = vrot.slane %v311, 4
    %v313 = vadd.f32 %v311, %v312
    %v314 = vrot.slane %v313, 2
    %v315 = vadd.f32 %v313, %v314
    %v316 = vrot.slane %v315, 1
    %v317 = vadd.f32 %v315, %v316
    %v318 = vadd.f32 %v302, %v304
    %v319 = vadd.f32 %v318, %v306
    %v320 = vadd.f32 %v319, %v308
    %v321 = vrot.slane %v320, 4
    %v322 = vadd.f32 %v320, %v321
    %v323 = vrot.slane %v322, 2
    %v324 = vadd.f32 %v322, %v323
    %v325 = vrot.slane %v324, 1
    %v326 = vadd.f32 %v324, %v325
    %v327 = vmul.f32 %v291, 0.03125
    %v328 = vmul.f32 %v300, 0.03125
    %v329 = vmul.f32 %v317, 0.03125
    %v330 = vmul.f32 %v326, 0.03125
    %v331 = vmul.f32 %v327, %v327
    %v332 = vmul.f32 %v328, %v328
    %v333 = vsub.f32 %v329, %v331
    %v334 = vsub.f32 %v330, %v332
    %v335 = vsub.f32 %v173, %v327
    %v336 = vsub.f32 %v175, %v328
    %v337 = vsub.f32 %v179, %v327
    %v338 = vsub.f32 %v181, %v328
    %v339 = vsub.f32 %v185, %v327
    %v340 = vsub.f32 %v187, %v328
    %v341 = vsub.f32 %v191, %v327
    %v342 = vsub.f32 %v193, %v328
    %v343 = vadd.f32 %v333, 1e-05
    %v344 = vadd.f32 %v334, 1e-05
    %v345 = vrsqrt.pop %v343
    %v346 = vrsqrt.pop %v344
    %v347 = vmul.f32 %v335, %v345
    %v348 = vmul.f32 %v336, %v346
    %v349 = vmul.f32 %v337, %v345
    %v350 = vmul.f32 %v338, %v346
    %v351 = vmul.f32 %v339, %v345
    %v352 = vmul.f32 %v340, %v346
    %v353 = vmul.f32 %v341, %v345
    %v354 = vmul.f32 %v342, %v346
    %356 = vset.pattern.permute.xlu0 0
    %357 = vperm.xlu0 %356, %v195
    %v358 = vpop.permute.xlu0 %357
    %361 = vset.pattern.permute.xlu0 0
    %362 = vperm.xlu0 %361, %v196
    %v363 = vpop.permute.xlu0 %362
    %366 = vset.pattern.permute.xlu0 0
    %367 = vperm.xlu0 %366, %v197
    %v368 = vpop.permute.xlu0 %367
    %371 = vset.pattern.permute.xlu0 0
    %372 = vperm.xlu0 %371, %v198
    %v373 = vpop.permute.xlu0 %372
    %376 = vset.pattern.permute.xlu0 0
    %377 = vperm.xlu0 %376, %v199
    %v378 = vpop.permute.xlu0 %377
    %381 = vset.pattern.permute.xlu0 0
    %382 = vperm.xlu0 %381, %v200
    %v383 = vpop.permute.xlu0 %382
    %386 = vset.pattern.permute.xlu0 0
    %387 = vperm.xlu0 %386, %v201
    %v388 = vpop.permute.xlu0 %387
    %391 = vset.pattern.permute.xlu0 0
    %392 = vperm.xlu0 %391, %v202
    %v393 = vpop.permute.xlu0 %392
    %v395 = vmul.f32 %v275, %v358
    %v396 = vmul.f32 %v276, %v358
    %v397 = vmul.f32 %v277, %v363
    %v398 = vmul.f32 %v278, %v363
    %v399 = vmul.f32 %v279, %v368
    %v400 = vmul.f32 %v280, %v368
    %v401 = vmul.f32 %v281, %v373
    %v402 = vmul.f32 %v282, %v373
    %v403 = vmul.f32 %v347, %v378
    %v404 = vmul.f32 %v348, %v378
    %v405 = vmul.f32 %v349, %v383
    %v406 = vmul.f32 %v350, %v383
    %v407 = vmul.f32 %v351, %v388
    %v408 = vmul.f32 %v352, %v388
    %v409 = vmul.f32 %v353, %v393
    %v410 = vmul.f32 %v354, %v393
    %412 = vset.pattern.permute.xlu0 0
    %413 = vperm.xlu0 %412, %v203
    %v414 = vpop.permute.xlu0 %413
    %417 = vset.pattern.permute.xlu0 0
    %418 = vperm.xlu0 %417, %v204
    %v419 = vpop.permute.xlu0 %418
    %422 = vset.pattern.permute.xlu0 0
    %423 = vperm.xlu0 %422, %v205
    %v424 = vpop.permute.xlu0 %423
    %427 = vset.pattern.permute.xlu0 0
    %428 = vperm.xlu0 %427, %v206
    %v429 = vpop.permute.xlu0 %428
    %432 = vset.pattern.permute.xlu0 0
    %433 = vperm.xlu0 %432, %v207
    %v434 = vpop.permute.xlu0 %433
    %437 = vset.pattern.permute.xlu0 0
    %438 = vperm.xlu0 %437, %v208
    %v439 = vpop.permute.xlu0 %438
    %442 = vset.pattern.permute.xlu0 0
    %443 = vperm.xlu0 %442, %v209
    %v444 = vpop.permute.xlu0 %443
    %447 = vset.pattern.permute.xlu0 0
    %448 = vperm.xlu0 %447, %v210
    %v449 = vpop.permute.xlu0 %448
    %v451 = vadd.f32 %v395, %v414
    %v452 = vadd.f32 %v396, %v414
    %v453 = vadd.f32 %v397, %v419
    %v454 = vadd.f32 %v398, %v419
    %v455 = vadd.f32 %v399, %v424
    %v456 = vadd.f32 %v400, %v424
    %v457 = vadd.f32 %v401, %v429
    %v458 = vadd.f32 %v402, %v429
    %v459 = vadd.f32 %v403, %v434
    %v460 = vadd.f32 %v404, %v434
    %v461 = vadd.f32 %v405, %v439
    %v462 = vadd.f32 %v406, %v439
    %v463 = vadd.f32 %v407, %v444
    %v464 = vadd.f32 %v408, %v444
    %v465 = vadd.f32 %v409, %v449
    %v466 = vadd.f32 %v410, %v449
    %s467 = sld [smem:[#allocation2]]
    %v468 = vmul.f32 %v451, %v451
    %v469 = vmul.f32 %v452, %v452
    %v470 = vmul.f32 %v453, %v453
    %v471 = vmul.f32 %v454, %v454
    %v472 = vmul.f32 %v455, %v455
    %v473 = vmul.f32 %v456, %v456
    %v474 = vmul.f32 %v457, %v457
    %v475 = vmul.f32 %v458, %v458
    %v476 = vmul.f32 %v459, %v459
    %v477 = vmul.f32 %v460, %v460
    %v478 = vmul.f32 %v461, %v461
    %v479 = vmul.f32 %v462, %v462
    %v480 = vmul.f32 %v463, %v463
    %v481 = vmul.f32 %v464, %v464
    %v482 = vmul.f32 %v465, %v465
    %v483 = vmul.f32 %v466, %v466
    %v484 = vadd.f32 %v468, %v476
    %v485 = vadd.f32 %v469, %v477
    %v486 = vadd.f32 %v470, %v478
    %v487 = vadd.f32 %v471, %v479
    %v488 = vadd.f32 %v472, %v480
    %v489 = vadd.f32 %v473, %v481
    %v490 = vadd.f32 %v474, %v482
    %v491 = vadd.f32 %v475, %v483
    %vm492 = vcmp.gt.f32.partialorder %v484, 0.0
    %vm493 = vcmp.gt.f32.partialorder %v485, 0.0
    %vm494 = vcmp.gt.f32.partialorder %v486, 0.0
    %vm495 = vcmp.gt.f32.partialorder %v487, 0.0
    %vm496 = vcmp.gt.f32.partialorder %v488, 0.0
    %vm497 = vcmp.gt.f32.partialorder %v489, 0.0
    %vm498 = vcmp.gt.f32.partialorder %v490, 0.0
    %vm499 = vcmp.gt.f32.partialorder %v491, 0.0
    %v500 = vrsqrt.pop %v484
    %v501 = vrsqrt.pop %v485
    %v502 = vrsqrt.pop %v486
    %v503 = vrsqrt.pop %v487
    %v504 = vrsqrt.pop %v488
    %v505 = vrsqrt.pop %v489
    %v506 = vrsqrt.pop %v490
    %v507 = vrsqrt.pop %v491
    %v508 = vsel %vm492, %v500, 0.0
    %v509 = vsel %vm493, %v501, 0.0
    %v510 = vsel %vm494, %v502, 0.0
    %v511 = vsel %vm495, %v503, 0.0
    %v512 = vsel %vm496, %v504, 0.0
    %v513 = vsel %vm497, %v505, 0.0
    %v514 = vsel %vm498, %v506, 0.0
    %v515 = vsel %vm499, %v507, 0.0
    %v516 = vstv %s467
    %v517 = vmul.f32 %v516, %v508
    %v518 = vmul.f32 %v516, %v509
    %v519 = vmul.f32 %v516, %v510
    %v520 = vmul.f32 %v516, %v511
    %v521 = vmul.f32 %v516, %v512
    %v522 = vmul.f32 %v516, %v513
    %v523 = vmul.f32 %v516, %v514
    %v524 = vmul.f32 %v516, %v515
    %v525 = vsub.f32 1.0, %v517
    %v526 = vsub.f32 1.0, %v518
    %v527 = vsub.f32 1.0, %v519
    %v528 = vsub.f32 1.0, %v520
    %v529 = vsub.f32 1.0, %v521
    %v530 = vsub.f32 1.0, %v522
    %v531 = vsub.f32 1.0, %v523
    %v532 = vsub.f32 1.0, %v524
    %v533 = vmax.f32 %v525, 0.0
    %v534 = vmax.f32 %v526, 0.0
    %v535 = vmax.f32 %v527, 0.0
    %v536 = vmax.f32 %v528, 0.0
    %v537 = vmax.f32 %v529, 0.0
    %v538 = vmax.f32 %v530, 0.0
    %v539 = vmax.f32 %v531, 0.0
    %v540 = vmax.f32 %v532, 0.0
    %v541 = vmul.f32 %v451, %v533
    %v542 = vmul.f32 %v452, %v534
    %v543 = vmul.f32 %v453, %v535
    %v544 = vmul.f32 %v454, %v536
    %v545 = vmul.f32 %v455, %v537
    %v546 = vmul.f32 %v456, %v538
    %v547 = vmul.f32 %v457, %v539
    %v548 = vmul.f32 %v458, %v540
    %v549 = vmul.f32 %v459, %v533
    %v550 = vmul.f32 %v460, %v534
    %v551 = vmul.f32 %v461, %v535
    %v552 = vmul.f32 %v462, %v536
    %v553 = vmul.f32 %v463, %v537
    %v554 = vmul.f32 %v464, %v538
    %v555 = vmul.f32 %v465, %v539
    %v556 = vmul.f32 %v466, %v540
    %s557 = scalar_lea.vmem %s1, 64
    %v558 = vld [vmem:[%s557] sm:$0xff]
    %v559 = vld [vmem:[%s557 + $0x8] sm:$0xff]
    %v560 = vld [vmem:[%s557 + $0x10] sm:$0xff]
    %v561 = vld [vmem:[%s557 + $0x18] sm:$0xff]
    %v562 = vld [vmem:[%s557 + $0x20] sm:$0xff]
    %v563 = vld [vmem:[%s557 + $0x28] sm:$0xff]
    %v564 = vld [vmem:[%s557 + $0x30] sm:$0xff]
    %v565 = vld [vmem:[%s557 + $0x38] sm:$0xff]
    %v567 = vsel %vm57, %v558, 0
    %v570 = vsel %vm57, %v559, 0
    %v573 = vsel %vm57, %v560, 0
    %v576 = vsel %vm57, %v561, 0
    %v579 = vsel %vm57, %v562, 0
    %v582 = vsel %vm57, %v563, 0
    %v585 = vsel %vm57, %v564, 0
    %v588 = vsel %vm57, %v565, 0
    %590 = vmatprep.subr.mxu0 %v542
    %591 = vmatpush1.msra.mxu0 %v541
    %592 = vmatprep.subr.mxu0 %v544
    %593 = vmatpush1.msra.mxu0 %v543
    %594 = vmatprep.subr.mxu0 %v546
    %595 = vmatpush1.msra.mxu0 %v545
    %596 = vmatprep.subr.mxu0 %v548
    %597 = vmatpush1.msra.mxu0 %v547
    %598 = vmatprep.subr.mxu0 %v550
    %599 = vmatpush1.msra.mxu0 %v549
    %600 = vmatprep.subr.mxu0 %v552
    %601 = vmatpush1.msra.mxu0 %v551
    %602 = vmatprep.subr.mxu0 %v554
    %603 = vmatpush1.msra.mxu0 %v553
    %604 = vmatprep.subr.mxu0 %v556
    %605 = vmatpush1.msra.mxu0 %v555
    %606 = vmatprep.subr.mxu0 0.0
    %607 = vmatpush1.msra.mxu0 0.0
    %608 = vmatprep.subr.mxu0 0.0
    %609 = vmatpush1.msra.mxu0 0.0
    %610 = vmatprep.subr.mxu0 0.0
    %611 = vmatpush1.msra.mxu0 0.0
    %612 = vmatprep.subr.mxu0 0.0
    %613 = vmatpush1.msra.mxu0 0.0
    %614 = vmatprep.subr.mxu0 0.0
    %615 = vmatpush1.msra.mxu0 0.0
    %616 = vmatprep.subr.mxu0 0.0
    %617 = vmatpush1.msra.mxu0 0.0
    %618 = vmatprep.subr.mxu0 0.0
    %619 = vmatpush1.msra.mxu0 0.0
    %620 = vmatprep.subr.mxu0 0.0
    %621 = vmatpush1.msra.mxu0 0.0
    %622 = vmatprep.subr.mxu0 0.0
    %623 = vmatpush1.msra.mxu0 0.0
    %624 = vmatprep.subr.mxu0 0.0
    %625 = vmatpush1.msra.mxu0 0.0
    %626 = vmatprep.subr.mxu0 0.0
    %627 = vmatpush1.msra.mxu0 0.0
    %628 = vmatprep.subr.mxu0 0.0
    %629 = vmatpush1.msra.mxu0 0.0
    %630 = vmatprep.subr.mxu0 0.0
    %631 = vmatpush1.msra.mxu0 0.0
    %632 = vmatprep.subr.mxu0 0.0
    %633 = vmatpush1.msra.mxu0 0.0
    %634 = vmatprep.subr.mxu0 0.0
    %635 = vmatpush1.msra.mxu0 0.0
    %636 = vmatprep.subr.mxu0 0.0
    %637 = vmatpush1.msra.mxu0 0.0
    %638 = vmatprep.subr.mxu0 0.0
    %639 = vmatpush1.msra.mxu0 0.0
    %640 = vmatprep.subr.mxu0 0.0
    %641 = vmatpush1.msra.mxu0 0.0
    %642 = vmatprep.subr.mxu0 0.0
    %643 = vmatpush1.msra.mxu0 0.0
    %644 = vmatprep.subr.mxu0 0.0
    %645 = vmatpush1.msra.mxu0 0.0
    %646 = vmatprep.subr.mxu0 0.0
    %647 = vmatpush1.msra.mxu0 0.0
    %648 = vmatprep.subr.mxu0 0.0
    %649 = vmatpush1.msra.mxu0 0.0
    %650 = vmatprep.subr.mxu0 0.0
    %651 = vmatpush1.msra.mxu0 0.0
    %652 = vmatprep.subr.mxu0 0.0
    %653 = vmatpush1.msra.mxu0 0.0
    %654 = vmatprep.mubr.f32.mxu0 0.0
    %655 = vmatmul.mubr.f32.gmra.mrb[0].mxu0 %v567
    %v656 = vpop.f32.mrb[0].mxu0
    %v657 = vadd.f32 0.0, %v656
    %v658 = vpop.f32.mrb[0].mxu0
    %v659 = vadd.f32 0.0, %v658
    %660 = vmatprep.mubr.f32.mxu0 0.0
    %661 = vmatmul.mubr.f32.gmra.mrb[0].mxu0 %v570
    %v662 = vpop.f32.mrb[0].mxu0
    %v663 = vadd.f32 0.0, %v662
    %v664 = vpop.f32.mrb[0].mxu0
    %v665 = vadd.f32 0.0, %v664
    %666 = vmatprep.mubr.f32.mxu0 0.0
    %667 = vmatmul.mubr.f32.gmra.mrb[0].mxu0 %v573
    %v668 = vpop.f32.mrb[0].mxu0
    %v669 = vadd.f32 0.0, %v668
    %v670 = vpop.f32.mrb[0].mxu0
    %v671 = vadd.f32 0.0, %v670
    %672 = vmatprep.mubr.f32.mxu0 0.0
    %673 = vmatmul.mubr.f32.gmra.mrb[0].mxu0 %v576
    %v674 = vpop.f32.mrb[0].mxu0
    %v675 = vadd.f32 0.0, %v674
    %v676 = vpop.f32.mrb[0].mxu0
    %v677 = vadd.f32 0.0, %v676
    %678 = vmatprep.mubr.f32.mxu0 0.0
    %679 = vmatmul.mubr.f32.gmra.mrb[0].mxu0 %v579
    %v680 = vpop.f32.mrb[0].mxu0
    %v681 = vadd.f32 0.0, %v680
    %v682 = vpop.f32.mrb[0].mxu0
    %v683 = vadd.f32 0.0, %v682
    %684 = vmatprep.mubr.f32.mxu0 0.0
    %685 = vmatmul.mubr.f32.gmra.mrb[0].mxu0 %v582
    %v686 = vpop.f32.mrb[0].mxu0
    %v687 = vadd.f32 0.0, %v686
    %v688 = vpop.f32.mrb[0].mxu0
    %v689 = vadd.f32 0.0, %v688
    %690 = vmatprep.mubr.f32.mxu0 0.0
    %691 = vmatmul.mubr.f32.gmra.mrb[0].mxu0 %v585
    %v692 = vpop.f32.mrb[0].mxu0
    %v693 = vadd.f32 0.0, %v692
    %v694 = vpop.f32.mrb[0].mxu0
    %v695 = vadd.f32 0.0, %v694
    %696 = vmatprep.mubr.f32.mxu0 0.0
    %697 = vmatmul.mubr.f32.gmra.mrb[0].mxu0 %v588
    %v698 = vpop.f32.mrb[0].mxu0
    %v699 = vadd.f32 0.0, %v698
    %v700 = vpop.f32.mrb[0].mxu0
    %v701 = vadd.f32 0.0, %v700
    %702 = vdwg.mxu0
    %s703 = scalar_lea.vmem %s2, 64
    %v704 = vld [vmem:[%s703] sm:$0xff]
    %v705 = vld [vmem:[%s703 + $0x8] sm:$0xff]
    %v706 = vld [vmem:[%s703 + $0x10] sm:$0xff]
    %v707 = vld [vmem:[%s703 + $0x18] sm:$0xff]
    %v708 = vld [vmem:[%s703 + $0x20] sm:$0xff]
    %v709 = vld [vmem:[%s703 + $0x28] sm:$0xff]
    %v710 = vld [vmem:[%s703 + $0x30] sm:$0xff]
    %v711 = vld [vmem:[%s703 + $0x38] sm:$0xff]
    %s712 = scalar_lea.vmem %s3, 64
    %v713 = vld [vmem:[%s712] sm:$0xff]
    %v714 = vld [vmem:[%s712 + $0x8] sm:$0xff]
    %v715 = vld [vmem:[%s712 + $0x10] sm:$0xff]
    %v716 = vld [vmem:[%s712 + $0x18] sm:$0xff]
    %v717 = vld [vmem:[%s712 + $0x20] sm:$0xff]
    %v718 = vld [vmem:[%s712 + $0x28] sm:$0xff]
    %v719 = vld [vmem:[%s712 + $0x30] sm:$0xff]
    %v720 = vld [vmem:[%s712 + $0x38] sm:$0xff]
    %v721 = vadd.f32 %v657, %v663
    %v722 = vadd.f32 %v721, %v669
    %v723 = vadd.f32 %v722, %v675
    %v724 = vrot.slane %v723, 4
    %v725 = vadd.f32 %v723, %v724
    %v726 = vrot.slane %v725, 2
    %v727 = vadd.f32 %v725, %v726
    %v728 = vrot.slane %v727, 1
    %v729 = vadd.f32 %v727, %v728
    %v730 = vadd.f32 %v659, %v665
    %v731 = vadd.f32 %v730, %v671
    %v732 = vadd.f32 %v731, %v677
    %v733 = vrot.slane %v732, 4
    %v734 = vadd.f32 %v732, %v733
    %v735 = vrot.slane %v734, 2
    %v736 = vadd.f32 %v734, %v735
    %v737 = vrot.slane %v736, 1
    %v738 = vadd.f32 %v736, %v737
    %v739 = vmul.f32 %v657, %v657
    %v740 = vmul.f32 %v659, %v659
    %v741 = vmul.f32 %v663, %v663
    %v742 = vmul.f32 %v665, %v665
    %v743 = vmul.f32 %v669, %v669
    %v744 = vmul.f32 %v671, %v671
    %v745 = vmul.f32 %v675, %v675
    %v746 = vmul.f32 %v677, %v677
    %v747 = vadd.f32 %v739, %v741
    %v748 = vadd.f32 %v747, %v743
    %v749 = vadd.f32 %v748, %v745
    %v750 = vrot.slane %v749, 4
    %v751 = vadd.f32 %v749, %v750
    %v752 = vrot.slane %v751, 2
    %v753 = vadd.f32 %v751, %v752
    %v754 = vrot.slane %v753, 1
    %v755 = vadd.f32 %v753, %v754
    %v756 = vadd.f32 %v740, %v742
    %v757 = vadd.f32 %v756, %v744
    %v758 = vadd.f32 %v757, %v746
    %v759 = vrot.slane %v758, 4
    %v760 = vadd.f32 %v758, %v759
    %v761 = vrot.slane %v760, 2
    %v762 = vadd.f32 %v760, %v761
    %v763 = vrot.slane %v762, 1
    %v764 = vadd.f32 %v762, %v763
    %v765 = vmul.f32 %v729, 0.03125
    %v766 = vmul.f32 %v738, 0.03125
    %v767 = vmul.f32 %v755, 0.03125
    %v768 = vmul.f32 %v764, 0.03125
    %v769 = vmul.f32 %v765, %v765
    %v770 = vmul.f32 %v766, %v766
    %v771 = vsub.f32 %v767, %v769
    %v772 = vsub.f32 %v768, %v770
    %v773 = vsub.f32 %v657, %v765
    %v774 = vsub.f32 %v659, %v766
    %v775 = vsub.f32 %v663, %v765
    %v776 = vsub.f32 %v665, %v766
    %v777 = vsub.f32 %v669, %v765
    %v778 = vsub.f32 %v671, %v766
    %v779 = vsub.f32 %v675, %v765
    %v780 = vsub.f32 %v677, %v766
    %v781 = vadd.f32 %v771, 1e-05
    %v782 = vadd.f32 %v772, 1e-05
    %v783 = vrsqrt.pop %v781
    %v784 = vrsqrt.pop %v782
    %v785 = vmul.f32 %v773, %v783
    %v786 = vmul.f32 %v774, %v784
    %v787 = vmul.f32 %v775, %v783
    %v788 = vmul.f32 %v776, %v784
    %v789 = vmul.f32 %v777, %v783
    %v790 = vmul.f32 %v778, %v784
    %v791 = vmul.f32 %v779, %v783
    %v792 = vmul.f32 %v780, %v784
    %v793 = vadd.f32 %v681, %v687
    %v794 = vadd.f32 %v793, %v693
    %v795 = vadd.f32 %v794, %v699
    %v796 = vrot.slane %v795, 4
    %v797 = vadd.f32 %v795, %v796
    %v798 = vrot.slane %v797, 2
    %v799 = vadd.f32 %v797, %v798
    %v800 = vrot.slane %v799, 1
    %v801 = vadd.f32 %v799, %v800
    %v802 = vadd.f32 %v683, %v689
    %v803 = vadd.f32 %v802, %v695
    %v804 = vadd.f32 %v803, %v701
    %v805 = vrot.slane %v804, 4
    %v806 = vadd.f32 %v804, %v805
    %v807 = vrot.slane %v806, 2
    %v808 = vadd.f32 %v806, %v807
    %v809 = vrot.slane %v808, 1
    %v810 = vadd.f32 %v808, %v809
    %v811 = vmul.f32 %v681, %v681
    %v812 = vmul.f32 %v683, %v683
    %v813 = vmul.f32 %v687, %v687
    %v814 = vmul.f32 %v689, %v689
    %v815 = vmul.f32 %v693, %v693
    %v816 = vmul.f32 %v695, %v695
    %v817 = vmul.f32 %v699, %v699
    %v818 = vmul.f32 %v701, %v701
    %v819 = vadd.f32 %v811, %v813
    %v820 = vadd.f32 %v819, %v815
    %v821 = vadd.f32 %v820, %v817
    %v822 = vrot.slane %v821, 4
    %v823 = vadd.f32 %v821, %v822
    %v824 = vrot.slane %v823, 2
    %v825 = vadd.f32 %v823, %v824
    %v826 = vrot.slane %v825, 1
    %v827 = vadd.f32 %v825, %v826
    %v828 = vadd.f32 %v812, %v814
    %v829 = vadd.f32 %v828, %v816
    %v830 = vadd.f32 %v829, %v818
    %v831 = vrot.slane %v830, 4
    %v832 = vadd.f32 %v830, %v831
    %v833 = vrot.slane %v832, 2
    %v834 = vadd.f32 %v832, %v833
    %v835 = vrot.slane %v834, 1
    %v836 = vadd.f32 %v834, %v835
    %v837 = vmul.f32 %v801, 0.03125
    %v838 = vmul.f32 %v810, 0.03125
    %v839 = vmul.f32 %v827, 0.03125
    %v840 = vmul.f32 %v836, 0.03125
    %v841 = vmul.f32 %v837, %v837
    %v842 = vmul.f32 %v838, %v838
    %v843 = vsub.f32 %v839, %v841
    %v844 = vsub.f32 %v840, %v842
    %v845 = vsub.f32 %v681, %v837
    %v846 = vsub.f32 %v683, %v838
    %v847 = vsub.f32 %v687, %v837
    %v848 = vsub.f32 %v689, %v838
    %v849 = vsub.f32 %v693, %v837
    %v850 = vsub.f32 %v695, %v838
    %v851 = vsub.f32 %v699, %v837
    %v852 = vsub.f32 %v701, %v838
    %v853 = vadd.f32 %v843, 1e-05
    %v854 = vadd.f32 %v844, 1e-05
    %v855 = vrsqrt.pop %v853
    %v856 = vrsqrt.pop %v854
    %v857 = vmul.f32 %v845, %v855
    %v858 = vmul.f32 %v846, %v856
    %v859 = vmul.f32 %v847, %v855
    %v860 = vmul.f32 %v848, %v856
    %v861 = vmul.f32 %v849, %v855
    %v862 = vmul.f32 %v850, %v856
    %v863 = vmul.f32 %v851, %v855
    %v864 = vmul.f32 %v852, %v856
    %866 = vset.pattern.permute.xlu0 0
    %867 = vperm.xlu0 %866, %v704
    %v868 = vpop.permute.xlu0 %867
    %871 = vset.pattern.permute.xlu0 0
    %872 = vperm.xlu0 %871, %v705
    %v873 = vpop.permute.xlu0 %872
    %876 = vset.pattern.permute.xlu0 0
    %877 = vperm.xlu0 %876, %v706
    %v878 = vpop.permute.xlu0 %877
    %881 = vset.pattern.permute.xlu0 0
    %882 = vperm.xlu0 %881, %v707
    %v883 = vpop.permute.xlu0 %882
    %886 = vset.pattern.permute.xlu0 0
    %887 = vperm.xlu0 %886, %v708
    %v888 = vpop.permute.xlu0 %887
    %891 = vset.pattern.permute.xlu0 0
    %892 = vperm.xlu0 %891, %v709
    %v893 = vpop.permute.xlu0 %892
    %896 = vset.pattern.permute.xlu0 0
    %897 = vperm.xlu0 %896, %v710
    %v898 = vpop.permute.xlu0 %897
    %901 = vset.pattern.permute.xlu0 0
    %902 = vperm.xlu0 %901, %v711
    %v903 = vpop.permute.xlu0 %902
    %v905 = vmul.f32 %v785, %v868
    %v906 = vmul.f32 %v786, %v868
    %v907 = vmul.f32 %v787, %v873
    %v908 = vmul.f32 %v788, %v873
    %v909 = vmul.f32 %v789, %v878
    %v910 = vmul.f32 %v790, %v878
    %v911 = vmul.f32 %v791, %v883
    %v912 = vmul.f32 %v792, %v883
    %v913 = vmul.f32 %v857, %v888
    %v914 = vmul.f32 %v858, %v888
    %v915 = vmul.f32 %v859, %v893
    %v916 = vmul.f32 %v860, %v893
    %v917 = vmul.f32 %v861, %v898
    %v918 = vmul.f32 %v862, %v898
    %v919 = vmul.f32 %v863, %v903
    %v920 = vmul.f32 %v864, %v903
    %922 = vset.pattern.permute.xlu0 0
    %923 = vperm.xlu0 %922, %v713
    %v924 = vpop.permute.xlu0 %923
    %927 = vset.pattern.permute.xlu0 0
    %928 = vperm.xlu0 %927, %v714
    %v929 = vpop.permute.xlu0 %928
    %932 = vset.pattern.permute.xlu0 0
    %933 = vperm.xlu0 %932, %v715
    %v934 = vpop.permute.xlu0 %933
    %937 = vset.pattern.permute.xlu0 0
    %938 = vperm.xlu0 %937, %v716
    %v939 = vpop.permute.xlu0 %938
    %942 = vset.pattern.permute.xlu0 0
    %943 = vperm.xlu0 %942, %v717
    %v944 = vpop.permute.xlu0 %943
    %947 = vset.pattern.permute.xlu0 0
    %948 = vperm.xlu0 %947, %v718
    %v949 = vpop.permute.xlu0 %948
    %952 = vset.pattern.permute.xlu0 0
    %953 = vperm.xlu0 %952, %v719
    %v954 = vpop.permute.xlu0 %953
    %957 = vset.pattern.permute.xlu0 0
    %958 = vperm.xlu0 %957, %v720
    %v959 = vpop.permute.xlu0 %958
    %v961 = vadd.f32 %v905, %v924
    %v962 = vadd.f32 %v906, %v924
    %v963 = vadd.f32 %v907, %v929
    %v964 = vadd.f32 %v908, %v929
    %v965 = vadd.f32 %v909, %v934
    %v966 = vadd.f32 %v910, %v934
    %v967 = vadd.f32 %v911, %v939
    %v968 = vadd.f32 %v912, %v939
    %v969 = vadd.f32 %v913, %v944
    %v970 = vadd.f32 %v914, %v944
    %v971 = vadd.f32 %v915, %v949
    %v972 = vadd.f32 %v916, %v949
    %v973 = vadd.f32 %v917, %v954
    %v974 = vadd.f32 %v918, %v954
    %v975 = vadd.f32 %v919, %v959
    %v976 = vadd.f32 %v920, %v959
    %v977 = vadd.f32 %v961, %v33
    %v978 = vadd.f32 %v962, %v34
    %v979 = vadd.f32 %v963, %v35
    %v980 = vadd.f32 %v964, %v36
    %v981 = vadd.f32 %v965, %v37
    %v982 = vadd.f32 %v966, %v38
    %v983 = vadd.f32 %v967, %v39
    %v984 = vadd.f32 %v968, %v40
    %v985 = vadd.f32 %v969, %v41
    %v986 = vadd.f32 %v970, %v42
    %v987 = vadd.f32 %v971, %v43
    %v988 = vadd.f32 %v972, %v44
    %v989 = vadd.f32 %v973, %v45
    %v990 = vadd.f32 %v974, %v46
    %v991 = vadd.f32 %v975, %v47
    %v992 = vadd.f32 %v976, %v48
    %s993 = sld [smem:[#allocation2 + $0x1]]
    %v994 = vmul.f32 %v977, %v977
    %v995 = vmul.f32 %v978, %v978
    %v996 = vmul.f32 %v979, %v979
    %v997 = vmul.f32 %v980, %v980
    %v998 = vmul.f32 %v981, %v981
    %v999 = vmul.f32 %v982, %v982
    %v1000 = vmul.f32 %v983, %v983
    %v1001 = vmul.f32 %v984, %v984
    %v1002 = vmul.f32 %v985, %v985
    %v1003 = vmul.f32 %v986, %v986
    %v1004 = vmul.f32 %v987, %v987
    %v1005 = vmul.f32 %v988, %v988
    %v1006 = vmul.f32 %v989, %v989
    %v1007 = vmul.f32 %v990, %v990
    %v1008 = vmul.f32 %v991, %v991
    %v1009 = vmul.f32 %v992, %v992
    %v1010 = vadd.f32 %v994, %v1002
    %v1011 = vadd.f32 %v995, %v1003
    %v1012 = vadd.f32 %v996, %v1004
    %v1013 = vadd.f32 %v997, %v1005
    %v1014 = vadd.f32 %v998, %v1006
    %v1015 = vadd.f32 %v999, %v1007
    %v1016 = vadd.f32 %v1000, %v1008
    %v1017 = vadd.f32 %v1001, %v1009
    %vm1018 = vcmp.gt.f32.partialorder %v1010, 0.0
    %vm1019 = vcmp.gt.f32.partialorder %v1011, 0.0
    %vm1020 = vcmp.gt.f32.partialorder %v1012, 0.0
    %vm1021 = vcmp.gt.f32.partialorder %v1013, 0.0
    %vm1022 = vcmp.gt.f32.partialorder %v1014, 0.0
    %vm1023 = vcmp.gt.f32.partialorder %v1015, 0.0
    %vm1024 = vcmp.gt.f32.partialorder %v1016, 0.0
    %vm1025 = vcmp.gt.f32.partialorder %v1017, 0.0
    %v1026 = vrsqrt.pop %v1010
    %v1027 = vrsqrt.pop %v1011
    %v1028 = vrsqrt.pop %v1012
    %v1029 = vrsqrt.pop %v1013
    %v1030 = vrsqrt.pop %v1014
    %v1031 = vrsqrt.pop %v1015
    %v1032 = vrsqrt.pop %v1016
    %v1033 = vrsqrt.pop %v1017
    %v1034 = vsel %vm1018, %v1026, 0.0
    %v1035 = vsel %vm1019, %v1027, 0.0
    %v1036 = vsel %vm1020, %v1028, 0.0
    %v1037 = vsel %vm1021, %v1029, 0.0
    %v1038 = vsel %vm1022, %v1030, 0.0
    %v1039 = vsel %vm1023, %v1031, 0.0
    %v1040 = vsel %vm1024, %v1032, 0.0
    %v1041 = vsel %vm1025, %v1033, 0.0
    %v1042 = vstv %s993
    %v1043 = vmul.f32 %v1042, %v1034
    %v1044 = vmul.f32 %v1042, %v1035
    %v1045 = vmul.f32 %v1042, %v1036
    %v1046 = vmul.f32 %v1042, %v1037
    %v1047 = vmul.f32 %v1042, %v1038
    %v1048 = vmul.f32 %v1042, %v1039
    %v1049 = vmul.f32 %v1042, %v1040
    %v1050 = vmul.f32 %v1042, %v1041
    %v1051 = vsub.f32 1.0, %v1043
    %v1052 = vsub.f32 1.0, %v1044
    %v1053 = vsub.f32 1.0, %v1045
    %v1054 = vsub.f32 1.0, %v1046
    %v1055 = vsub.f32 1.0, %v1047
    %v1056 = vsub.f32 1.0, %v1048
    %v1057 = vsub.f32 1.0, %v1049
    %v1058 = vsub.f32 1.0, %v1050
    %v1059 = vmax.f32 %v1051, 0.0
    %v1060 = vmax.f32 %v1052, 0.0
    %v1061 = vmax.f32 %v1053, 0.0
    %v1062 = vmax.f32 %v1054, 0.0
    %v1063 = vmax.f32 %v1055, 0.0
    %v1064 = vmax.f32 %v1056, 0.0
    %v1065 = vmax.f32 %v1057, 0.0
    %v1066 = vmax.f32 %v1058, 0.0
    %v1067 = vmul.f32 %v977, %v1059
    %v1068 = vmul.f32 %v978, %v1060
    %v1069 = vmul.f32 %v979, %v1061
    %v1070 = vmul.f32 %v980, %v1062
    %v1071 = vmul.f32 %v981, %v1063
    %v1072 = vmul.f32 %v982, %v1064
    %v1073 = vmul.f32 %v983, %v1065
    %v1074 = vmul.f32 %v984, %v1066
    %v1075 = vmul.f32 %v985, %v1059
    %v1076 = vmul.f32 %v986, %v1060
    %v1077 = vmul.f32 %v987, %v1061
    %v1078 = vmul.f32 %v988, %v1062
    %v1079 = vmul.f32 %v989, %v1063
    %v1080 = vmul.f32 %v990, %v1064
    %v1081 = vmul.f32 %v991, %v1065
    %v1082 = vmul.f32 %v992, %v1066
    %s1083 = scalar_lea.vmem %s1, 128
    %v1084 = vld [vmem:[%s1083] sm:$0xff]
    %v1085 = vld [vmem:[%s1083 + $0x8] sm:$0xff]
    %v1086 = vld [vmem:[%s1083 + $0x10] sm:$0xff]
    %v1087 = vld [vmem:[%s1083 + $0x18] sm:$0xff]
    %v1088 = vld [vmem:[%s1083 + $0x20] sm:$0xff]
    %v1089 = vld [vmem:[%s1083 + $0x28] sm:$0xff]
    %v1090 = vld [vmem:[%s1083 + $0x30] sm:$0xff]
    %v1091 = vld [vmem:[%s1083 + $0x38] sm:$0xff]
    %v1093 = vsel %vm57, %v1084, 0
    %v1096 = vsel %vm57, %v1085, 0
    %v1099 = vsel %vm57, %v1086, 0
    %v1102 = vsel %vm57, %v1087, 0
    %v1105 = vsel %vm57, %v1088, 0
    %v1108 = vsel %vm57, %v1089, 0
    %v1111 = vsel %vm57, %v1090, 0
    %v1114 = vsel %vm57, %v1091, 0
    %1116 = vmatprep.subr.mxu0 %v1068
    %1117 = vmatpush1.msra.mxu0 %v1067
    %1118 = vmatprep.subr.mxu0 %v1070
    %1119 = vmatpush1.msra.mxu0 %v1069
    %1120 = vmatprep.subr.mxu0 %v1072
    %1121 = vmatpush1.msra.mxu0 %v1071
    %1122 = vmatprep.subr.mxu0 %v1074
    %1123 = vmatpush1.msra.mxu0 %v1073
    %1124 = vmatprep.subr.mxu0 %v1076
    %1125 = vmatpush1.msra.mxu0 %v1075
    %1126 = vmatprep.subr.mxu0 %v1078
    %1127 = vmatpush1.msra.mxu0 %v1077
    %1128 = vmatprep.subr.mxu0 %v1080
    %1129 = vmatpush1.msra.mxu0 %v1079
    %1130 = vmatprep.subr.mxu0 %v1082
    %1131 = vmatpush1.msra.mxu0 %v1081
    %1132 = vmatprep.subr.mxu0 0.0
    %1133 = vmatpush1.msra.mxu0 0.0
    %1134 = vmatprep.subr.mxu0 0.0
    %1135 = vmatpush1.msra.mxu0 0.0
    %1136 = vmatprep.subr.mxu0 0.0
    %1137 = vmatpush1.msra.mxu0 0.0
    %1138 = vmatprep.subr.mxu0 0.0
    %1139 = vmatpush1.msra.mxu0 0.0
    %1140 = vmatprep.subr.mxu0 0.0
    %1141 = vmatpush1.msra.mxu0 0.0
    %1142 = vmatprep.subr.mxu0 0.0
    %1143 = vmatpush1.msra.mxu0 0.0
    %1144 = vmatprep.subr.mxu0 0.0
    %1145 = vmatpush1.msra.mxu0 0.0
    %1146 = vmatprep.subr.mxu0 0.0
    %1147 = vmatpush1.msra.mxu0 0.0
    %1148 = vmatprep.subr.mxu0 0.0
    %1149 = vmatpush1.msra.mxu0 0.0
    %1150 = vmatprep.subr.mxu0 0.0
    %1151 = vmatpush1.msra.mxu0 0.0
    %1152 = vmatprep.subr.mxu0 0.0
    %1153 = vmatpush1.msra.mxu0 0.0
    %1154 = vmatprep.subr.mxu0 0.0
    %1155 = vmatpush1.msra.mxu0 0.0
    %1156 = vmatprep.subr.mxu0 0.0
    %1157 = vmatpush1.msra.mxu0 0.0
    %1158 = vmatprep.subr.mxu0 0.0
    %1159 = vmatpush1.msra.mxu0 0.0
    %1160 = vmatprep.subr.mxu0 0.0
    %1161 = vmatpush1.msra.mxu0 0.0
    %1162 = vmatprep.subr.mxu0 0.0
    %1163 = vmatpush1.msra.mxu0 0.0
    %1164 = vmatprep.subr.mxu0 0.0
    %1165 = vmatpush1.msra.mxu0 0.0
    %1166 = vmatprep.subr.mxu0 0.0
    %1167 = vmatpush1.msra.mxu0 0.0
    %1168 = vmatprep.subr.mxu0 0.0
    %1169 = vmatpush1.msra.mxu0 0.0
    %1170 = vmatprep.subr.mxu0 0.0
    %1171 = vmatpush1.msra.mxu0 0.0
    %1172 = vmatprep.subr.mxu0 0.0
    %1173 = vmatpush1.msra.mxu0 0.0
    %1174 = vmatprep.subr.mxu0 0.0
    %1175 = vmatpush1.msra.mxu0 0.0
    %1176 = vmatprep.subr.mxu0 0.0
    %1177 = vmatpush1.msra.mxu0 0.0
    %1178 = vmatprep.subr.mxu0 0.0
    %1179 = vmatpush1.msra.mxu0 0.0
    %1180 = vmatprep.mubr.f32.mxu0 0.0
    %1181 = vmatmul.mubr.f32.gmra.mrb[0].mxu0 %v1093
    %v1182 = vpop.f32.mrb[0].mxu0
    %v1183 = vadd.f32 0.0, %v1182
    %v1184 = vpop.f32.mrb[0].mxu0
    %v1185 = vadd.f32 0.0, %v1184
    %1186 = vmatprep.mubr.f32.mxu0 0.0
    %1187 = vmatmul.mubr.f32.gmra.mrb[0].mxu0 %v1096
    %v1188 = vpop.f32.mrb[0].mxu0
    %v1189 = vadd.f32 0.0, %v1188
    %v1190 = vpop.f32.mrb[0].mxu0
    %v1191 = vadd.f32 0.0, %v1190
    %1192 = vmatprep.mubr.f32.mxu0 0.0
    %1193 = vmatmul.mubr.f32.gmra.mrb[0].mxu0 %v1099
    %v1194 = vpop.f32.mrb[0].mxu0
    %v1195 = vadd.f32 0.0, %v1194
    %v1196 = vpop.f32.mrb[0].mxu0
    %v1197 = vadd.f32 0.0, %v1196
    %1198 = vmatprep.mubr.f32.mxu0 0.0
    %1199 = vmatmul.mubr.f32.gmra.mrb[0].mxu0 %v1102
    %v1200 = vpop.f32.mrb[0].mxu0
    %v1201 = vadd.f32 0.0, %v1200
    %v1202 = vpop.f32.mrb[0].mxu0
    %v1203 = vadd.f32 0.0, %v1202
    %1204 = vmatprep.mubr.f32.mxu0 0.0
    %1205 = vmatmul.mubr.f32.gmra.mrb[0].mxu0 %v1105
    %v1206 = vpop.f32.mrb[0].mxu0
    %v1207 = vadd.f32 0.0, %v1206
    %v1208 = vpop.f32.mrb[0].mxu0
    %v1209 = vadd.f32 0.0, %v1208
    %1210 = vmatprep.mubr.f32.mxu0 0.0
    %1211 = vmatmul.mubr.f32.gmra.mrb[0].mxu0 %v1108
    %v1212 = vpop.f32.mrb[0].mxu0
    %v1213 = vadd.f32 0.0, %v1212
    %v1214 = vpop.f32.mrb[0].mxu0
    %v1215 = vadd.f32 0.0, %v1214
    %1216 = vmatprep.mubr.f32.mxu0 0.0
    %1217 = vmatmul.mubr.f32.gmra.mrb[0].mxu0 %v1111
    %v1218 = vpop.f32.mrb[0].mxu0
    %v1219 = vadd.f32 0.0, %v1218
    %v1220 = vpop.f32.mrb[0].mxu0
    %v1221 = vadd.f32 0.0, %v1220
    %1222 = vmatprep.mubr.f32.mxu0 0.0
    %1223 = vmatmul.mubr.f32.gmra.mrb[0].mxu0 %v1114
    %v1224 = vpop.f32.mrb[0].mxu0
    %v1225 = vadd.f32 0.0, %v1224
    %v1226 = vpop.f32.mrb[0].mxu0
    %v1227 = vadd.f32 0.0, %v1226
    %1228 = vdwg.mxu0
    %s1229 = scalar_lea.vmem %s2, 128
    %v1230 = vld [vmem:[%s1229] sm:$0xff]
    %v1231 = vld [vmem:[%s1229 + $0x8] sm:$0xff]
    %v1232 = vld [vmem:[%s1229 + $0x10] sm:$0xff]
    %v1233 = vld [vmem:[%s1229 + $0x18] sm:$0xff]
    %v1234 = vld [vmem:[%s1229 + $0x20] sm:$0xff]
    %v1235 = vld [vmem:[%s1229 + $0x28] sm:$0xff]
    %v1236 = vld [vmem:[%s1229 + $0x30] sm:$0xff]
    %v1237 = vld [vmem:[%s1229 + $0x38] sm:$0xff]
    %s1238 = scalar_lea.vmem %s3, 128
    %v1239 = vld [vmem:[%s1238] sm:$0xff]
    %v1240 = vld [vmem:[%s1238 + $0x8] sm:$0xff]
    %v1241 = vld [vmem:[%s1238 + $0x10] sm:$0xff]
    %v1242 = vld [vmem:[%s1238 + $0x18] sm:$0xff]
    %v1243 = vld [vmem:[%s1238 + $0x20] sm:$0xff]
    %v1244 = vld [vmem:[%s1238 + $0x28] sm:$0xff]
    %v1245 = vld [vmem:[%s1238 + $0x30] sm:$0xff]
    %v1246 = vld [vmem:[%s1238 + $0x38] sm:$0xff]
    %v1247 = vadd.f32 %v1183, %v1189
    %v1248 = vadd.f32 %v1247, %v1195
    %v1249 = vadd.f32 %v1248, %v1201
    %v1250 = vrot.slane %v1249, 4
    %v1251 = vadd.f32 %v1249, %v1250
    %v1252 = vrot.slane %v1251, 2
    %v1253 = vadd.f32 %v1251, %v1252
    %v1254 = vrot.slane %v1253, 1
    %v1255 = vadd.f32 %v1253, %v1254
    %v1256 = vadd.f32 %v1185, %v1191
    %v1257 = vadd.f32 %v1256, %v1197
    %v1258 = vadd.f32 %v1257, %v1203
    %v1259 = vrot.slane %v1258, 4
    %v1260 = vadd.f32 %v1258, %v1259
    %v1261 = vrot.slane %v1260, 2
    %v1262 = vadd.f32 %v1260, %v1261
    %v1263 = vrot.slane %v1262, 1
    %v1264 = vadd.f32 %v1262, %v1263
    %v1265 = vmul.f32 %v1183, %v1183
    %v1266 = vmul.f32 %v1185, %v1185
    %v1267 = vmul.f32 %v1189, %v1189
    %v1268 = vmul.f32 %v1191, %v1191
    %v1269 = vmul.f32 %v1195, %v1195
    %v1270 = vmul.f32 %v1197, %v1197
    %v1271 = vmul.f32 %v1201, %v1201
    %v1272 = vmul.f32 %v1203, %v1203
    %v1273 = vadd.f32 %v1265, %v1267
    %v1274 = vadd.f32 %v1273, %v1269
    %v1275 = vadd.f32 %v1274, %v1271
    %v1276 = vrot.slane %v1275, 4
    %v1277 = vadd.f32 %v1275, %v1276
    %v1278 = vrot.slane %v1277, 2
    %v1279 = vadd.f32 %v1277, %v1278
    %v1280 = vrot.slane %v1279, 1
    %v1281 = vadd.f32 %v1279, %v1280
    %v1282 = vadd.f32 %v1266, %v1268
    %v1283 = vadd.f32 %v1282, %v1270
    %v1284 = vadd.f32 %v1283, %v1272
    %v1285 = vrot.slane %v1284, 4
    %v1286 = vadd.f32 %v1284, %v1285
    %v1287 = vrot.slane %v1286, 2
    %v1288 = vadd.f32 %v1286, %v1287
    %v1289 = vrot.slane %v1288, 1
    %v1290 = vadd.f32 %v1288, %v1289
    %v1291 = vmul.f32 %v1255, 0.03125
    %v1292 = vmul.f32 %v1264, 0.03125
    %v1293 = vmul.f32 %v1281, 0.03125
    %v1294 = vmul.f32 %v1290, 0.03125
    %v1295 = vmul.f32 %v1291, %v1291
    %v1296 = vmul.f32 %v1292, %v1292
    %v1297 = vsub.f32 %v1293, %v1295
    %v1298 = vsub.f32 %v1294, %v1296
    %v1299 = vsub.f32 %v1183, %v1291
    %v1300 = vsub.f32 %v1185, %v1292
    %v1301 = vsub.f32 %v1189, %v1291
    %v1302 = vsub.f32 %v1191, %v1292
    %v1303 = vsub.f32 %v1195, %v1291
    %v1304 = vsub.f32 %v1197, %v1292
    %v1305 = vsub.f32 %v1201, %v1291
    %v1306 = vsub.f32 %v1203, %v1292
    %v1307 = vadd.f32 %v1297, 1e-05
    %v1308 = vadd.f32 %v1298, 1e-05
    %v1309 = vrsqrt.pop %v1307
    %v1310 = vrsqrt.pop %v1308
    %v1311 = vmul.f32 %v1299, %v1309
    %v1312 = vmul.f32 %v1300, %v1310
    %v1313 = vmul.f32 %v1301, %v1309
    %v1314 = vmul.f32 %v1302, %v1310
    %v1315 = vmul.f32 %v1303, %v1309
    %v1316 = vmul.f32 %v1304, %v1310
    %v1317 = vmul.f32 %v1305, %v1309
    %v1318 = vmul.f32 %v1306, %v1310
    %v1319 = vadd.f32 %v1207, %v1213
    %v1320 = vadd.f32 %v1319, %v1219
    %v1321 = vadd.f32 %v1320, %v1225
    %v1322 = vrot.slane %v1321, 4
    %v1323 = vadd.f32 %v1321, %v1322
    %v1324 = vrot.slane %v1323, 2
    %v1325 = vadd.f32 %v1323, %v1324
    %v1326 = vrot.slane %v1325, 1
    %v1327 = vadd.f32 %v1325, %v1326
    %v1328 = vadd.f32 %v1209, %v1215
    %v1329 = vadd.f32 %v1328, %v1221
    %v1330 = vadd.f32 %v1329, %v1227
    %v1331 = vrot.slane %v1330, 4
    %v1332 = vadd.f32 %v1330, %v1331
    %v1333 = vrot.slane %v1332, 2
    %v1334 = vadd.f32 %v1332, %v1333
    %v1335 = vrot.slane %v1334, 1
    %v1336 = vadd.f32 %v1334, %v1335
    %v1337 = vmul.f32 %v1207, %v1207
    %v1338 = vmul.f32 %v1209, %v1209
    %v1339 = vmul.f32 %v1213, %v1213
    %v1340 = vmul.f32 %v1215, %v1215
    %v1341 = vmul.f32 %v1219, %v1219
    %v1342 = vmul.f32 %v1221, %v1221
    %v1343 = vmul.f32 %v1225, %v1225
    %v1344 = vmul.f32 %v1227, %v1227
    %v1345 = vadd.f32 %v1337, %v1339
    %v1346 = vadd.f32 %v1345, %v1341
    %v1347 = vadd.f32 %v1346, %v1343
    %v1348 = vrot.slane %v1347, 4
    %v1349 = vadd.f32 %v1347, %v1348
    %v1350 = vrot.slane %v1349, 2
    %v1351 = vadd.f32 %v1349, %v1350
    %v1352 = vrot.slane %v1351, 1
    %v1353 = vadd.f32 %v1351, %v1352
    %v1354 = vadd.f32 %v1338, %v1340
    %v1355 = vadd.f32 %v1354, %v1342
    %v1356 = vadd.f32 %v1355, %v1344
    %v1357 = vrot.slane %v1356, 4
    %v1358 = vadd.f32 %v1356, %v1357
    %v1359 = vrot.slane %v1358, 2
    %v1360 = vadd.f32 %v1358, %v1359
    %v1361 = vrot.slane %v1360, 1
    %v1362 = vadd.f32 %v1360, %v1361
    %v1363 = vmul.f32 %v1327, 0.03125
    %v1364 = vmul.f32 %v1336, 0.03125
    %v1365 = vmul.f32 %v1353, 0.03125
    %v1366 = vmul.f32 %v1362, 0.03125
    %v1367 = vmul.f32 %v1363, %v1363
    %v1368 = vmul.f32 %v1364, %v1364
    %v1369 = vsub.f32 %v1365, %v1367
    %v1370 = vsub.f32 %v1366, %v1368
    %v1371 = vsub.f32 %v1207, %v1363
    %v1372 = vsub.f32 %v1209, %v1364
    %v1373 = vsub.f32 %v1213, %v1363
    %v1374 = vsub.f32 %v1215, %v1364
    %v1375 = vsub.f32 %v1219, %v1363
    %v1376 = vsub.f32 %v1221, %v1364
    %v1377 = vsub.f32 %v1225, %v1363
    %v1378 = vsub.f32 %v1227, %v1364
    %v1379 = vadd.f32 %v1369, 1e-05
    %v1380 = vadd.f32 %v1370, 1e-05
    %v1381 = vrsqrt.pop %v1379
    %v1382 = vrsqrt.pop %v1380
    %v1383 = vmul.f32 %v1371, %v1381
    %v1384 = vmul.f32 %v1372, %v1382
    %v1385 = vmul.f32 %v1373, %v1381
    %v1386 = vmul.f32 %v1374, %v1382
    %v1387 = vmul.f32 %v1375, %v1381
    %v1388 = vmul.f32 %v1376, %v1382
    %v1389 = vmul.f32 %v1377, %v1381
    %v1390 = vmul.f32 %v1378, %v1382
    %1392 = vset.pattern.permute.xlu0 0
    %1393 = vperm.xlu0 %1392, %v1230
    %v1394 = vpop.permute.xlu0 %1393
    %1397 = vset.pattern.permute.xlu0 0
    %1398 = vperm.xlu0 %1397, %v1231
    %v1399 = vpop.permute.xlu0 %1398
    %1402 = vset.pattern.permute.xlu0 0
    %1403 = vperm.xlu0 %1402, %v1232
    %v1404 = vpop.permute.xlu0 %1403
    %1407 = vset.pattern.permute.xlu0 0
    %1408 = vperm.xlu0 %1407, %v1233
    %v1409 = vpop.permute.xlu0 %1408
    %1412 = vset.pattern.permute.xlu0 0
    %1413 = vperm.xlu0 %1412, %v1234
    %v1414 = vpop.permute.xlu0 %1413
    %1417 = vset.pattern.permute.xlu0 0
    %1418 = vperm.xlu0 %1417, %v1235
    %v1419 = vpop.permute.xlu0 %1418
    %1422 = vset.pattern.permute.xlu0 0
    %1423 = vperm.xlu0 %1422, %v1236
    %v1424 = vpop.permute.xlu0 %1423
    %1427 = vset.pattern.permute.xlu0 0
    %1428 = vperm.xlu0 %1427, %v1237
    %v1429 = vpop.permute.xlu0 %1428
    %v1431 = vmul.f32 %v1311, %v1394
    %v1432 = vmul.f32 %v1312, %v1394
    %v1433 = vmul.f32 %v1313, %v1399
    %v1434 = vmul.f32 %v1314, %v1399
    %v1435 = vmul.f32 %v1315, %v1404
    %v1436 = vmul.f32 %v1316, %v1404
    %v1437 = vmul.f32 %v1317, %v1409
    %v1438 = vmul.f32 %v1318, %v1409
    %v1439 = vmul.f32 %v1383, %v1414
    %v1440 = vmul.f32 %v1384, %v1414
    %v1441 = vmul.f32 %v1385, %v1419
    %v1442 = vmul.f32 %v1386, %v1419
    %v1443 = vmul.f32 %v1387, %v1424
    %v1444 = vmul.f32 %v1388, %v1424
    %v1445 = vmul.f32 %v1389, %v1429
    %v1446 = vmul.f32 %v1390, %v1429
    %1448 = vset.pattern.permute.xlu0 0
    %1449 = vperm.xlu0 %1448, %v1239
    %v1450 = vpop.permute.xlu0 %1449
    %1453 = vset.pattern.permute.xlu0 0
    %1454 = vperm.xlu0 %1453, %v1240
    %v1455 = vpop.permute.xlu0 %1454
    %1458 = vset.pattern.permute.xlu0 0
    %1459 = vperm.xlu0 %1458, %v1241
    %v1460 = vpop.permute.xlu0 %1459
    %1463 = vset.pattern.permute.xlu0 0
    %1464 = vperm.xlu0 %1463, %v1242
    %v1465 = vpop.permute.xlu0 %1464
    %1468 = vset.pattern.permute.xlu0 0
    %1469 = vperm.xlu0 %1468, %v1243
    %v1470 = vpop.permute.xlu0 %1469
    %1473 = vset.pattern.permute.xlu0 0
    %1474 = vperm.xlu0 %1473, %v1244
    %v1475 = vpop.permute.xlu0 %1474
    %1478 = vset.pattern.permute.xlu0 0
    %1479 = vperm.xlu0 %1478, %v1245
    %v1480 = vpop.permute.xlu0 %1479
    %1483 = vset.pattern.permute.xlu0 0
    %1484 = vperm.xlu0 %1483, %v1246
    %v1485 = vpop.permute.xlu0 %1484
    %v1487 = vadd.f32 %v1431, %v1450
    %v1488 = vadd.f32 %v1432, %v1450
    %v1489 = vadd.f32 %v1433, %v1455
    %v1490 = vadd.f32 %v1434, %v1455
    %v1491 = vadd.f32 %v1435, %v1460
    %v1492 = vadd.f32 %v1436, %v1460
    %v1493 = vadd.f32 %v1437, %v1465
    %v1494 = vadd.f32 %v1438, %v1465
    %v1495 = vadd.f32 %v1439, %v1470
    %v1496 = vadd.f32 %v1440, %v1470
    %v1497 = vadd.f32 %v1441, %v1475
    %v1498 = vadd.f32 %v1442, %v1475
    %v1499 = vadd.f32 %v1443, %v1480
    %v1500 = vadd.f32 %v1444, %v1480
    %v1501 = vadd.f32 %v1445, %v1485
    %v1502 = vadd.f32 %v1446, %v1485
    %s1503 = sld [smem:[#allocation2 + $0x2]]
    %v1504 = vmul.f32 %v1487, %v1487
    %v1505 = vmul.f32 %v1488, %v1488
    %v1506 = vmul.f32 %v1489, %v1489
    %v1507 = vmul.f32 %v1490, %v1490
    %v1508 = vmul.f32 %v1491, %v1491
    %v1509 = vmul.f32 %v1492, %v1492
    %v1510 = vmul.f32 %v1493, %v1493
    %v1511 = vmul.f32 %v1494, %v1494
    %v1512 = vmul.f32 %v1495, %v1495
    %v1513 = vmul.f32 %v1496, %v1496
    %v1514 = vmul.f32 %v1497, %v1497
    %v1515 = vmul.f32 %v1498, %v1498
    %v1516 = vmul.f32 %v1499, %v1499
    %v1517 = vmul.f32 %v1500, %v1500
    %v1518 = vmul.f32 %v1501, %v1501
    %v1519 = vmul.f32 %v1502, %v1502
    %v1520 = vadd.f32 %v1504, %v1512
    %v1521 = vadd.f32 %v1505, %v1513
    %v1522 = vadd.f32 %v1506, %v1514
    %v1523 = vadd.f32 %v1507, %v1515
    %v1524 = vadd.f32 %v1508, %v1516
    %v1525 = vadd.f32 %v1509, %v1517
    %v1526 = vadd.f32 %v1510, %v1518
    %v1527 = vadd.f32 %v1511, %v1519
    %vm1528 = vcmp.gt.f32.partialorder %v1520, 0.0
    %vm1529 = vcmp.gt.f32.partialorder %v1521, 0.0
    %vm1530 = vcmp.gt.f32.partialorder %v1522, 0.0
    %vm1531 = vcmp.gt.f32.partialorder %v1523, 0.0
    %vm1532 = vcmp.gt.f32.partialorder %v1524, 0.0
    %vm1533 = vcmp.gt.f32.partialorder %v1525, 0.0
    %vm1534 = vcmp.gt.f32.partialorder %v1526, 0.0
    %vm1535 = vcmp.gt.f32.partialorder %v1527, 0.0
    %v1536 = vrsqrt.pop %v1520
    %v1537 = vrsqrt.pop %v1521
    %v1538 = vrsqrt.pop %v1522
    %v1539 = vrsqrt.pop %v1523
    %v1540 = vrsqrt.pop %v1524
    %v1541 = vrsqrt.pop %v1525
    %v1542 = vrsqrt.pop %v1526
    %v1543 = vrsqrt.pop %v1527
    %v1544 = vsel %vm1528, %v1536, 0.0
    %v1545 = vsel %vm1529, %v1537, 0.0
    %v1546 = vsel %vm1530, %v1538, 0.0
    %v1547 = vsel %vm1531, %v1539, 0.0
    %v1548 = vsel %vm1532, %v1540, 0.0
    %v1549 = vsel %vm1533, %v1541, 0.0
    %v1550 = vsel %vm1534, %v1542, 0.0
    %v1551 = vsel %vm1535, %v1543, 0.0
    %v1552 = vstv %s1503
    %v1553 = vmul.f32 %v1552, %v1544
    %v1554 = vmul.f32 %v1552, %v1545
    %v1555 = vmul.f32 %v1552, %v1546
    %v1556 = vmul.f32 %v1552, %v1547
    %v1557 = vmul.f32 %v1552, %v1548
    %v1558 = vmul.f32 %v1552, %v1549
    %v1559 = vmul.f32 %v1552, %v1550
    %v1560 = vmul.f32 %v1552, %v1551
    %v1561 = vsub.f32 1.0, %v1553
    %v1562 = vsub.f32 1.0, %v1554
    %v1563 = vsub.f32 1.0, %v1555
    %v1564 = vsub.f32 1.0, %v1556
    %v1565 = vsub.f32 1.0, %v1557
    %v1566 = vsub.f32 1.0, %v1558
    %v1567 = vsub.f32 1.0, %v1559
    %v1568 = vsub.f32 1.0, %v1560
    %v1569 = vmax.f32 %v1561, 0.0
    %v1570 = vmax.f32 %v1562, 0.0
    %v1571 = vmax.f32 %v1563, 0.0
    %v1572 = vmax.f32 %v1564, 0.0
    %v1573 = vmax.f32 %v1565, 0.0
    %v1574 = vmax.f32 %v1566, 0.0
    %v1575 = vmax.f32 %v1567, 0.0
    %v1576 = vmax.f32 %v1568, 0.0
    %v1577 = vmul.f32 %v1487, %v1569
    %v1578 = vmul.f32 %v1488, %v1570
    %v1579 = vmul.f32 %v1489, %v1571
    %v1580 = vmul.f32 %v1490, %v1572
    %v1581 = vmul.f32 %v1491, %v1573
    %v1582 = vmul.f32 %v1492, %v1574
    %v1583 = vmul.f32 %v1493, %v1575
    %v1584 = vmul.f32 %v1494, %v1576
    %v1585 = vmul.f32 %v1495, %v1569
    %v1586 = vmul.f32 %v1496, %v1570
    %v1587 = vmul.f32 %v1497, %v1571
    %v1588 = vmul.f32 %v1498, %v1572
    %v1589 = vmul.f32 %v1499, %v1573
    %v1590 = vmul.f32 %v1500, %v1574
    %v1591 = vmul.f32 %v1501, %v1575
    %v1592 = vmul.f32 %v1502, %v1576
    %s1593 = scalar_lea.vmem %s1, 192
    %v1594 = vld [vmem:[%s1593] sm:$0xff]
    %v1595 = vld [vmem:[%s1593 + $0x8] sm:$0xff]
    %v1596 = vld [vmem:[%s1593 + $0x10] sm:$0xff]
    %v1597 = vld [vmem:[%s1593 + $0x18] sm:$0xff]
    %v1598 = vld [vmem:[%s1593 + $0x20] sm:$0xff]
    %v1599 = vld [vmem:[%s1593 + $0x28] sm:$0xff]
    %v1600 = vld [vmem:[%s1593 + $0x30] sm:$0xff]
    %v1601 = vld [vmem:[%s1593 + $0x38] sm:$0xff]
    %v1603 = vsel %vm57, %v1594, 0
    %v1606 = vsel %vm57, %v1595, 0
    %v1609 = vsel %vm57, %v1596, 0
    %v1612 = vsel %vm57, %v1597, 0
    %v1615 = vsel %vm57, %v1598, 0
    %v1618 = vsel %vm57, %v1599, 0
    %v1621 = vsel %vm57, %v1600, 0
    %v1624 = vsel %vm57, %v1601, 0
    %1626 = vmatprep.subr.mxu0 %v1578
    %1627 = vmatpush1.msra.mxu0 %v1577
    %1628 = vmatprep.subr.mxu0 %v1580
    %1629 = vmatpush1.msra.mxu0 %v1579
    %1630 = vmatprep.subr.mxu0 %v1582
    %1631 = vmatpush1.msra.mxu0 %v1581
    %1632 = vmatprep.subr.mxu0 %v1584
    %1633 = vmatpush1.msra.mxu0 %v1583
    %1634 = vmatprep.subr.mxu0 %v1586
    %1635 = vmatpush1.msra.mxu0 %v1585
    %1636 = vmatprep.subr.mxu0 %v1588
    %1637 = vmatpush1.msra.mxu0 %v1587
    %1638 = vmatprep.subr.mxu0 %v1590
    %1639 = vmatpush1.msra.mxu0 %v1589
    %1640 = vmatprep.subr.mxu0 %v1592
    %1641 = vmatpush1.msra.mxu0 %v1591
    %1642 = vmatprep.subr.mxu0 0.0
    %1643 = vmatpush1.msra.mxu0 0.0
    %1644 = vmatprep.subr.mxu0 0.0
    %1645 = vmatpush1.msra.mxu0 0.0
    %1646 = vmatprep.subr.mxu0 0.0
    %1647 = vmatpush1.msra.mxu0 0.0
    %1648 = vmatprep.subr.mxu0 0.0
    %1649 = vmatpush1.msra.mxu0 0.0
    %1650 = vmatprep.subr.mxu0 0.0
    %1651 = vmatpush1.msra.mxu0 0.0
    %1652 = vmatprep.subr.mxu0 0.0
    %1653 = vmatpush1.msra.mxu0 0.0
    %1654 = vmatprep.subr.mxu0 0.0
    %1655 = vmatpush1.msra.mxu0 0.0
    %1656 = vmatprep.subr.mxu0 0.0
    %1657 = vmatpush1.msra.mxu0 0.0
    %1658 = vmatprep.subr.mxu0 0.0
    %1659 = vmatpush1.msra.mxu0 0.0
    %1660 = vmatprep.subr.mxu0 0.0
    %1661 = vmatpush1.msra.mxu0 0.0
    %1662 = vmatprep.subr.mxu0 0.0
    %1663 = vmatpush1.msra.mxu0 0.0
    %1664 = vmatprep.subr.mxu0 0.0
    %1665 = vmatpush1.msra.mxu0 0.0
    %1666 = vmatprep.subr.mxu0 0.0
    %1667 = vmatpush1.msra.mxu0 0.0
    %1668 = vmatprep.subr.mxu0 0.0
    %1669 = vmatpush1.msra.mxu0 0.0
    %1670 = vmatprep.subr.mxu0 0.0
    %1671 = vmatpush1.msra.mxu0 0.0
    %1672 = vmatprep.subr.mxu0 0.0
    %1673 = vmatpush1.msra.mxu0 0.0
    %1674 = vmatprep.subr.mxu0 0.0
    %1675 = vmatpush1.msra.mxu0 0.0
    %1676 = vmatprep.subr.mxu0 0.0
    %1677 = vmatpush1.msra.mxu0 0.0
    %1678 = vmatprep.subr.mxu0 0.0
    %1679 = vmatpush1.msra.mxu0 0.0
    %1680 = vmatprep.subr.mxu0 0.0
    %1681 = vmatpush1.msra.mxu0 0.0
    %1682 = vmatprep.subr.mxu0 0.0
    %1683 = vmatpush1.msra.mxu0 0.0
    %1684 = vmatprep.subr.mxu0 0.0
    %1685 = vmatpush1.msra.mxu0 0.0
    %1686 = vmatprep.subr.mxu0 0.0
    %1687 = vmatpush1.msra.mxu0 0.0
    %1688 = vmatprep.subr.mxu0 0.0
    %1689 = vmatpush1.msra.mxu0 0.0
    %1690 = vmatprep.mubr.f32.mxu0 0.0
    %1691 = vmatmul.mubr.f32.gmra.mrb[0].mxu0 %v1603
    %v1692 = vpop.f32.mrb[0].mxu0
    %v1693 = vadd.f32 0.0, %v1692
    %v1694 = vpop.f32.mrb[0].mxu0
    %v1695 = vadd.f32 0.0, %v1694
    %1696 = vmatprep.mubr.f32.mxu0 0.0
    %1697 = vmatmul.mubr.f32.gmra.mrb[0].mxu0 %v1606
    %v1698 = vpop.f32.mrb[0].mxu0
    %v1699 = vadd.f32 0.0, %v1698
    %v1700 = vpop.f32.mrb[0].mxu0
    %v1701 = vadd.f32 0.0, %v1700
    %1702 = vmatprep.mubr.f32.mxu0 0.0
    %1703 = vmatmul.mubr.f32.gmra.mrb[0].mxu0 %v1609
    %v1704 = vpop.f32.mrb[0].mxu0
    %v1705 = vadd.f32 0.0, %v1704
    %v1706 = vpop.f32.mrb[0].mxu0
    %v1707 = vadd.f32 0.0, %v1706
    %1708 = vmatprep.mubr.f32.mxu0 0.0
    %1709 = vmatmul.mubr.f32.gmra.mrb[0].mxu0 %v1612
    %v1710 = vpop.f32.mrb[0].mxu0
    %v1711 = vadd.f32 0.0, %v1710
    %v1712 = vpop.f32.mrb[0].mxu0
    %v1713 = vadd.f32 0.0, %v1712
    %1714 = vmatprep.mubr.f32.mxu0 0.0
    %1715 = vmatmul.mubr.f32.gmra.mrb[0].mxu0 %v1615
    %v1716 = vpop.f32.mrb[0].mxu0
    %v1717 = vadd.f32 0.0, %v1716
    %v1718 = vpop.f32.mrb[0].mxu0
    %v1719 = vadd.f32 0.0, %v1718
    %1720 = vmatprep.mubr.f32.mxu0 0.0
    %1721 = vmatmul.mubr.f32.gmra.mrb[0].mxu0 %v1618
    %v1722 = vpop.f32.mrb[0].mxu0
    %v1723 = vadd.f32 0.0, %v1722
    %v1724 = vpop.f32.mrb[0].mxu0
    %v1725 = vadd.f32 0.0, %v1724
    %1726 = vmatprep.mubr.f32.mxu0 0.0
    %1727 = vmatmul.mubr.f32.gmra.mrb[0].mxu0 %v1621
    %v1728 = vpop.f32.mrb[0].mxu0
    %v1729 = vadd.f32 0.0, %v1728
    %v1730 = vpop.f32.mrb[0].mxu0
    %v1731 = vadd.f32 0.0, %v1730
    %1732 = vmatprep.mubr.f32.mxu0 0.0
    %1733 = vmatmul.mubr.f32.gmra.mrb[0].mxu0 %v1624
    %v1734 = vpop.f32.mrb[0].mxu0
    %v1735 = vadd.f32 0.0, %v1734
    %v1736 = vpop.f32.mrb[0].mxu0
    %v1737 = vadd.f32 0.0, %v1736
    %1738 = vdwg.mxu0
    %s1739 = scalar_lea.vmem %s2, 192
    %v1740 = vld [vmem:[%s1739] sm:$0xff]
    %v1741 = vld [vmem:[%s1739 + $0x8] sm:$0xff]
    %v1742 = vld [vmem:[%s1739 + $0x10] sm:$0xff]
    %v1743 = vld [vmem:[%s1739 + $0x18] sm:$0xff]
    %v1744 = vld [vmem:[%s1739 + $0x20] sm:$0xff]
    %v1745 = vld [vmem:[%s1739 + $0x28] sm:$0xff]
    %v1746 = vld [vmem:[%s1739 + $0x30] sm:$0xff]
    %v1747 = vld [vmem:[%s1739 + $0x38] sm:$0xff]
    %s1748 = scalar_lea.vmem %s3, 192
    %v1749 = vld [vmem:[%s1748] sm:$0xff]
    %v1750 = vld [vmem:[%s1748 + $0x8] sm:$0xff]
    %v1751 = vld [vmem:[%s1748 + $0x10] sm:$0xff]
    %v1752 = vld [vmem:[%s1748 + $0x18] sm:$0xff]
    %v1753 = vld [vmem:[%s1748 + $0x20] sm:$0xff]
    %v1754 = vld [vmem:[%s1748 + $0x28] sm:$0xff]
    %v1755 = vld [vmem:[%s1748 + $0x30] sm:$0xff]
    %v1756 = vld [vmem:[%s1748 + $0x38] sm:$0xff]
    %v1757 = vadd.f32 %v1693, %v1699
    %v1758 = vadd.f32 %v1757, %v1705
    %v1759 = vadd.f32 %v1758, %v1711
    %v1760 = vrot.slane %v1759, 4
    %v1761 = vadd.f32 %v1759, %v1760
    %v1762 = vrot.slane %v1761, 2
    %v1763 = vadd.f32 %v1761, %v1762
    %v1764 = vrot.slane %v1763, 1
    %v1765 = vadd.f32 %v1763, %v1764
    %v1766 = vadd.f32 %v1695, %v1701
    %v1767 = vadd.f32 %v1766, %v1707
    %v1768 = vadd.f32 %v1767, %v1713
    %v1769 = vrot.slane %v1768, 4
    %v1770 = vadd.f32 %v1768, %v1769
    %v1771 = vrot.slane %v1770, 2
    %v1772 = vadd.f32 %v1770, %v1771
    %v1773 = vrot.slane %v1772, 1
    %v1774 = vadd.f32 %v1772, %v1773
    %v1775 = vmul.f32 %v1693, %v1693
    %v1776 = vmul.f32 %v1695, %v1695
    %v1777 = vmul.f32 %v1699, %v1699
    %v1778 = vmul.f32 %v1701, %v1701
    %v1779 = vmul.f32 %v1705, %v1705
    %v1780 = vmul.f32 %v1707, %v1707
    %v1781 = vmul.f32 %v1711, %v1711
    %v1782 = vmul.f32 %v1713, %v1713
    %v1783 = vadd.f32 %v1775, %v1777
    %v1784 = vadd.f32 %v1783, %v1779
    %v1785 = vadd.f32 %v1784, %v1781
    %v1786 = vrot.slane %v1785, 4
    %v1787 = vadd.f32 %v1785, %v1786
    %v1788 = vrot.slane %v1787, 2
    %v1789 = vadd.f32 %v1787, %v1788
    %v1790 = vrot.slane %v1789, 1
    %v1791 = vadd.f32 %v1789, %v1790
    %v1792 = vadd.f32 %v1776, %v1778
    %v1793 = vadd.f32 %v1792, %v1780
    %v1794 = vadd.f32 %v1793, %v1782
    %v1795 = vrot.slane %v1794, 4
    %v1796 = vadd.f32 %v1794, %v1795
    %v1797 = vrot.slane %v1796, 2
    %v1798 = vadd.f32 %v1796, %v1797
    %v1799 = vrot.slane %v1798, 1
    %v1800 = vadd.f32 %v1798, %v1799
    %v1801 = vmul.f32 %v1765, 0.03125
    %v1802 = vmul.f32 %v1774, 0.03125
    %v1803 = vmul.f32 %v1791, 0.03125
    %v1804 = vmul.f32 %v1800, 0.03125
    %v1805 = vmul.f32 %v1801, %v1801
    %v1806 = vmul.f32 %v1802, %v1802
    %v1807 = vsub.f32 %v1803, %v1805
    %v1808 = vsub.f32 %v1804, %v1806
    %v1809 = vsub.f32 %v1693, %v1801
    %v1810 = vsub.f32 %v1695, %v1802
    %v1811 = vsub.f32 %v1699, %v1801
    %v1812 = vsub.f32 %v1701, %v1802
    %v1813 = vsub.f32 %v1705, %v1801
    %v1814 = vsub.f32 %v1707, %v1802
    %v1815 = vsub.f32 %v1711, %v1801
    %v1816 = vsub.f32 %v1713, %v1802
    %v1817 = vadd.f32 %v1807, 1e-05
    %v1818 = vadd.f32 %v1808, 1e-05
    %v1819 = vrsqrt.pop %v1817
    %v1820 = vrsqrt.pop %v1818
    %v1821 = vmul.f32 %v1809, %v1819
    %v1822 = vmul.f32 %v1810, %v1820
    %v1823 = vmul.f32 %v1811, %v1819
    %v1824 = vmul.f32 %v1812, %v1820
    %v1825 = vmul.f32 %v1813, %v1819
    %v1826 = vmul.f32 %v1814, %v1820
    %v1827 = vmul.f32 %v1815, %v1819
    %v1828 = vmul.f32 %v1816, %v1820
    %v1829 = vadd.f32 %v1717, %v1723
    %v1830 = vadd.f32 %v1829, %v1729
    %v1831 = vadd.f32 %v1830, %v1735
    %v1832 = vrot.slane %v1831, 4
    %v1833 = vadd.f32 %v1831, %v1832
    %v1834 = vrot.slane %v1833, 2
    %v1835 = vadd.f32 %v1833, %v1834
    %v1836 = vrot.slane %v1835, 1
    %v1837 = vadd.f32 %v1835, %v1836
    %v1838 = vadd.f32 %v1719, %v1725
    %v1839 = vadd.f32 %v1838, %v1731
    %v1840 = vadd.f32 %v1839, %v1737
    %v1841 = vrot.slane %v1840, 4
    %v1842 = vadd.f32 %v1840, %v1841
    %v1843 = vrot.slane %v1842, 2
    %v1844 = vadd.f32 %v1842, %v1843
    %v1845 = vrot.slane %v1844, 1
    %v1846 = vadd.f32 %v1844, %v1845
    %v1847 = vmul.f32 %v1717, %v1717
    %v1848 = vmul.f32 %v1719, %v1719
    %v1849 = vmul.f32 %v1723, %v1723
    %v1850 = vmul.f32 %v1725, %v1725
    %v1851 = vmul.f32 %v1729, %v1729
    %v1852 = vmul.f32 %v1731, %v1731
    %v1853 = vmul.f32 %v1735, %v1735
    %v1854 = vmul.f32 %v1737, %v1737
    %v1855 = vadd.f32 %v1847, %v1849
    %v1856 = vadd.f32 %v1855, %v1851
    %v1857 = vadd.f32 %v1856, %v1853
    %v1858 = vrot.slane %v1857, 4
    %v1859 = vadd.f32 %v1857, %v1858
    %v1860 = vrot.slane %v1859, 2
    %v1861 = vadd.f32 %v1859, %v1860
    %v1862 = vrot.slane %v1861, 1
    %v1863 = vadd.f32 %v1861, %v1862
    %v1864 = vadd.f32 %v1848, %v1850
    %v1865 = vadd.f32 %v1864, %v1852
    %v1866 = vadd.f32 %v1865, %v1854
    %v1867 = vrot.slane %v1866, 4
    %v1868 = vadd.f32 %v1866, %v1867
    %v1869 = vrot.slane %v1868, 2
    %v1870 = vadd.f32 %v1868, %v1869
    %v1871 = vrot.slane %v1870, 1
    %v1872 = vadd.f32 %v1870, %v1871
    %v1873 = vmul.f32 %v1837, 0.03125
    %v1874 = vmul.f32 %v1846, 0.03125
    %v1875 = vmul.f32 %v1863, 0.03125
    %v1876 = vmul.f32 %v1872, 0.03125
    %v1877 = vmul.f32 %v1873, %v1873
    %v1878 = vmul.f32 %v1874, %v1874
    %v1879 = vsub.f32 %v1875, %v1877
    %v1880 = vsub.f32 %v1876, %v1878
    %v1881 = vsub.f32 %v1717, %v1873
    %v1882 = vsub.f32 %v1719, %v1874
    %v1883 = vsub.f32 %v1723, %v1873
    %v1884 = vsub.f32 %v1725, %v1874
    %v1885 = vsub.f32 %v1729, %v1873
    %v1886 = vsub.f32 %v1731, %v1874
    %v1887 = vsub.f32 %v1735, %v1873
    %v1888 = vsub.f32 %v1737, %v1874
    %v1889 = vadd.f32 %v1879, 1e-05
    %v1890 = vadd.f32 %v1880, 1e-05
    %v1891 = vrsqrt.pop %v1889
    %v1892 = vrsqrt.pop %v1890
    %v1893 = vmul.f32 %v1881, %v1891
    %v1894 = vmul.f32 %v1882, %v1892
    %v1895 = vmul.f32 %v1883, %v1891
    %v1896 = vmul.f32 %v1884, %v1892
    %v1897 = vmul.f32 %v1885, %v1891
    %v1898 = vmul.f32 %v1886, %v1892
    %v1899 = vmul.f32 %v1887, %v1891
    %v1900 = vmul.f32 %v1888, %v1892
    %1902 = vset.pattern.permute.xlu0 0
    %1903 = vperm.xlu0 %1902, %v1740
    %v1904 = vpop.permute.xlu0 %1903
    %1907 = vset.pattern.permute.xlu0 0
    %1908 = vperm.xlu0 %1907, %v1741
    %v1909 = vpop.permute.xlu0 %1908
    %1912 = vset.pattern.permute.xlu0 0
    %1913 = vperm.xlu0 %1912, %v1742
    %v1914 = vpop.permute.xlu0 %1913
    %1917 = vset.pattern.permute.xlu0 0
    %1918 = vperm.xlu0 %1917, %v1743
    %v1919 = vpop.permute.xlu0 %1918
    %1922 = vset.pattern.permute.xlu0 0
    %1923 = vperm.xlu0 %1922, %v1744
    %v1924 = vpop.permute.xlu0 %1923
    %1927 = vset.pattern.permute.xlu0 0
    %1928 = vperm.xlu0 %1927, %v1745
    %v1929 = vpop.permute.xlu0 %1928
    %1932 = vset.pattern.permute.xlu0 0
    %1933 = vperm.xlu0 %1932, %v1746
    %v1934 = vpop.permute.xlu0 %1933
    %1937 = vset.pattern.permute.xlu0 0
    %1938 = vperm.xlu0 %1937, %v1747
    %v1939 = vpop.permute.xlu0 %1938
    %v1941 = vmul.f32 %v1821, %v1904
    %v1942 = vmul.f32 %v1822, %v1904
    %v1943 = vmul.f32 %v1823, %v1909
    %v1944 = vmul.f32 %v1824, %v1909
    %v1945 = vmul.f32 %v1825, %v1914
    %v1946 = vmul.f32 %v1826, %v1914
    %v1947 = vmul.f32 %v1827, %v1919
    %v1948 = vmul.f32 %v1828, %v1919
    %v1949 = vmul.f32 %v1893, %v1924
    %v1950 = vmul.f32 %v1894, %v1924
    %v1951 = vmul.f32 %v1895, %v1929
    %v1952 = vmul.f32 %v1896, %v1929
    %v1953 = vmul.f32 %v1897, %v1934
    %v1954 = vmul.f32 %v1898, %v1934
    %v1955 = vmul.f32 %v1899, %v1939
    %v1956 = vmul.f32 %v1900, %v1939
    %1958 = vset.pattern.permute.xlu0 0
    %1959 = vperm.xlu0 %1958, %v1749
    %v1960 = vpop.permute.xlu0 %1959
    %1963 = vset.pattern.permute.xlu0 0
    %1964 = vperm.xlu0 %1963, %v1750
    %v1965 = vpop.permute.xlu0 %1964
    %1968 = vset.pattern.permute.xlu0 0
    %1969 = vperm.xlu0 %1968, %v1751
    %v1970 = vpop.permute.xlu0 %1969
    %1973 = vset.pattern.permute.xlu0 0
    %1974 = vperm.xlu0 %1973, %v1752
    %v1975 = vpop.permute.xlu0 %1974
    %1978 = vset.pattern.permute.xlu0 0
    %1979 = vperm.xlu0 %1978, %v1753
    %v1980 = vpop.permute.xlu0 %1979
    %1983 = vset.pattern.permute.xlu0 0
    %1984 = vperm.xlu0 %1983, %v1754
    %v1985 = vpop.permute.xlu0 %1984
    %1988 = vset.pattern.permute.xlu0 0
    %1989 = vperm.xlu0 %1988, %v1755
    %v1990 = vpop.permute.xlu0 %1989
    %1993 = vset.pattern.permute.xlu0 0
    %1994 = vperm.xlu0 %1993, %v1756
    %v1995 = vpop.permute.xlu0 %1994
    %v1997 = vadd.f32 %v1941, %v1960
    %v1998 = vadd.f32 %v1942, %v1960
    %v1999 = vadd.f32 %v1943, %v1965
    %v2000 = vadd.f32 %v1944, %v1965
    %v2001 = vadd.f32 %v1945, %v1970
    %v2002 = vadd.f32 %v1946, %v1970
    %v2003 = vadd.f32 %v1947, %v1975
    %v2004 = vadd.f32 %v1948, %v1975
    %v2005 = vadd.f32 %v1949, %v1980
    %v2006 = vadd.f32 %v1950, %v1980
    %v2007 = vadd.f32 %v1951, %v1985
    %v2008 = vadd.f32 %v1952, %v1985
    %v2009 = vadd.f32 %v1953, %v1990
    %v2010 = vadd.f32 %v1954, %v1990
    %v2011 = vadd.f32 %v1955, %v1995
    %v2012 = vadd.f32 %v1956, %v1995
    %v2013 = vadd.f32 %v1997, %v1067
    %v2014 = vadd.f32 %v1998, %v1068
    %v2015 = vadd.f32 %v1999, %v1069
    %v2016 = vadd.f32 %v2000, %v1070
    %v2017 = vadd.f32 %v2001, %v1071
    %v2018 = vadd.f32 %v2002, %v1072
    %v2019 = vadd.f32 %v2003, %v1073
    %v2020 = vadd.f32 %v2004, %v1074
    %v2021 = vadd.f32 %v2005, %v1075
    %v2022 = vadd.f32 %v2006, %v1076
    %v2023 = vadd.f32 %v2007, %v1077
    %v2024 = vadd.f32 %v2008, %v1078
    %v2025 = vadd.f32 %v2009, %v1079
    %v2026 = vadd.f32 %v2010, %v1080
    %v2027 = vadd.f32 %v2011, %v1081
    %v2028 = vadd.f32 %v2012, %v1082
    %s2029 = sld [smem:[#allocation2 + $0x3]]
    %v2030 = vmul.f32 %v2013, %v2013
    %v2031 = vmul.f32 %v2014, %v2014
    %v2032 = vmul.f32 %v2015, %v2015
    %v2033 = vmul.f32 %v2016, %v2016
    %v2034 = vmul.f32 %v2017, %v2017
    %v2035 = vmul.f32 %v2018, %v2018
    %v2036 = vmul.f32 %v2019, %v2019
    %v2037 = vmul.f32 %v2020, %v2020
    %v2038 = vmul.f32 %v2021, %v2021
    %v2039 = vmul.f32 %v2022, %v2022
    %v2040 = vmul.f32 %v2023, %v2023
    %v2041 = vmul.f32 %v2024, %v2024
    %v2042 = vmul.f32 %v2025, %v2025
    %v2043 = vmul.f32 %v2026, %v2026
    %v2044 = vmul.f32 %v2027, %v2027
    %v2045 = vmul.f32 %v2028, %v2028
    %v2046 = vadd.f32 %v2030, %v2038
    %v2047 = vadd.f32 %v2031, %v2039
    %v2048 = vadd.f32 %v2032, %v2040
    %v2049 = vadd.f32 %v2033, %v2041
    %v2050 = vadd.f32 %v2034, %v2042
    %v2051 = vadd.f32 %v2035, %v2043
    %v2052 = vadd.f32 %v2036, %v2044
    %v2053 = vadd.f32 %v2037, %v2045
    %vm2054 = vcmp.gt.f32.partialorder %v2046, 0.0
    %vm2055 = vcmp.gt.f32.partialorder %v2047, 0.0
    %vm2056 = vcmp.gt.f32.partialorder %v2048, 0.0
    %vm2057 = vcmp.gt.f32.partialorder %v2049, 0.0
    %vm2058 = vcmp.gt.f32.partialorder %v2050, 0.0
    %vm2059 = vcmp.gt.f32.partialorder %v2051, 0.0
    %vm2060 = vcmp.gt.f32.partialorder %v2052, 0.0
    %vm2061 = vcmp.gt.f32.partialorder %v2053, 0.0
    %v2062 = vrsqrt.pop %v2046
    %v2063 = vrsqrt.pop %v2047
    %v2064 = vrsqrt.pop %v2048
    %v2065 = vrsqrt.pop %v2049
    %v2066 = vrsqrt.pop %v2050
    %v2067 = vrsqrt.pop %v2051
    %v2068 = vrsqrt.pop %v2052
    %v2069 = vrsqrt.pop %v2053
    %v2070 = vsel %vm2054, %v2062, 0.0
    %v2071 = vsel %vm2055, %v2063, 0.0
    %v2072 = vsel %vm2056, %v2064, 0.0
    %v2073 = vsel %vm2057, %v2065, 0.0
    %v2074 = vsel %vm2058, %v2066, 0.0
    %v2075 = vsel %vm2059, %v2067, 0.0
    %v2076 = vsel %vm2060, %v2068, 0.0
    %v2077 = vsel %vm2061, %v2069, 0.0
    %v2078 = vstv %s2029
    %v2079 = vmul.f32 %v2078, %v2070
    %v2080 = vmul.f32 %v2078, %v2071
    %v2081 = vmul.f32 %v2078, %v2072
    %v2082 = vmul.f32 %v2078, %v2073
    %v2083 = vmul.f32 %v2078, %v2074
    %v2084 = vmul.f32 %v2078, %v2075
    %v2085 = vmul.f32 %v2078, %v2076
    %v2086 = vmul.f32 %v2078, %v2077
    %v2087 = vsub.f32 1.0, %v2079
    %v2088 = vsub.f32 1.0, %v2080
    %v2089 = vsub.f32 1.0, %v2081
    %v2090 = vsub.f32 1.0, %v2082
    %v2091 = vsub.f32 1.0, %v2083
    %v2092 = vsub.f32 1.0, %v2084
    %v2093 = vsub.f32 1.0, %v2085
    %v2094 = vsub.f32 1.0, %v2086
    %v2095 = vmax.f32 %v2087, 0.0
    %v2096 = vmax.f32 %v2088, 0.0
    %v2097 = vmax.f32 %v2089, 0.0
    %v2098 = vmax.f32 %v2090, 0.0
    %v2099 = vmax.f32 %v2091, 0.0
    %v2100 = vmax.f32 %v2092, 0.0
    %v2101 = vmax.f32 %v2093, 0.0
    %v2102 = vmax.f32 %v2094, 0.0
    %v2103 = vmul.f32 %v2013, %v2095
    %v2104 = vmul.f32 %v2014, %v2096
    %v2105 = vmul.f32 %v2015, %v2097
    %v2106 = vmul.f32 %v2016, %v2098
    %v2107 = vmul.f32 %v2017, %v2099
    %v2108 = vmul.f32 %v2018, %v2100
    %v2109 = vmul.f32 %v2019, %v2101
    %v2110 = vmul.f32 %v2020, %v2102
    %v2111 = vmul.f32 %v2021, %v2095
    %v2112 = vmul.f32 %v2022, %v2096
    %v2113 = vmul.f32 %v2023, %v2097
    %v2114 = vmul.f32 %v2024, %v2098
    %v2115 = vmul.f32 %v2025, %v2099
    %v2116 = vmul.f32 %v2026, %v2100
    %v2117 = vmul.f32 %v2027, %v2101
    %v2118 = vmul.f32 %v2028, %v2102
    %s2119 = scalar_lea.vmem %s1, 256
    %v2120 = vld [vmem:[%s2119] sm:$0xff]
    %v2121 = vld [vmem:[%s2119 + $0x8] sm:$0xff]
    %v2122 = vld [vmem:[%s2119 + $0x10] sm:$0xff]
    %v2123 = vld [vmem:[%s2119 + $0x18] sm:$0xff]
    %v2124 = vld [vmem:[%s2119 + $0x20] sm:$0xff]
    %v2125 = vld [vmem:[%s2119 + $0x28] sm:$0xff]
    %v2126 = vld [vmem:[%s2119 + $0x30] sm:$0xff]
    %v2127 = vld [vmem:[%s2119 + $0x38] sm:$0xff]
    %v2129 = vsel %vm57, %v2120, 0
    %v2132 = vsel %vm57, %v2121, 0
    %v2135 = vsel %vm57, %v2122, 0
    %v2138 = vsel %vm57, %v2123, 0
    %v2141 = vsel %vm57, %v2124, 0
    %v2144 = vsel %vm57, %v2125, 0
    %v2147 = vsel %vm57, %v2126, 0
    %v2150 = vsel %vm57, %v2127, 0
    %2152 = vmatprep.subr.mxu0 %v2104
    %2153 = vmatpush1.msra.mxu0 %v2103
    %2154 = vmatprep.subr.mxu0 %v2106
    %2155 = vmatpush1.msra.mxu0 %v2105
    %2156 = vmatprep.subr.mxu0 %v2108
    %2157 = vmatpush1.msra.mxu0 %v2107
    %2158 = vmatprep.subr.mxu0 %v2110
    %2159 = vmatpush1.msra.mxu0 %v2109
    %2160 = vmatprep.subr.mxu0 %v2112
    %2161 = vmatpush1.msra.mxu0 %v2111
    %2162 = vmatprep.subr.mxu0 %v2114
    %2163 = vmatpush1.msra.mxu0 %v2113
    %2164 = vmatprep.subr.mxu0 %v2116
    %2165 = vmatpush1.msra.mxu0 %v2115
    %2166 = vmatprep.subr.mxu0 %v2118
    %2167 = vmatpush1.msra.mxu0 %v2117
    %2168 = vmatprep.subr.mxu0 0.0
    %2169 = vmatpush1.msra.mxu0 0.0
    %2170 = vmatprep.subr.mxu0 0.0
    %2171 = vmatpush1.msra.mxu0 0.0
    %2172 = vmatprep.subr.mxu0 0.0
    %2173 = vmatpush1.msra.mxu0 0.0
    %2174 = vmatprep.subr.mxu0 0.0
    %2175 = vmatpush1.msra.mxu0 0.0
    %2176 = vmatprep.subr.mxu0 0.0
    %2177 = vmatpush1.msra.mxu0 0.0
    %2178 = vmatprep.subr.mxu0 0.0
    %2179 = vmatpush1.msra.mxu0 0.0
    %2180 = vmatprep.subr.mxu0 0.0
    %2181 = vmatpush1.msra.mxu0 0.0
    %2182 = vmatprep.subr.mxu0 0.0
    %2183 = vmatpush1.msra.mxu0 0.0
    %2184 = vmatprep.subr.mxu0 0.0
    %2185 = vmatpush1.msra.mxu0 0.0
    %2186 = vmatprep.subr.mxu0 0.0
    %2187 = vmatpush1.msra.mxu0 0.0
    %2188 = vmatprep.subr.mxu0 0.0
    %2189 = vmatpush1.msra.mxu0 0.0
    %2190 = vmatprep.subr.mxu0 0.0
    %2191 = vmatpush1.msra.mxu0 0.0
    %2192 = vmatprep.subr.mxu0 0.0
    %2193 = vmatpush1.msra.mxu0 0.0
    %2194 = vmatprep.subr.mxu0 0.0
    %2195 = vmatpush1.msra.mxu0 0.0
    %2196 = vmatprep.subr.mxu0 0.0
    %2197 = vmatpush1.msra.mxu0 0.0
    %2198 = vmatprep.subr.mxu0 0.0
    %2199 = vmatpush1.msra.mxu0 0.0
    %2200 = vmatprep.subr.mxu0 0.0
    %2201 = vmatpush1.msra.mxu0 0.0
    %2202 = vmatprep.subr.mxu0 0.0
    %2203 = vmatpush1.msra.mxu0 0.0
    %2204 = vmatprep.subr.mxu0 0.0
    %2205 = vmatpush1.msra.mxu0 0.0
    %2206 = vmatprep.subr.mxu0 0.0
    %2207 = vmatpush1.msra.mxu0 0.0
    %2208 = vmatprep.subr.mxu0 0.0
    %2209 = vmatpush1.msra.mxu0 0.0
    %2210 = vmatprep.subr.mxu0 0.0
    %2211 = vmatpush1.msra.mxu0 0.0
    %2212 = vmatprep.subr.mxu0 0.0
    %2213 = vmatpush1.msra.mxu0 0.0
    %2214 = vmatprep.subr.mxu0 0.0
    %2215 = vmatpush1.msra.mxu0 0.0
    %2216 = vmatprep.mubr.f32.mxu0 0.0
    %2217 = vmatmul.mubr.f32.gmra.mrb[0].mxu0 %v2129
    %v2218 = vpop.f32.mrb[0].mxu0
    %v2219 = vadd.f32 0.0, %v2218
    %v2220 = vpop.f32.mrb[0].mxu0
    %v2221 = vadd.f32 0.0, %v2220
    %2222 = vmatprep.mubr.f32.mxu0 0.0
    %2223 = vmatmul.mubr.f32.gmra.mrb[0].mxu0 %v2132
    %v2224 = vpop.f32.mrb[0].mxu0
    %v2225 = vadd.f32 0.0, %v2224
    %v2226 = vpop.f32.mrb[0].mxu0
    %v2227 = vadd.f32 0.0, %v2226
    %2228 = vmatprep.mubr.f32.mxu0 0.0
    %2229 = vmatmul.mubr.f32.gmra.mrb[0].mxu0 %v2135
    %v2230 = vpop.f32.mrb[0].mxu0
    %v2231 = vadd.f32 0.0, %v2230
    %v2232 = vpop.f32.mrb[0].mxu0
    %v2233 = vadd.f32 0.0, %v2232
    %2234 = vmatprep.mubr.f32.mxu0 0.0
    %2235 = vmatmul.mubr.f32.gmra.mrb[0].mxu0 %v2138
    %v2236 = vpop.f32.mrb[0].mxu0
    %v2237 = vadd.f32 0.0, %v2236
    %v2238 = vpop.f32.mrb[0].mxu0
    %v2239 = vadd.f32 0.0, %v2238
    %2240 = vmatprep.mubr.f32.mxu0 0.0
    %2241 = vmatmul.mubr.f32.gmra.mrb[0].mxu0 %v2141
    %v2242 = vpop.f32.mrb[0].mxu0
    %v2243 = vadd.f32 0.0, %v2242
    %v2244 = vpop.f32.mrb[0].mxu0
    %v2245 = vadd.f32 0.0, %v2244
    %2246 = vmatprep.mubr.f32.mxu0 0.0
    %2247 = vmatmul.mubr.f32.gmra.mrb[0].mxu0 %v2144
    %v2248 = vpop.f32.mrb[0].mxu0
    %v2249 = vadd.f32 0.0, %v2248
    %v2250 = vpop.f32.mrb[0].mxu0
    %v2251 = vadd.f32 0.0, %v2250
    %2252 = vmatprep.mubr.f32.mxu0 0.0
    %2253 = vmatmul.mubr.f32.gmra.mrb[0].mxu0 %v2147
    %v2254 = vpop.f32.mrb[0].mxu0
    %v2255 = vadd.f32 0.0, %v2254
    %v2256 = vpop.f32.mrb[0].mxu0
    %v2257 = vadd.f32 0.0, %v2256
    %2258 = vmatprep.mubr.f32.mxu0 0.0
    %2259 = vmatmul.mubr.f32.gmra.mrb[0].mxu0 %v2150
    %v2260 = vpop.f32.mrb[0].mxu0
    %v2261 = vadd.f32 0.0, %v2260
    %v2262 = vpop.f32.mrb[0].mxu0
    %v2263 = vadd.f32 0.0, %v2262
    %2264 = vdwg.mxu0
    %s2265 = scalar_lea.vmem %s2, 256
    %v2266 = vld [vmem:[%s2265] sm:$0xff]
    %v2267 = vld [vmem:[%s2265 + $0x8] sm:$0xff]
    %v2268 = vld [vmem:[%s2265 + $0x10] sm:$0xff]
    %v2269 = vld [vmem:[%s2265 + $0x18] sm:$0xff]
    %v2270 = vld [vmem:[%s2265 + $0x20] sm:$0xff]
    %v2271 = vld [vmem:[%s2265 + $0x28] sm:$0xff]
    %v2272 = vld [vmem:[%s2265 + $0x30] sm:$0xff]
    %v2273 = vld [vmem:[%s2265 + $0x38] sm:$0xff]
    %s2274 = scalar_lea.vmem %s3, 256
    %v2275 = vld [vmem:[%s2274] sm:$0xff]
    %v2276 = vld [vmem:[%s2274 + $0x8] sm:$0xff]
    %v2277 = vld [vmem:[%s2274 + $0x10] sm:$0xff]
    %v2278 = vld [vmem:[%s2274 + $0x18] sm:$0xff]
    %v2279 = vld [vmem:[%s2274 + $0x20] sm:$0xff]
    %v2280 = vld [vmem:[%s2274 + $0x28] sm:$0xff]
    %v2281 = vld [vmem:[%s2274 + $0x30] sm:$0xff]
    %v2282 = vld [vmem:[%s2274 + $0x38] sm:$0xff]
    %v2283 = vadd.f32 %v2219, %v2225
    %v2284 = vadd.f32 %v2283, %v2231
    %v2285 = vadd.f32 %v2284, %v2237
    %v2286 = vrot.slane %v2285, 4
    %v2287 = vadd.f32 %v2285, %v2286
    %v2288 = vrot.slane %v2287, 2
    %v2289 = vadd.f32 %v2287, %v2288
    %v2290 = vrot.slane %v2289, 1
    %v2291 = vadd.f32 %v2289, %v2290
    %v2292 = vadd.f32 %v2221, %v2227
    %v2293 = vadd.f32 %v2292, %v2233
    %v2294 = vadd.f32 %v2293, %v2239
    %v2295 = vrot.slane %v2294, 4
    %v2296 = vadd.f32 %v2294, %v2295
    %v2297 = vrot.slane %v2296, 2
    %v2298 = vadd.f32 %v2296, %v2297
    %v2299 = vrot.slane %v2298, 1
    %v2300 = vadd.f32 %v2298, %v2299
    %v2301 = vmul.f32 %v2219, %v2219
    %v2302 = vmul.f32 %v2221, %v2221
    %v2303 = vmul.f32 %v2225, %v2225
    %v2304 = vmul.f32 %v2227, %v2227
    %v2305 = vmul.f32 %v2231, %v2231
    %v2306 = vmul.f32 %v2233, %v2233
    %v2307 = vmul.f32 %v2237, %v2237
    %v2308 = vmul.f32 %v2239, %v2239
    %v2309 = vadd.f32 %v2301, %v2303
    %v2310 = vadd.f32 %v2309, %v2305
    %v2311 = vadd.f32 %v2310, %v2307
    %v2312 = vrot.slane %v2311, 4
    %v2313 = vadd.f32 %v2311, %v2312
    %v2314 = vrot.slane %v2313, 2
    %v2315 = vadd.f32 %v2313, %v2314
    %v2316 = vrot.slane %v2315, 1
    %v2317 = vadd.f32 %v2315, %v2316
    %v2318 = vadd.f32 %v2302, %v2304
    %v2319 = vadd.f32 %v2318, %v2306
    %v2320 = vadd.f32 %v2319, %v2308
    %v2321 = vrot.slane %v2320, 4
    %v2322 = vadd.f32 %v2320, %v2321
    %v2323 = vrot.slane %v2322, 2
    %v2324 = vadd.f32 %v2322, %v2323
    %v2325 = vrot.slane %v2324, 1
    %v2326 = vadd.f32 %v2324, %v2325
    %v2327 = vmul.f32 %v2291, 0.03125
    %v2328 = vmul.f32 %v2300, 0.03125
    %v2329 = vmul.f32 %v2317, 0.03125
    %v2330 = vmul.f32 %v2326, 0.03125
    %v2331 = vmul.f32 %v2327, %v2327
    %v2332 = vmul.f32 %v2328, %v2328
    %v2333 = vsub.f32 %v2329, %v2331
    %v2334 = vsub.f32 %v2330, %v2332
    %v2335 = vsub.f32 %v2219, %v2327
    %v2336 = vsub.f32 %v2221, %v2328
    %v2337 = vsub.f32 %v2225, %v2327
    %v2338 = vsub.f32 %v2227, %v2328
    %v2339 = vsub.f32 %v2231, %v2327
    %v2340 = vsub.f32 %v2233, %v2328
    %v2341 = vsub.f32 %v2237, %v2327
    %v2342 = vsub.f32 %v2239, %v2328
    %v2343 = vadd.f32 %v2333, 1e-05
    %v2344 = vadd.f32 %v2334, 1e-05
    %v2345 = vrsqrt.pop %v2343
    %v2346 = vrsqrt.pop %v2344
    %v2347 = vmul.f32 %v2335, %v2345
    %v2348 = vmul.f32 %v2336, %v2346
    %v2349 = vmul.f32 %v2337, %v2345
    %v2350 = vmul.f32 %v2338, %v2346
    %v2351 = vmul.f32 %v2339, %v2345
    %v2352 = vmul.f32 %v2340, %v2346
    %v2353 = vmul.f32 %v2341, %v2345
    %v2354 = vmul.f32 %v2342, %v2346
    %v2355 = vadd.f32 %v2243, %v2249
    %v2356 = vadd.f32 %v2355, %v2255
    %v2357 = vadd.f32 %v2356, %v2261
    %v2358 = vrot.slane %v2357, 4
    %v2359 = vadd.f32 %v2357, %v2358
    %v2360 = vrot.slane %v2359, 2
    %v2361 = vadd.f32 %v2359, %v2360
    %v2362 = vrot.slane %v2361, 1
    %v2363 = vadd.f32 %v2361, %v2362
    %v2364 = vadd.f32 %v2245, %v2251
    %v2365 = vadd.f32 %v2364, %v2257
    %v2366 = vadd.f32 %v2365, %v2263
    %v2367 = vrot.slane %v2366, 4
    %v2368 = vadd.f32 %v2366, %v2367
    %v2369 = vrot.slane %v2368, 2
    %v2370 = vadd.f32 %v2368, %v2369
    %v2371 = vrot.slane %v2370, 1
    %v2372 = vadd.f32 %v2370, %v2371
    %v2373 = vmul.f32 %v2243, %v2243
    %v2374 = vmul.f32 %v2245, %v2245
    %v2375 = vmul.f32 %v2249, %v2249
    %v2376 = vmul.f32 %v2251, %v2251
    %v2377 = vmul.f32 %v2255, %v2255
    %v2378 = vmul.f32 %v2257, %v2257
    %v2379 = vmul.f32 %v2261, %v2261
    %v2380 = vmul.f32 %v2263, %v2263
    %v2381 = vadd.f32 %v2373, %v2375
    %v2382 = vadd.f32 %v2381, %v2377
    %v2383 = vadd.f32 %v2382, %v2379
    %v2384 = vrot.slane %v2383, 4
    %v2385 = vadd.f32 %v2383, %v2384
    %v2386 = vrot.slane %v2385, 2
    %v2387 = vadd.f32 %v2385, %v2386
    %v2388 = vrot.slane %v2387, 1
    %v2389 = vadd.f32 %v2387, %v2388
    %v2390 = vadd.f32 %v2374, %v2376
    %v2391 = vadd.f32 %v2390, %v2378
    %v2392 = vadd.f32 %v2391, %v2380
    %v2393 = vrot.slane %v2392, 4
    %v2394 = vadd.f32 %v2392, %v2393
    %v2395 = vrot.slane %v2394, 2
    %v2396 = vadd.f32 %v2394, %v2395
    %v2397 = vrot.slane %v2396, 1
    %v2398 = vadd.f32 %v2396, %v2397
    %v2399 = vmul.f32 %v2363, 0.03125
    %v2400 = vmul.f32 %v2372, 0.03125
    %v2401 = vmul.f32 %v2389, 0.03125
    %v2402 = vmul.f32 %v2398, 0.03125
    %v2403 = vmul.f32 %v2399, %v2399
    %v2404 = vmul.f32 %v2400, %v2400
    %v2405 = vsub.f32 %v2401, %v2403
    %v2406 = vsub.f32 %v2402, %v2404
    %v2407 = vsub.f32 %v2243, %v2399
    %v2408 = vsub.f32 %v2245, %v2400
    %v2409 = vsub.f32 %v2249, %v2399
    %v2410 = vsub.f32 %v2251, %v2400
    %v2411 = vsub.f32 %v2255, %v2399
    %v2412 = vsub.f32 %v2257, %v2400
    %v2413 = vsub.f32 %v2261, %v2399
    %v2414 = vsub.f32 %v2263, %v2400
    %v2415 = vadd.f32 %v2405, 1e-05
    %v2416 = vadd.f32 %v2406, 1e-05
    %v2417 = vrsqrt.pop %v2415
    %v2418 = vrsqrt.pop %v2416
    %v2419 = vmul.f32 %v2407, %v2417
    %v2420 = vmul.f32 %v2408, %v2418
    %v2421 = vmul.f32 %v2409, %v2417
    %v2422 = vmul.f32 %v2410, %v2418
    %v2423 = vmul.f32 %v2411, %v2417
    %v2424 = vmul.f32 %v2412, %v2418
    %v2425 = vmul.f32 %v2413, %v2417
    %v2426 = vmul.f32 %v2414, %v2418
    %2428 = vset.pattern.permute.xlu0 0
    %2429 = vperm.xlu0 %2428, %v2266
    %v2430 = vpop.permute.xlu0 %2429
    %2433 = vset.pattern.permute.xlu0 0
    %2434 = vperm.xlu0 %2433, %v2267
    %v2435 = vpop.permute.xlu0 %2434
    %2438 = vset.pattern.permute.xlu0 0
    %2439 = vperm.xlu0 %2438, %v2268
    %v2440 = vpop.permute.xlu0 %2439
    %2443 = vset.pattern.permute.xlu0 0
    %2444 = vperm.xlu0 %2443, %v2269
    %v2445 = vpop.permute.xlu0 %2444
    %2448 = vset.pattern.permute.xlu0 0
    %2449 = vperm.xlu0 %2448, %v2270
    %v2450 = vpop.permute.xlu0 %2449
    %2453 = vset.pattern.permute.xlu0 0
    %2454 = vperm.xlu0 %2453, %v2271
    %v2455 = vpop.permute.xlu0 %2454
    %2458 = vset.pattern.permute.xlu0 0
    %2459 = vperm.xlu0 %2458, %v2272
    %v2460 = vpop.permute.xlu0 %2459
    %2463 = vset.pattern.permute.xlu0 0
    %2464 = vperm.xlu0 %2463, %v2273
    %v2465 = vpop.permute.xlu0 %2464
    %v2467 = vmul.f32 %v2347, %v2430
    %v2468 = vmul.f32 %v2348, %v2430
    %v2469 = vmul.f32 %v2349, %v2435
    %v2470 = vmul.f32 %v2350, %v2435
    %v2471 = vmul.f32 %v2351, %v2440
    %v2472 = vmul.f32 %v2352, %v2440
    %v2473 = vmul.f32 %v2353, %v2445
    %v2474 = vmul.f32 %v2354, %v2445
    %v2475 = vmul.f32 %v2419, %v2450
    %v2476 = vmul.f32 %v2420, %v2450
    %v2477 = vmul.f32 %v2421, %v2455
    %v2478 = vmul.f32 %v2422, %v2455
    %v2479 = vmul.f32 %v2423, %v2460
    %v2480 = vmul.f32 %v2424, %v2460
    %v2481 = vmul.f32 %v2425, %v2465
    %v2482 = vmul.f32 %v2426, %v2465
    %2484 = vset.pattern.permute.xlu0 0
    %2485 = vperm.xlu0 %2484, %v2275
    %v2486 = vpop.permute.xlu0 %2485
    %2489 = vset.pattern.permute.xlu0 0
    %2490 = vperm.xlu0 %2489, %v2276
    %v2491 = vpop.permute.xlu0 %2490
    %2494 = vset.pattern.permute.xlu0 0
    %2495 = vperm.xlu0 %2494, %v2277
    %v2496 = vpop.permute.xlu0 %2495
    %2499 = vset.pattern.permute.xlu0 0
    %2500 = vperm.xlu0 %2499, %v2278
    %v2501 = vpop.permute.xlu0 %2500
    %2504 = vset.pattern.permute.xlu0 0
    %2505 = vperm.xlu0 %2504, %v2279
    %v2506 = vpop.permute.xlu0 %2505
    %2509 = vset.pattern.permute.xlu0 0
    %2510 = vperm.xlu0 %2509, %v2280
    %v2511 = vpop.permute.xlu0 %2510
    %2514 = vset.pattern.permute.xlu0 0
    %2515 = vperm.xlu0 %2514, %v2281
    %v2516 = vpop.permute.xlu0 %2515
    %2519 = vset.pattern.permute.xlu0 0
    %2520 = vperm.xlu0 %2519, %v2282
    %v2521 = vpop.permute.xlu0 %2520
    %v2523 = vadd.f32 %v2467, %v2486
    %v2524 = vadd.f32 %v2468, %v2486
    %v2525 = vadd.f32 %v2469, %v2491
    %v2526 = vadd.f32 %v2470, %v2491
    %v2527 = vadd.f32 %v2471, %v2496
    %v2528 = vadd.f32 %v2472, %v2496
    %v2529 = vadd.f32 %v2473, %v2501
    %v2530 = vadd.f32 %v2474, %v2501
    %v2531 = vadd.f32 %v2475, %v2506
    %v2532 = vadd.f32 %v2476, %v2506
    %v2533 = vadd.f32 %v2477, %v2511
    %v2534 = vadd.f32 %v2478, %v2511
    %v2535 = vadd.f32 %v2479, %v2516
    %v2536 = vadd.f32 %v2480, %v2516
    %v2537 = vadd.f32 %v2481, %v2521
    %v2538 = vadd.f32 %v2482, %v2521
    %s2539 = sld [smem:[#allocation2 + $0x4]]
    %v2540 = vmul.f32 %v2523, %v2523
    %v2541 = vmul.f32 %v2524, %v2524
    %v2542 = vmul.f32 %v2525, %v2525
    %v2543 = vmul.f32 %v2526, %v2526
    %v2544 = vmul.f32 %v2527, %v2527
    %v2545 = vmul.f32 %v2528, %v2528
    %v2546 = vmul.f32 %v2529, %v2529
    %v2547 = vmul.f32 %v2530, %v2530
    %v2548 = vmul.f32 %v2531, %v2531
    %v2549 = vmul.f32 %v2532, %v2532
    %v2550 = vmul.f32 %v2533, %v2533
    %v2551 = vmul.f32 %v2534, %v2534
    %v2552 = vmul.f32 %v2535, %v2535
    %v2553 = vmul.f32 %v2536, %v2536
    %v2554 = vmul.f32 %v2537, %v2537
    %v2555 = vmul.f32 %v2538, %v2538
    %v2556 = vadd.f32 %v2540, %v2548
    %v2557 = vadd.f32 %v2541, %v2549
    %v2558 = vadd.f32 %v2542, %v2550
    %v2559 = vadd.f32 %v2543, %v2551
    %v2560 = vadd.f32 %v2544, %v2552
    %v2561 = vadd.f32 %v2545, %v2553
    %v2562 = vadd.f32 %v2546, %v2554
    %v2563 = vadd.f32 %v2547, %v2555
    %vm2564 = vcmp.gt.f32.partialorder %v2556, 0.0
    %vm2565 = vcmp.gt.f32.partialorder %v2557, 0.0
    %vm2566 = vcmp.gt.f32.partialorder %v2558, 0.0
    %vm2567 = vcmp.gt.f32.partialorder %v2559, 0.0
    %vm2568 = vcmp.gt.f32.partialorder %v2560, 0.0
    %vm2569 = vcmp.gt.f32.partialorder %v2561, 0.0
    %vm2570 = vcmp.gt.f32.partialorder %v2562, 0.0
    %vm2571 = vcmp.gt.f32.partialorder %v2563, 0.0
    %v2572 = vrsqrt.pop %v2556
    %v2573 = vrsqrt.pop %v2557
    %v2574 = vrsqrt.pop %v2558
    %v2575 = vrsqrt.pop %v2559
    %v2576 = vrsqrt.pop %v2560
    %v2577 = vrsqrt.pop %v2561
    %v2578 = vrsqrt.pop %v2562
    %v2579 = vrsqrt.pop %v2563
    %v2580 = vsel %vm2564, %v2572, 0.0
    %v2581 = vsel %vm2565, %v2573, 0.0
    %v2582 = vsel %vm2566, %v2574, 0.0
    %v2583 = vsel %vm2567, %v2575, 0.0
    %v2584 = vsel %vm2568, %v2576, 0.0
    %v2585 = vsel %vm2569, %v2577, 0.0
    %v2586 = vsel %vm2570, %v2578, 0.0
    %v2587 = vsel %vm2571, %v2579, 0.0
    %v2588 = vstv %s2539
    %v2589 = vmul.f32 %v2588, %v2580
    %v2590 = vmul.f32 %v2588, %v2581
    %v2591 = vmul.f32 %v2588, %v2582
    %v2592 = vmul.f32 %v2588, %v2583
    %v2593 = vmul.f32 %v2588, %v2584
    %v2594 = vmul.f32 %v2588, %v2585
    %v2595 = vmul.f32 %v2588, %v2586
    %v2596 = vmul.f32 %v2588, %v2587
    %v2597 = vsub.f32 1.0, %v2589
    %v2598 = vsub.f32 1.0, %v2590
    %v2599 = vsub.f32 1.0, %v2591
    %v2600 = vsub.f32 1.0, %v2592
    %v2601 = vsub.f32 1.0, %v2593
    %v2602 = vsub.f32 1.0, %v2594
    %v2603 = vsub.f32 1.0, %v2595
    %v2604 = vsub.f32 1.0, %v2596
    %v2605 = vmax.f32 %v2597, 0.0
    %v2606 = vmax.f32 %v2598, 0.0
    %v2607 = vmax.f32 %v2599, 0.0
    %v2608 = vmax.f32 %v2600, 0.0
    %v2609 = vmax.f32 %v2601, 0.0
    %v2610 = vmax.f32 %v2602, 0.0
    %v2611 = vmax.f32 %v2603, 0.0
    %v2612 = vmax.f32 %v2604, 0.0
    %v2613 = vmul.f32 %v2523, %v2605
    %v2614 = vmul.f32 %v2524, %v2606
    %v2615 = vmul.f32 %v2525, %v2607
    %v2616 = vmul.f32 %v2526, %v2608
    %v2617 = vmul.f32 %v2527, %v2609
    %v2618 = vmul.f32 %v2528, %v2610
    %v2619 = vmul.f32 %v2529, %v2611
    %v2620 = vmul.f32 %v2530, %v2612
    %v2621 = vmul.f32 %v2531, %v2605
    %v2622 = vmul.f32 %v2532, %v2606
    %v2623 = vmul.f32 %v2533, %v2607
    %v2624 = vmul.f32 %v2534, %v2608
    %v2625 = vmul.f32 %v2535, %v2609
    %v2626 = vmul.f32 %v2536, %v2610
    %v2627 = vmul.f32 %v2537, %v2611
    %v2628 = vmul.f32 %v2538, %v2612
    %s2629 = scalar_lea.vmem %s1, 320
    %v2630 = vld [vmem:[%s2629] sm:$0xff]
    %v2631 = vld [vmem:[%s2629 + $0x8] sm:$0xff]
    %v2632 = vld [vmem:[%s2629 + $0x10] sm:$0xff]
    %v2633 = vld [vmem:[%s2629 + $0x18] sm:$0xff]
    %v2634 = vld [vmem:[%s2629 + $0x20] sm:$0xff]
    %v2635 = vld [vmem:[%s2629 + $0x28] sm:$0xff]
    %v2636 = vld [vmem:[%s2629 + $0x30] sm:$0xff]
    %v2637 = vld [vmem:[%s2629 + $0x38] sm:$0xff]
    %v2639 = vsel %vm57, %v2630, 0
    %v2642 = vsel %vm57, %v2631, 0
    %v2645 = vsel %vm57, %v2632, 0
    %v2648 = vsel %vm57, %v2633, 0
    %v2651 = vsel %vm57, %v2634, 0
    %v2654 = vsel %vm57, %v2635, 0
    %v2657 = vsel %vm57, %v2636, 0
    %v2660 = vsel %vm57, %v2637, 0
    %2662 = vmatprep.subr.mxu0 %v2614
    %2663 = vmatpush1.msra.mxu0 %v2613
    %2664 = vmatprep.subr.mxu0 %v2616
    %2665 = vmatpush1.msra.mxu0 %v2615
    %2666 = vmatprep.subr.mxu0 %v2618
    %2667 = vmatpush1.msra.mxu0 %v2617
    %2668 = vmatprep.subr.mxu0 %v2620
    %2669 = vmatpush1.msra.mxu0 %v2619
    %2670 = vmatprep.subr.mxu0 %v2622
    %2671 = vmatpush1.msra.mxu0 %v2621
    %2672 = vmatprep.subr.mxu0 %v2624
    %2673 = vmatpush1.msra.mxu0 %v2623
    %2674 = vmatprep.subr.mxu0 %v2626
    %2675 = vmatpush1.msra.mxu0 %v2625
    %2676 = vmatprep.subr.mxu0 %v2628
    %2677 = vmatpush1.msra.mxu0 %v2627
    %2678 = vmatprep.subr.mxu0 0.0
    %2679 = vmatpush1.msra.mxu0 0.0
    %2680 = vmatprep.subr.mxu0 0.0
    %2681 = vmatpush1.msra.mxu0 0.0
    %2682 = vmatprep.subr.mxu0 0.0
    %2683 = vmatpush1.msra.mxu0 0.0
    %2684 = vmatprep.subr.mxu0 0.0
    %2685 = vmatpush1.msra.mxu0 0.0
    %2686 = vmatprep.subr.mxu0 0.0
    %2687 = vmatpush1.msra.mxu0 0.0
    %2688 = vmatprep.subr.mxu0 0.0
    %2689 = vmatpush1.msra.mxu0 0.0
    %2690 = vmatprep.subr.mxu0 0.0
    %2691 = vmatpush1.msra.mxu0 0.0
    %2692 = vmatprep.subr.mxu0 0.0
    %2693 = vmatpush1.msra.mxu0 0.0
    %2694 = vmatprep.subr.mxu0 0.0
    %2695 = vmatpush1.msra.mxu0 0.0
    %2696 = vmatprep.subr.mxu0 0.0
    %2697 = vmatpush1.msra.mxu0 0.0
    %2698 = vmatprep.subr.mxu0 0.0
    %2699 = vmatpush1.msra.mxu0 0.0
    %2700 = vmatprep.subr.mxu0 0.0
    %2701 = vmatpush1.msra.mxu0 0.0
    %2702 = vmatprep.subr.mxu0 0.0
    %2703 = vmatpush1.msra.mxu0 0.0
    %2704 = vmatprep.subr.mxu0 0.0
    %2705 = vmatpush1.msra.mxu0 0.0
    %2706 = vmatprep.subr.mxu0 0.0
    %2707 = vmatpush1.msra.mxu0 0.0
    %2708 = vmatprep.subr.mxu0 0.0
    %2709 = vmatpush1.msra.mxu0 0.0
    %2710 = vmatprep.subr.mxu0 0.0
    %2711 = vmatpush1.msra.mxu0 0.0
    %2712 = vmatprep.subr.mxu0 0.0
    %2713 = vmatpush1.msra.mxu0 0.0
    %2714 = vmatprep.subr.mxu0 0.0
    %2715 = vmatpush1.msra.mxu0 0.0
    %2716 = vmatprep.subr.mxu0 0.0
    %2717 = vmatpush1.msra.mxu0 0.0
    %2718 = vmatprep.subr.mxu0 0.0
    %2719 = vmatpush1.msra.mxu0 0.0
    %2720 = vmatprep.subr.mxu0 0.0
    %2721 = vmatpush1.msra.mxu0 0.0
    %2722 = vmatprep.subr.mxu0 0.0
    %2723 = vmatpush1.msra.mxu0 0.0
    %2724 = vmatprep.subr.mxu0 0.0
    %2725 = vmatpush1.msra.mxu0 0.0
    %2726 = vmatprep.mubr.f32.mxu0 0.0
    %2727 = vmatmul.mubr.f32.gmra.mrb[0].mxu0 %v2639
    %v2728 = vpop.f32.mrb[0].mxu0
    %v2729 = vadd.f32 0.0, %v2728
    %v2730 = vpop.f32.mrb[0].mxu0
    %v2731 = vadd.f32 0.0, %v2730
    %2732 = vmatprep.mubr.f32.mxu0 0.0
    %2733 = vmatmul.mubr.f32.gmra.mrb[0].mxu0 %v2642
    %v2734 = vpop.f32.mrb[0].mxu0
    %v2735 = vadd.f32 0.0, %v2734
    %v2736 = vpop.f32.mrb[0].mxu0
    %v2737 = vadd.f32 0.0, %v2736
    %2738 = vmatprep.mubr.f32.mxu0 0.0
    %2739 = vmatmul.mubr.f32.gmra.mrb[0].mxu0 %v2645
    %v2740 = vpop.f32.mrb[0].mxu0
    %v2741 = vadd.f32 0.0, %v2740
    %v2742 = vpop.f32.mrb[0].mxu0
    %v2743 = vadd.f32 0.0, %v2742
    %2744 = vmatprep.mubr.f32.mxu0 0.0
    %2745 = vmatmul.mubr.f32.gmra.mrb[0].mxu0 %v2648
    %v2746 = vpop.f32.mrb[0].mxu0
    %v2747 = vadd.f32 0.0, %v2746
    %v2748 = vpop.f32.mrb[0].mxu0
    %v2749 = vadd.f32 0.0, %v2748
    %2750 = vmatprep.mubr.f32.mxu0 0.0
    %2751 = vmatmul.mubr.f32.gmra.mrb[0].mxu0 %v2651
    %v2752 = vpop.f32.mrb[0].mxu0
    %v2753 = vadd.f32 0.0, %v2752
    %v2754 = vpop.f32.mrb[0].mxu0
    %v2755 = vadd.f32 0.0, %v2754
    %2756 = vmatprep.mubr.f32.mxu0 0.0
    %2757 = vmatmul.mubr.f32.gmra.mrb[0].mxu0 %v2654
    %v2758 = vpop.f32.mrb[0].mxu0
    %v2759 = vadd.f32 0.0, %v2758
    %v2760 = vpop.f32.mrb[0].mxu0
    %v2761 = vadd.f32 0.0, %v2760
    %2762 = vmatprep.mubr.f32.mxu0 0.0
    %2763 = vmatmul.mubr.f32.gmra.mrb[0].mxu0 %v2657
    %v2764 = vpop.f32.mrb[0].mxu0
    %v2765 = vadd.f32 0.0, %v2764
    %v2766 = vpop.f32.mrb[0].mxu0
    %v2767 = vadd.f32 0.0, %v2766
    %2768 = vmatprep.mubr.f32.mxu0 0.0
    %2769 = vmatmul.mubr.f32.gmra.mrb[0].mxu0 %v2660
    %v2770 = vpop.f32.mrb[0].mxu0
    %v2771 = vadd.f32 0.0, %v2770
    %v2772 = vpop.f32.mrb[0].mxu0
    %v2773 = vadd.f32 0.0, %v2772
    %2774 = vdwg.mxu0
    %s2775 = scalar_lea.vmem %s2, 320
    %v2776 = vld [vmem:[%s2775] sm:$0xff]
    %v2777 = vld [vmem:[%s2775 + $0x8] sm:$0xff]
    %v2778 = vld [vmem:[%s2775 + $0x10] sm:$0xff]
    %v2779 = vld [vmem:[%s2775 + $0x18] sm:$0xff]
    %v2780 = vld [vmem:[%s2775 + $0x20] sm:$0xff]
    %v2781 = vld [vmem:[%s2775 + $0x28] sm:$0xff]
    %v2782 = vld [vmem:[%s2775 + $0x30] sm:$0xff]
    %v2783 = vld [vmem:[%s2775 + $0x38] sm:$0xff]
    %s2784 = scalar_lea.vmem %s3, 320
    %v2785 = vld [vmem:[%s2784] sm:$0xff]
    %v2786 = vld [vmem:[%s2784 + $0x8] sm:$0xff]
    %v2787 = vld [vmem:[%s2784 + $0x10] sm:$0xff]
    %v2788 = vld [vmem:[%s2784 + $0x18] sm:$0xff]
    %v2789 = vld [vmem:[%s2784 + $0x20] sm:$0xff]
    %v2790 = vld [vmem:[%s2784 + $0x28] sm:$0xff]
    %v2791 = vld [vmem:[%s2784 + $0x30] sm:$0xff]
    %v2792 = vld [vmem:[%s2784 + $0x38] sm:$0xff]
    %v2793 = vadd.f32 %v2729, %v2735
    %v2794 = vadd.f32 %v2793, %v2741
    %v2795 = vadd.f32 %v2794, %v2747
    %v2796 = vrot.slane %v2795, 4
    %v2797 = vadd.f32 %v2795, %v2796
    %v2798 = vrot.slane %v2797, 2
    %v2799 = vadd.f32 %v2797, %v2798
    %v2800 = vrot.slane %v2799, 1
    %v2801 = vadd.f32 %v2799, %v2800
    %v2802 = vadd.f32 %v2731, %v2737
    %v2803 = vadd.f32 %v2802, %v2743
    %v2804 = vadd.f32 %v2803, %v2749
    %v2805 = vrot.slane %v2804, 4
    %v2806 = vadd.f32 %v2804, %v2805
    %v2807 = vrot.slane %v2806, 2
    %v2808 = vadd.f32 %v2806, %v2807
    %v2809 = vrot.slane %v2808, 1
    %v2810 = vadd.f32 %v2808, %v2809
    %v2811 = vmul.f32 %v2729, %v2729
    %v2812 = vmul.f32 %v2731, %v2731
    %v2813 = vmul.f32 %v2735, %v2735
    %v2814 = vmul.f32 %v2737, %v2737
    %v2815 = vmul.f32 %v2741, %v2741
    %v2816 = vmul.f32 %v2743, %v2743
    %v2817 = vmul.f32 %v2747, %v2747
    %v2818 = vmul.f32 %v2749, %v2749
    %v2819 = vadd.f32 %v2811, %v2813
    %v2820 = vadd.f32 %v2819, %v2815
    %v2821 = vadd.f32 %v2820, %v2817
    %v2822 = vrot.slane %v2821, 4
    %v2823 = vadd.f32 %v2821, %v2822
    %v2824 = vrot.slane %v2823, 2
    %v2825 = vadd.f32 %v2823, %v2824
    %v2826 = vrot.slane %v2825, 1
    %v2827 = vadd.f32 %v2825, %v2826
    %v2828 = vadd.f32 %v2812, %v2814
    %v2829 = vadd.f32 %v2828, %v2816
    %v2830 = vadd.f32 %v2829, %v2818
    %v2831 = vrot.slane %v2830, 4
    %v2832 = vadd.f32 %v2830, %v2831
    %v2833 = vrot.slane %v2832, 2
    %v2834 = vadd.f32 %v2832, %v2833
    %v2835 = vrot.slane %v2834, 1
    %v2836 = vadd.f32 %v2834, %v2835
    %v2837 = vmul.f32 %v2801, 0.03125
    %v2838 = vmul.f32 %v2810, 0.03125
    %v2839 = vmul.f32 %v2827, 0.03125
    %v2840 = vmul.f32 %v2836, 0.03125
    %v2841 = vmul.f32 %v2837, %v2837
    %v2842 = vmul.f32 %v2838, %v2838
    %v2843 = vsub.f32 %v2839, %v2841
    %v2844 = vsub.f32 %v2840, %v2842
    %v2845 = vsub.f32 %v2729, %v2837
    %v2846 = vsub.f32 %v2731, %v2838
    %v2847 = vsub.f32 %v2735, %v2837
    %v2848 = vsub.f32 %v2737, %v2838
    %v2849 = vsub.f32 %v2741, %v2837
    %v2850 = vsub.f32 %v2743, %v2838
    %v2851 = vsub.f32 %v2747, %v2837
    %v2852 = vsub.f32 %v2749, %v2838
    %v2853 = vadd.f32 %v2843, 1e-05
    %v2854 = vadd.f32 %v2844, 1e-05
    %v2855 = vrsqrt.pop %v2853
    %v2856 = vrsqrt.pop %v2854
    %v2857 = vmul.f32 %v2845, %v2855
    %v2858 = vmul.f32 %v2846, %v2856
    %v2859 = vmul.f32 %v2847, %v2855
    %v2860 = vmul.f32 %v2848, %v2856
    %v2861 = vmul.f32 %v2849, %v2855
    %v2862 = vmul.f32 %v2850, %v2856
    %v2863 = vmul.f32 %v2851, %v2855
    %v2864 = vmul.f32 %v2852, %v2856
    %v2865 = vadd.f32 %v2753, %v2759
    %v2866 = vadd.f32 %v2865, %v2765
    %v2867 = vadd.f32 %v2866, %v2771
    %v2868 = vrot.slane %v2867, 4
    %v2869 = vadd.f32 %v2867, %v2868
    %v2870 = vrot.slane %v2869, 2
    %v2871 = vadd.f32 %v2869, %v2870
    %v2872 = vrot.slane %v2871, 1
    %v2873 = vadd.f32 %v2871, %v2872
    %v2874 = vadd.f32 %v2755, %v2761
    %v2875 = vadd.f32 %v2874, %v2767
    %v2876 = vadd.f32 %v2875, %v2773
    %v2877 = vrot.slane %v2876, 4
    %v2878 = vadd.f32 %v2876, %v2877
    %v2879 = vrot.slane %v2878, 2
    %v2880 = vadd.f32 %v2878, %v2879
    %v2881 = vrot.slane %v2880, 1
    %v2882 = vadd.f32 %v2880, %v2881
    %v2883 = vmul.f32 %v2753, %v2753
    %v2884 = vmul.f32 %v2755, %v2755
    %v2885 = vmul.f32 %v2759, %v2759
    %v2886 = vmul.f32 %v2761, %v2761
    %v2887 = vmul.f32 %v2765, %v2765
    %v2888 = vmul.f32 %v2767, %v2767
    %v2889 = vmul.f32 %v2771, %v2771
    %v2890 = vmul.f32 %v2773, %v2773
    %v2891 = vadd.f32 %v2883, %v2885
    %v2892 = vadd.f32 %v2891, %v2887
    %v2893 = vadd.f32 %v2892, %v2889
    %v2894 = vrot.slane %v2893, 4
    %v2895 = vadd.f32 %v2893, %v2894
    %v2896 = vrot.slane %v2895, 2
    %v2897 = vadd.f32 %v2895, %v2896
    %v2898 = vrot.slane %v2897, 1
    %v2899 = vadd.f32 %v2897, %v2898
    %v2900 = vadd.f32 %v2884, %v2886
    %v2901 = vadd.f32 %v2900, %v2888
    %v2902 = vadd.f32 %v2901, %v2890
    %v2903 = vrot.slane %v2902, 4
    %v2904 = vadd.f32 %v2902, %v2903
    %v2905 = vrot.slane %v2904, 2
    %v2906 = vadd.f32 %v2904, %v2905
    %v2907 = vrot.slane %v2906, 1
    %v2908 = vadd.f32 %v2906, %v2907
    %v2909 = vmul.f32 %v2873, 0.03125
    %v2910 = vmul.f32 %v2882, 0.03125
    %v2911 = vmul.f32 %v2899, 0.03125
    %v2912 = vmul.f32 %v2908, 0.03125
    %v2913 = vmul.f32 %v2909, %v2909
    %v2914 = vmul.f32 %v2910, %v2910
    %v2915 = vsub.f32 %v2911, %v2913
    %v2916 = vsub.f32 %v2912, %v2914
    %v2917 = vsub.f32 %v2753, %v2909
    %v2918 = vsub.f32 %v2755, %v2910
    %v2919 = vsub.f32 %v2759, %v2909
    %v2920 = vsub.f32 %v2761, %v2910
    %v2921 = vsub.f32 %v2765, %v2909
    %v2922 = vsub.f32 %v2767, %v2910
    %v2923 = vsub.f32 %v2771, %v2909
    %v2924 = vsub.f32 %v2773, %v2910
    %v2925 = vadd.f32 %v2915, 1e-05
    %v2926 = vadd.f32 %v2916, 1e-05
    %v2927 = vrsqrt.pop %v2925
    %v2928 = vrsqrt.pop %v2926
    %v2929 = vmul.f32 %v2917, %v2927
    %v2930 = vmul.f32 %v2918, %v2928
    %v2931 = vmul.f32 %v2919, %v2927
    %v2932 = vmul.f32 %v2920, %v2928
    %v2933 = vmul.f32 %v2921, %v2927
    %v2934 = vmul.f32 %v2922, %v2928
    %v2935 = vmul.f32 %v2923, %v2927
    %v2936 = vmul.f32 %v2924, %v2928
    %2938 = vset.pattern.permute.xlu0 0
    %2939 = vperm.xlu0 %2938, %v2776
    %v2940 = vpop.permute.xlu0 %2939
    %2943 = vset.pattern.permute.xlu0 0
    %2944 = vperm.xlu0 %2943, %v2777
    %v2945 = vpop.permute.xlu0 %2944
    %2948 = vset.pattern.permute.xlu0 0
    %2949 = vperm.xlu0 %2948, %v2778
    %v2950 = vpop.permute.xlu0 %2949
    %2953 = vset.pattern.permute.xlu0 0
    %2954 = vperm.xlu0 %2953, %v2779
    %v2955 = vpop.permute.xlu0 %2954
    %2958 = vset.pattern.permute.xlu0 0
    %2959 = vperm.xlu0 %2958, %v2780
    %v2960 = vpop.permute.xlu0 %2959
    %2963 = vset.pattern.permute.xlu0 0
    %2964 = vperm.xlu0 %2963, %v2781
    %v2965 = vpop.permute.xlu0 %2964
    %2968 = vset.pattern.permute.xlu0 0
    %2969 = vperm.xlu0 %2968, %v2782
    %v2970 = vpop.permute.xlu0 %2969
    %2973 = vset.pattern.permute.xlu0 0
    %2974 = vperm.xlu0 %2973, %v2783
    %v2975 = vpop.permute.xlu0 %2974
    %v2977 = vmul.f32 %v2857, %v2940
    %v2978 = vmul.f32 %v2858, %v2940
    %v2979 = vmul.f32 %v2859, %v2945
    %v2980 = vmul.f32 %v2860, %v2945
    %v2981 = vmul.f32 %v2861, %v2950
    %v2982 = vmul.f32 %v2862, %v2950
    %v2983 = vmul.f32 %v2863, %v2955
    %v2984 = vmul.f32 %v2864, %v2955
    %v2985 = vmul.f32 %v2929, %v2960
    %v2986 = vmul.f32 %v2930, %v2960
    %v2987 = vmul.f32 %v2931, %v2965
    %v2988 = vmul.f32 %v2932, %v2965
    %v2989 = vmul.f32 %v2933, %v2970
    %v2990 = vmul.f32 %v2934, %v2970
    %v2991 = vmul.f32 %v2935, %v2975
    %v2992 = vmul.f32 %v2936, %v2975
    %2994 = vset.pattern.permute.xlu0 0
    %2995 = vperm.xlu0 %2994, %v2785
    %v2996 = vpop.permute.xlu0 %2995
    %2999 = vset.pattern.permute.xlu0 0
    %3000 = vperm.xlu0 %2999, %v2786
    %v3001 = vpop.permute.xlu0 %3000
    %3004 = vset.pattern.permute.xlu0 0
    %3005 = vperm.xlu0 %3004, %v2787
    %v3006 = vpop.permute.xlu0 %3005
    %3009 = vset.pattern.permute.xlu0 0
    %3010 = vperm.xlu0 %3009, %v2788
    %v3011 = vpop.permute.xlu0 %3010
    %3014 = vset.pattern.permute.xlu0 0
    %3015 = vperm.xlu0 %3014, %v2789
    %v3016 = vpop.permute.xlu0 %3015
    %3019 = vset.pattern.permute.xlu0 0
    %3020 = vperm.xlu0 %3019, %v2790
    %v3021 = vpop.permute.xlu0 %3020
    %3024 = vset.pattern.permute.xlu0 0
    %3025 = vperm.xlu0 %3024, %v2791
    %v3026 = vpop.permute.xlu0 %3025
    %3029 = vset.pattern.permute.xlu0 0
    %3030 = vperm.xlu0 %3029, %v2792
    %v3031 = vpop.permute.xlu0 %3030
    %v3033 = vadd.f32 %v2977, %v2996
    %v3034 = vadd.f32 %v2978, %v2996
    %v3035 = vadd.f32 %v2979, %v3001
    %v3036 = vadd.f32 %v2980, %v3001
    %v3037 = vadd.f32 %v2981, %v3006
    %v3038 = vadd.f32 %v2982, %v3006
    %v3039 = vadd.f32 %v2983, %v3011
    %v3040 = vadd.f32 %v2984, %v3011
    %v3041 = vadd.f32 %v2985, %v3016
    %v3042 = vadd.f32 %v2986, %v3016
    %v3043 = vadd.f32 %v2987, %v3021
    %v3044 = vadd.f32 %v2988, %v3021
    %v3045 = vadd.f32 %v2989, %v3026
    %v3046 = vadd.f32 %v2990, %v3026
    %v3047 = vadd.f32 %v2991, %v3031
    %v3048 = vadd.f32 %v2992, %v3031
    %v3049 = vadd.f32 %v3033, %v2103
    %v3050 = vadd.f32 %v3034, %v2104
    %v3051 = vadd.f32 %v3035, %v2105
    %v3052 = vadd.f32 %v3036, %v2106
    %v3053 = vadd.f32 %v3037, %v2107
    %v3054 = vadd.f32 %v3038, %v2108
    %v3055 = vadd.f32 %v3039, %v2109
    %v3056 = vadd.f32 %v3040, %v2110
    %v3057 = vadd.f32 %v3041, %v2111
    %v3058 = vadd.f32 %v3042, %v2112
    %v3059 = vadd.f32 %v3043, %v2113
    %v3060 = vadd.f32 %v3044, %v2114
    %v3061 = vadd.f32 %v3045, %v2115
    %v3062 = vadd.f32 %v3046, %v2116
    %v3063 = vadd.f32 %v3047, %v2117
    %v3064 = vadd.f32 %v3048, %v2118
    %s3065 = sld [smem:[#allocation2 + $0x5]]
    %v3066 = vmul.f32 %v3049, %v3049
    %v3067 = vmul.f32 %v3050, %v3050
    %v3068 = vmul.f32 %v3051, %v3051
    %v3069 = vmul.f32 %v3052, %v3052
    %v3070 = vmul.f32 %v3053, %v3053
    %v3071 = vmul.f32 %v3054, %v3054
    %v3072 = vmul.f32 %v3055, %v3055
    %v3073 = vmul.f32 %v3056, %v3056
    %v3074 = vmul.f32 %v3057, %v3057
    %v3075 = vmul.f32 %v3058, %v3058
    %v3076 = vmul.f32 %v3059, %v3059
    %v3077 = vmul.f32 %v3060, %v3060
    %v3078 = vmul.f32 %v3061, %v3061
    %v3079 = vmul.f32 %v3062, %v3062
    %v3080 = vmul.f32 %v3063, %v3063
    %v3081 = vmul.f32 %v3064, %v3064
    %v3082 = vadd.f32 %v3066, %v3074
    %v3083 = vadd.f32 %v3067, %v3075
    %v3084 = vadd.f32 %v3068, %v3076
    %v3085 = vadd.f32 %v3069, %v3077
    %v3086 = vadd.f32 %v3070, %v3078
    %v3087 = vadd.f32 %v3071, %v3079
    %v3088 = vadd.f32 %v3072, %v3080
    %v3089 = vadd.f32 %v3073, %v3081
    %vm3090 = vcmp.gt.f32.partialorder %v3082, 0.0
    %vm3091 = vcmp.gt.f32.partialorder %v3083, 0.0
    %vm3092 = vcmp.gt.f32.partialorder %v3084, 0.0
    %vm3093 = vcmp.gt.f32.partialorder %v3085, 0.0
    %vm3094 = vcmp.gt.f32.partialorder %v3086, 0.0
    %vm3095 = vcmp.gt.f32.partialorder %v3087, 0.0
    %vm3096 = vcmp.gt.f32.partialorder %v3088, 0.0
    %vm3097 = vcmp.gt.f32.partialorder %v3089, 0.0
    %v3098 = vrsqrt.pop %v3082
    %v3099 = vrsqrt.pop %v3083
    %v3100 = vrsqrt.pop %v3084
    %v3101 = vrsqrt.pop %v3085
    %v3102 = vrsqrt.pop %v3086
    %v3103 = vrsqrt.pop %v3087
    %v3104 = vrsqrt.pop %v3088
    %v3105 = vrsqrt.pop %v3089
    %v3106 = vsel %vm3090, %v3098, 0.0
    %v3107 = vsel %vm3091, %v3099, 0.0
    %v3108 = vsel %vm3092, %v3100, 0.0
    %v3109 = vsel %vm3093, %v3101, 0.0
    %v3110 = vsel %vm3094, %v3102, 0.0
    %v3111 = vsel %vm3095, %v3103, 0.0
    %v3112 = vsel %vm3096, %v3104, 0.0
    %v3113 = vsel %vm3097, %v3105, 0.0
    %v3114 = vstv %s3065
    %v3115 = vmul.f32 %v3114, %v3106
    %v3116 = vmul.f32 %v3114, %v3107
    %v3117 = vmul.f32 %v3114, %v3108
    %v3118 = vmul.f32 %v3114, %v3109
    %v3119 = vmul.f32 %v3114, %v3110
    %v3120 = vmul.f32 %v3114, %v3111
    %v3121 = vmul.f32 %v3114, %v3112
    %v3122 = vmul.f32 %v3114, %v3113
    %v3123 = vsub.f32 1.0, %v3115
    %v3124 = vsub.f32 1.0, %v3116
    %v3125 = vsub.f32 1.0, %v3117
    %v3126 = vsub.f32 1.0, %v3118
    %v3127 = vsub.f32 1.0, %v3119
    %v3128 = vsub.f32 1.0, %v3120
    %v3129 = vsub.f32 1.0, %v3121
    %v3130 = vsub.f32 1.0, %v3122
    %v3131 = vmax.f32 %v3123, 0.0
    %v3132 = vmax.f32 %v3124, 0.0
    %v3133 = vmax.f32 %v3125, 0.0
    %v3134 = vmax.f32 %v3126, 0.0
    %v3135 = vmax.f32 %v3127, 0.0
    %v3136 = vmax.f32 %v3128, 0.0
    %v3137 = vmax.f32 %v3129, 0.0
    %v3138 = vmax.f32 %v3130, 0.0
    %v3139 = vmul.f32 %v3049, %v3131
    %v3140 = vmul.f32 %v3050, %v3132
    %v3141 = vmul.f32 %v3051, %v3133
    %v3142 = vmul.f32 %v3052, %v3134
    %v3143 = vmul.f32 %v3053, %v3135
    %v3144 = vmul.f32 %v3054, %v3136
    %v3145 = vmul.f32 %v3055, %v3137
    %v3146 = vmul.f32 %v3056, %v3138
    %v3147 = vmul.f32 %v3057, %v3131
    %v3148 = vmul.f32 %v3058, %v3132
    %v3149 = vmul.f32 %v3059, %v3133
    %v3150 = vmul.f32 %v3060, %v3134
    %v3151 = vmul.f32 %v3061, %v3135
    %v3152 = vmul.f32 %v3062, %v3136
    %v3153 = vmul.f32 %v3063, %v3137
    %v3154 = vmul.f32 %v3064, %v3138
    %s3155 = scalar_lea.vmem %s1, 384
    %v3156 = vld [vmem:[%s3155] sm:$0xff]
    %v3157 = vld [vmem:[%s3155 + $0x8] sm:$0xff]
    %v3158 = vld [vmem:[%s3155 + $0x10] sm:$0xff]
    %v3159 = vld [vmem:[%s3155 + $0x18] sm:$0xff]
    %v3160 = vld [vmem:[%s3155 + $0x20] sm:$0xff]
    %v3161 = vld [vmem:[%s3155 + $0x28] sm:$0xff]
    %v3162 = vld [vmem:[%s3155 + $0x30] sm:$0xff]
    %v3163 = vld [vmem:[%s3155 + $0x38] sm:$0xff]
    %v3165 = vsel %vm57, %v3156, 0
    %v3168 = vsel %vm57, %v3157, 0
    %v3171 = vsel %vm57, %v3158, 0
    %v3174 = vsel %vm57, %v3159, 0
    %v3177 = vsel %vm57, %v3160, 0
    %v3180 = vsel %vm57, %v3161, 0
    %v3183 = vsel %vm57, %v3162, 0
    %v3186 = vsel %vm57, %v3163, 0
    %3188 = vmatprep.subr.mxu0 %v3140
    %3189 = vmatpush1.msra.mxu0 %v3139
    %3190 = vmatprep.subr.mxu0 %v3142
    %3191 = vmatpush1.msra.mxu0 %v3141
    %3192 = vmatprep.subr.mxu0 %v3144
    %3193 = vmatpush1.msra.mxu0 %v3143
    %3194 = vmatprep.subr.mxu0 %v3146
    %3195 = vmatpush1.msra.mxu0 %v3145
    %3196 = vmatprep.subr.mxu0 %v3148
    %3197 = vmatpush1.msra.mxu0 %v3147
    %3198 = vmatprep.subr.mxu0 %v3150
    %3199 = vmatpush1.msra.mxu0 %v3149
    %3200 = vmatprep.subr.mxu0 %v3152
    %3201 = vmatpush1.msra.mxu0 %v3151
    %3202 = vmatprep.subr.mxu0 %v3154
    %3203 = vmatpush1.msra.mxu0 %v3153
    %3204 = vmatprep.subr.mxu0 0.0
    %3205 = vmatpush1.msra.mxu0 0.0
    %3206 = vmatprep.subr.mxu0 0.0
    %3207 = vmatpush1.msra.mxu0 0.0
    %3208 = vmatprep.subr.mxu0 0.0
    %3209 = vmatpush1.msra.mxu0 0.0
    %3210 = vmatprep.subr.mxu0 0.0
    %3211 = vmatpush1.msra.mxu0 0.0
    %3212 = vmatprep.subr.mxu0 0.0
    %3213 = vmatpush1.msra.mxu0 0.0
    %3214 = vmatprep.subr.mxu0 0.0
    %3215 = vmatpush1.msra.mxu0 0.0
    %3216 = vmatprep.subr.mxu0 0.0
    %3217 = vmatpush1.msra.mxu0 0.0
    %3218 = vmatprep.subr.mxu0 0.0
    %3219 = vmatpush1.msra.mxu0 0.0
    %3220 = vmatprep.subr.mxu0 0.0
    %3221 = vmatpush1.msra.mxu0 0.0
    %3222 = vmatprep.subr.mxu0 0.0
    %3223 = vmatpush1.msra.mxu0 0.0
    %3224 = vmatprep.subr.mxu0 0.0
    %3225 = vmatpush1.msra.mxu0 0.0
    %3226 = vmatprep.subr.mxu0 0.0
    %3227 = vmatpush1.msra.mxu0 0.0
    %3228 = vmatprep.subr.mxu0 0.0
    %3229 = vmatpush1.msra.mxu0 0.0
    %3230 = vmatprep.subr.mxu0 0.0
    %3231 = vmatpush1.msra.mxu0 0.0
    %3232 = vmatprep.subr.mxu0 0.0
    %3233 = vmatpush1.msra.mxu0 0.0
    %3234 = vmatprep.subr.mxu0 0.0
    %3235 = vmatpush1.msra.mxu0 0.0
    %3236 = vmatprep.subr.mxu0 0.0
    %3237 = vmatpush1.msra.mxu0 0.0
    %3238 = vmatprep.subr.mxu0 0.0
    %3239 = vmatpush1.msra.mxu0 0.0
    %3240 = vmatprep.subr.mxu0 0.0
    %3241 = vmatpush1.msra.mxu0 0.0
    %3242 = vmatprep.subr.mxu0 0.0
    %3243 = vmatpush1.msra.mxu0 0.0
    %3244 = vmatprep.subr.mxu0 0.0
    %3245 = vmatpush1.msra.mxu0 0.0
    %3246 = vmatprep.subr.mxu0 0.0
    %3247 = vmatpush1.msra.mxu0 0.0
    %3248 = vmatprep.subr.mxu0 0.0
    %3249 = vmatpush1.msra.mxu0 0.0
    %3250 = vmatprep.subr.mxu0 0.0
    %3251 = vmatpush1.msra.mxu0 0.0
    %3252 = vmatprep.mubr.f32.mxu0 0.0
    %3253 = vmatmul.mubr.f32.gmra.mrb[0].mxu0 %v3165
    %v3254 = vpop.f32.mrb[0].mxu0
    %v3255 = vadd.f32 0.0, %v3254
    %v3256 = vpop.f32.mrb[0].mxu0
    %v3257 = vadd.f32 0.0, %v3256
    %3258 = vmatprep.mubr.f32.mxu0 0.0
    %3259 = vmatmul.mubr.f32.gmra.mrb[0].mxu0 %v3168
    %v3260 = vpop.f32.mrb[0].mxu0
    %v3261 = vadd.f32 0.0, %v3260
    %v3262 = vpop.f32.mrb[0].mxu0
    %v3263 = vadd.f32 0.0, %v3262
    %3264 = vmatprep.mubr.f32.mxu0 0.0
    %3265 = vmatmul.mubr.f32.gmra.mrb[0].mxu0 %v3171
    %v3266 = vpop.f32.mrb[0].mxu0
    %v3267 = vadd.f32 0.0, %v3266
    %v3268 = vpop.f32.mrb[0].mxu0
    %v3269 = vadd.f32 0.0, %v3268
    %3270 = vmatprep.mubr.f32.mxu0 0.0
    %3271 = vmatmul.mubr.f32.gmra.mrb[0].mxu0 %v3174
    %v3272 = vpop.f32.mrb[0].mxu0
    %v3273 = vadd.f32 0.0, %v3272
    %v3274 = vpop.f32.mrb[0].mxu0
    %v3275 = vadd.f32 0.0, %v3274
    %3276 = vmatprep.mubr.f32.mxu0 0.0
    %3277 = vmatmul.mubr.f32.gmra.mrb[0].mxu0 %v3177
    %v3278 = vpop.f32.mrb[0].mxu0
    %v3279 = vadd.f32 0.0, %v3278
    %v3280 = vpop.f32.mrb[0].mxu0
    %v3281 = vadd.f32 0.0, %v3280
    %3282 = vmatprep.mubr.f32.mxu0 0.0
    %3283 = vmatmul.mubr.f32.gmra.mrb[0].mxu0 %v3180
    %v3284 = vpop.f32.mrb[0].mxu0
    %v3285 = vadd.f32 0.0, %v3284
    %v3286 = vpop.f32.mrb[0].mxu0
    %v3287 = vadd.f32 0.0, %v3286
    %3288 = vmatprep.mubr.f32.mxu0 0.0
    %3289 = vmatmul.mubr.f32.gmra.mrb[0].mxu0 %v3183
    %v3290 = vpop.f32.mrb[0].mxu0
    %v3291 = vadd.f32 0.0, %v3290
    %v3292 = vpop.f32.mrb[0].mxu0
    %v3293 = vadd.f32 0.0, %v3292
    %3294 = vmatprep.mubr.f32.mxu0 0.0
    %3295 = vmatmul.mubr.f32.gmra.mrb[0].mxu0 %v3186
    %v3296 = vpop.f32.mrb[0].mxu0
    %v3297 = vadd.f32 0.0, %v3296
    %v3298 = vpop.f32.mrb[0].mxu0
    %v3299 = vadd.f32 0.0, %v3298
    %3300 = vdwg.mxu0
    %s3301 = scalar_lea.vmem %s2, 384
    %v3302 = vld [vmem:[%s3301] sm:$0xff]
    %v3303 = vld [vmem:[%s3301 + $0x8] sm:$0xff]
    %v3304 = vld [vmem:[%s3301 + $0x10] sm:$0xff]
    %v3305 = vld [vmem:[%s3301 + $0x18] sm:$0xff]
    %v3306 = vld [vmem:[%s3301 + $0x20] sm:$0xff]
    %v3307 = vld [vmem:[%s3301 + $0x28] sm:$0xff]
    %v3308 = vld [vmem:[%s3301 + $0x30] sm:$0xff]
    %v3309 = vld [vmem:[%s3301 + $0x38] sm:$0xff]
    %s3310 = scalar_lea.vmem %s3, 384
    %v3311 = vld [vmem:[%s3310] sm:$0xff]
    %v3312 = vld [vmem:[%s3310 + $0x8] sm:$0xff]
    %v3313 = vld [vmem:[%s3310 + $0x10] sm:$0xff]
    %v3314 = vld [vmem:[%s3310 + $0x18] sm:$0xff]
    %v3315 = vld [vmem:[%s3310 + $0x20] sm:$0xff]
    %v3316 = vld [vmem:[%s3310 + $0x28] sm:$0xff]
    %v3317 = vld [vmem:[%s3310 + $0x30] sm:$0xff]
    %v3318 = vld [vmem:[%s3310 + $0x38] sm:$0xff]
    %v3319 = vadd.f32 %v3255, %v3261
    %v3320 = vadd.f32 %v3319, %v3267
    %v3321 = vadd.f32 %v3320, %v3273
    %v3322 = vrot.slane %v3321, 4
    %v3323 = vadd.f32 %v3321, %v3322
    %v3324 = vrot.slane %v3323, 2
    %v3325 = vadd.f32 %v3323, %v3324
    %v3326 = vrot.slane %v3325, 1
    %v3327 = vadd.f32 %v3325, %v3326
    %v3328 = vadd.f32 %v3257, %v3263
    %v3329 = vadd.f32 %v3328, %v3269
    %v3330 = vadd.f32 %v3329, %v3275
    %v3331 = vrot.slane %v3330, 4
    %v3332 = vadd.f32 %v3330, %v3331
    %v3333 = vrot.slane %v3332, 2
    %v3334 = vadd.f32 %v3332, %v3333
    %v3335 = vrot.slane %v3334, 1
    %v3336 = vadd.f32 %v3334, %v3335
    %v3337 = vmul.f32 %v3255, %v3255
    %v3338 = vmul.f32 %v3257, %v3257
    %v3339 = vmul.f32 %v3261, %v3261
    %v3340 = vmul.f32 %v3263, %v3263
    %v3341 = vmul.f32 %v3267, %v3267
    %v3342 = vmul.f32 %v3269, %v3269
    %v3343 = vmul.f32 %v3273, %v3273
    %v3344 = vmul.f32 %v3275, %v3275
    %v3345 = vadd.f32 %v3337, %v3339
    %v3346 = vadd.f32 %v3345, %v3341
    %v3347 = vadd.f32 %v3346, %v3343
    %v3348 = vrot.slane %v3347, 4
    %v3349 = vadd.f32 %v3347, %v3348
    %v3350 = vrot.slane %v3349, 2
    %v3351 = vadd.f32 %v3349, %v3350
    %v3352 = vrot.slane %v3351, 1
    %v3353 = vadd.f32 %v3351, %v3352
    %v3354 = vadd.f32 %v3338, %v3340
    %v3355 = vadd.f32 %v3354, %v3342
    %v3356 = vadd.f32 %v3355, %v3344
    %v3357 = vrot.slane %v3356, 4
    %v3358 = vadd.f32 %v3356, %v3357
    %v3359 = vrot.slane %v3358, 2
    %v3360 = vadd.f32 %v3358, %v3359
    %v3361 = vrot.slane %v3360, 1
    %v3362 = vadd.f32 %v3360, %v3361
    %v3363 = vmul.f32 %v3327, 0.03125
    %v3364 = vmul.f32 %v3336, 0.03125
    %v3365 = vmul.f32 %v3353, 0.03125
    %v3366 = vmul.f32 %v3362, 0.03125
    %v3367 = vmul.f32 %v3363, %v3363
    %v3368 = vmul.f32 %v3364, %v3364
    %v3369 = vsub.f32 %v3365, %v3367
    %v3370 = vsub.f32 %v3366, %v3368
    %v3371 = vsub.f32 %v3255, %v3363
    %v3372 = vsub.f32 %v3257, %v3364
    %v3373 = vsub.f32 %v3261, %v3363
    %v3374 = vsub.f32 %v3263, %v3364
    %v3375 = vsub.f32 %v3267, %v3363
    %v3376 = vsub.f32 %v3269, %v3364
    %v3377 = vsub.f32 %v3273, %v3363
    %v3378 = vsub.f32 %v3275, %v3364
    %v3379 = vadd.f32 %v3369, 1e-05
    %v3380 = vadd.f32 %v3370, 1e-05
    %v3381 = vrsqrt.pop %v3379
    %v3382 = vrsqrt.pop %v3380
    %v3383 = vmul.f32 %v3371, %v3381
    %v3384 = vmul.f32 %v3372, %v3382
    %v3385 = vmul.f32 %v3373, %v3381
    %v3386 = vmul.f32 %v3374, %v3382
    %v3387 = vmul.f32 %v3375, %v3381
    %v3388 = vmul.f32 %v3376, %v3382
    %v3389 = vmul.f32 %v3377, %v3381
    %v3390 = vmul.f32 %v3378, %v3382
    %v3391 = vadd.f32 %v3279, %v3285
    %v3392 = vadd.f32 %v3391, %v3291
    %v3393 = vadd.f32 %v3392, %v3297
    %v3394 = vrot.slane %v3393, 4
    %v3395 = vadd.f32 %v3393, %v3394
    %v3396 = vrot.slane %v3395, 2
    %v3397 = vadd.f32 %v3395, %v3396
    %v3398 = vrot.slane %v3397, 1
    %v3399 = vadd.f32 %v3397, %v3398
    %v3400 = vadd.f32 %v3281, %v3287
    %v3401 = vadd.f32 %v3400, %v3293
    %v3402 = vadd.f32 %v3401, %v3299
    %v3403 = vrot.slane %v3402, 4
    %v3404 = vadd.f32 %v3402, %v3403
    %v3405 = vrot.slane %v3404, 2
    %v3406 = vadd.f32 %v3404, %v3405
    %v3407 = vrot.slane %v3406, 1
    %v3408 = vadd.f32 %v3406, %v3407
    %v3409 = vmul.f32 %v3279, %v3279
    %v3410 = vmul.f32 %v3281, %v3281
    %v3411 = vmul.f32 %v3285, %v3285
    %v3412 = vmul.f32 %v3287, %v3287
    %v3413 = vmul.f32 %v3291, %v3291
    %v3414 = vmul.f32 %v3293, %v3293
    %v3415 = vmul.f32 %v3297, %v3297
    %v3416 = vmul.f32 %v3299, %v3299
    %v3417 = vadd.f32 %v3409, %v3411
    %v3418 = vadd.f32 %v3417, %v3413
    %v3419 = vadd.f32 %v3418, %v3415
    %v3420 = vrot.slane %v3419, 4
    %v3421 = vadd.f32 %v3419, %v3420
    %v3422 = vrot.slane %v3421, 2
    %v3423 = vadd.f32 %v3421, %v3422
    %v3424 = vrot.slane %v3423, 1
    %v3425 = vadd.f32 %v3423, %v3424
    %v3426 = vadd.f32 %v3410, %v3412
    %v3427 = vadd.f32 %v3426, %v3414
    %v3428 = vadd.f32 %v3427, %v3416
    %v3429 = vrot.slane %v3428, 4
    %v3430 = vadd.f32 %v3428, %v3429
    %v3431 = vrot.slane %v3430, 2
    %v3432 = vadd.f32 %v3430, %v3431
    %v3433 = vrot.slane %v3432, 1
    %v3434 = vadd.f32 %v3432, %v3433
    %v3435 = vmul.f32 %v3399, 0.03125
    %v3436 = vmul.f32 %v3408, 0.03125
    %v3437 = vmul.f32 %v3425, 0.03125
    %v3438 = vmul.f32 %v3434, 0.03125
    %v3439 = vmul.f32 %v3435, %v3435
    %v3440 = vmul.f32 %v3436, %v3436
    %v3441 = vsub.f32 %v3437, %v3439
    %v3442 = vsub.f32 %v3438, %v3440
    %v3443 = vsub.f32 %v3279, %v3435
    %v3444 = vsub.f32 %v3281, %v3436
    %v3445 = vsub.f32 %v3285, %v3435
    %v3446 = vsub.f32 %v3287, %v3436
    %v3447 = vsub.f32 %v3291, %v3435
    %v3448 = vsub.f32 %v3293, %v3436
    %v3449 = vsub.f32 %v3297, %v3435
    %v3450 = vsub.f32 %v3299, %v3436
    %v3451 = vadd.f32 %v3441, 1e-05
    %v3452 = vadd.f32 %v3442, 1e-05
    %v3453 = vrsqrt.pop %v3451
    %v3454 = vrsqrt.pop %v3452
    %v3455 = vmul.f32 %v3443, %v3453
    %v3456 = vmul.f32 %v3444, %v3454
    %v3457 = vmul.f32 %v3445, %v3453
    %v3458 = vmul.f32 %v3446, %v3454
    %v3459 = vmul.f32 %v3447, %v3453
    %v3460 = vmul.f32 %v3448, %v3454
    %v3461 = vmul.f32 %v3449, %v3453
    %v3462 = vmul.f32 %v3450, %v3454
    %3464 = vset.pattern.permute.xlu0 0
    %3465 = vperm.xlu0 %3464, %v3302
    %v3466 = vpop.permute.xlu0 %3465
    %3469 = vset.pattern.permute.xlu0 0
    %3470 = vperm.xlu0 %3469, %v3303
    %v3471 = vpop.permute.xlu0 %3470
    %3474 = vset.pattern.permute.xlu0 0
    %3475 = vperm.xlu0 %3474, %v3304
    %v3476 = vpop.permute.xlu0 %3475
    %3479 = vset.pattern.permute.xlu0 0
    %3480 = vperm.xlu0 %3479, %v3305
    %v3481 = vpop.permute.xlu0 %3480
    %3484 = vset.pattern.permute.xlu0 0
    %3485 = vperm.xlu0 %3484, %v3306
    %v3486 = vpop.permute.xlu0 %3485
    %3489 = vset.pattern.permute.xlu0 0
    %3490 = vperm.xlu0 %3489, %v3307
    %v3491 = vpop.permute.xlu0 %3490
    %3494 = vset.pattern.permute.xlu0 0
    %3495 = vperm.xlu0 %3494, %v3308
    %v3496 = vpop.permute.xlu0 %3495
    %3499 = vset.pattern.permute.xlu0 0
    %3500 = vperm.xlu0 %3499, %v3309
    %v3501 = vpop.permute.xlu0 %3500
    %v3503 = vmul.f32 %v3383, %v3466
    %v3504 = vmul.f32 %v3384, %v3466
    %v3505 = vmul.f32 %v3385, %v3471
    %v3506 = vmul.f32 %v3386, %v3471
    %v3507 = vmul.f32 %v3387, %v3476
    %v3508 = vmul.f32 %v3388, %v3476
    %v3509 = vmul.f32 %v3389, %v3481
    %v3510 = vmul.f32 %v3390, %v3481
    %v3511 = vmul.f32 %v3455, %v3486
    %v3512 = vmul.f32 %v3456, %v3486
    %v3513 = vmul.f32 %v3457, %v3491
    %v3514 = vmul.f32 %v3458, %v3491
    %v3515 = vmul.f32 %v3459, %v3496
    %v3516 = vmul.f32 %v3460, %v3496
    %v3517 = vmul.f32 %v3461, %v3501
    %v3518 = vmul.f32 %v3462, %v3501
    %3520 = vset.pattern.permute.xlu0 0
    %3521 = vperm.xlu0 %3520, %v3311
    %v3522 = vpop.permute.xlu0 %3521
    %3525 = vset.pattern.permute.xlu0 0
    %3526 = vperm.xlu0 %3525, %v3312
    %v3527 = vpop.permute.xlu0 %3526
    %3530 = vset.pattern.permute.xlu0 0
    %3531 = vperm.xlu0 %3530, %v3313
    %v3532 = vpop.permute.xlu0 %3531
    %3535 = vset.pattern.permute.xlu0 0
    %3536 = vperm.xlu0 %3535, %v3314
    %v3537 = vpop.permute.xlu0 %3536
    %3540 = vset.pattern.permute.xlu0 0
    %3541 = vperm.xlu0 %3540, %v3315
    %v3542 = vpop.permute.xlu0 %3541
    %3545 = vset.pattern.permute.xlu0 0
    %3546 = vperm.xlu0 %3545, %v3316
    %v3547 = vpop.permute.xlu0 %3546
    %3550 = vset.pattern.permute.xlu0 0
    %3551 = vperm.xlu0 %3550, %v3317
    %v3552 = vpop.permute.xlu0 %3551
    %3555 = vset.pattern.permute.xlu0 0
    %3556 = vperm.xlu0 %3555, %v3318
    %v3557 = vpop.permute.xlu0 %3556
    %v3559 = vadd.f32 %v3503, %v3522
    %v3560 = vadd.f32 %v3504, %v3522
    %v3561 = vadd.f32 %v3505, %v3527
    %v3562 = vadd.f32 %v3506, %v3527
    %v3563 = vadd.f32 %v3507, %v3532
    %v3564 = vadd.f32 %v3508, %v3532
    %v3565 = vadd.f32 %v3509, %v3537
    %v3566 = vadd.f32 %v3510, %v3537
    %v3567 = vadd.f32 %v3511, %v3542
    %v3568 = vadd.f32 %v3512, %v3542
    %v3569 = vadd.f32 %v3513, %v3547
    %v3570 = vadd.f32 %v3514, %v3547
    %v3571 = vadd.f32 %v3515, %v3552
    %v3572 = vadd.f32 %v3516, %v3552
    %v3573 = vadd.f32 %v3517, %v3557
    %v3574 = vadd.f32 %v3518, %v3557
    %s3575 = sld [smem:[#allocation2 + $0x6]]
    %v3576 = vmul.f32 %v3559, %v3559
    %v3577 = vmul.f32 %v3560, %v3560
    %v3578 = vmul.f32 %v3561, %v3561
    %v3579 = vmul.f32 %v3562, %v3562
    %v3580 = vmul.f32 %v3563, %v3563
    %v3581 = vmul.f32 %v3564, %v3564
    %v3582 = vmul.f32 %v3565, %v3565
    %v3583 = vmul.f32 %v3566, %v3566
    %v3584 = vmul.f32 %v3567, %v3567
    %v3585 = vmul.f32 %v3568, %v3568
    %v3586 = vmul.f32 %v3569, %v3569
    %v3587 = vmul.f32 %v3570, %v3570
    %v3588 = vmul.f32 %v3571, %v3571
    %v3589 = vmul.f32 %v3572, %v3572
    %v3590 = vmul.f32 %v3573, %v3573
    %v3591 = vmul.f32 %v3574, %v3574
    %v3592 = vadd.f32 %v3576, %v3584
    %v3593 = vadd.f32 %v3577, %v3585
    %v3594 = vadd.f32 %v3578, %v3586
    %v3595 = vadd.f32 %v3579, %v3587
    %v3596 = vadd.f32 %v3580, %v3588
    %v3597 = vadd.f32 %v3581, %v3589
    %v3598 = vadd.f32 %v3582, %v3590
    %v3599 = vadd.f32 %v3583, %v3591
    %vm3600 = vcmp.gt.f32.partialorder %v3592, 0.0
    %vm3601 = vcmp.gt.f32.partialorder %v3593, 0.0
    %vm3602 = vcmp.gt.f32.partialorder %v3594, 0.0
    %vm3603 = vcmp.gt.f32.partialorder %v3595, 0.0
    %vm3604 = vcmp.gt.f32.partialorder %v3596, 0.0
    %vm3605 = vcmp.gt.f32.partialorder %v3597, 0.0
    %vm3606 = vcmp.gt.f32.partialorder %v3598, 0.0
    %vm3607 = vcmp.gt.f32.partialorder %v3599, 0.0
    %v3608 = vrsqrt.pop %v3592
    %v3609 = vrsqrt.pop %v3593
    %v3610 = vrsqrt.pop %v3594
    %v3611 = vrsqrt.pop %v3595
    %v3612 = vrsqrt.pop %v3596
    %v3613 = vrsqrt.pop %v3597
    %v3614 = vrsqrt.pop %v3598
    %v3615 = vrsqrt.pop %v3599
    %v3616 = vsel %vm3600, %v3608, 0.0
    %v3617 = vsel %vm3601, %v3609, 0.0
    %v3618 = vsel %vm3602, %v3610, 0.0
    %v3619 = vsel %vm3603, %v3611, 0.0
    %v3620 = vsel %vm3604, %v3612, 0.0
    %v3621 = vsel %vm3605, %v3613, 0.0
    %v3622 = vsel %vm3606, %v3614, 0.0
    %v3623 = vsel %vm3607, %v3615, 0.0
    %v3624 = vstv %s3575
    %v3625 = vmul.f32 %v3624, %v3616
    %v3626 = vmul.f32 %v3624, %v3617
    %v3627 = vmul.f32 %v3624, %v3618
    %v3628 = vmul.f32 %v3624, %v3619
    %v3629 = vmul.f32 %v3624, %v3620
    %v3630 = vmul.f32 %v3624, %v3621
    %v3631 = vmul.f32 %v3624, %v3622
    %v3632 = vmul.f32 %v3624, %v3623
    %v3633 = vsub.f32 1.0, %v3625
    %v3634 = vsub.f32 1.0, %v3626
    %v3635 = vsub.f32 1.0, %v3627
    %v3636 = vsub.f32 1.0, %v3628
    %v3637 = vsub.f32 1.0, %v3629
    %v3638 = vsub.f32 1.0, %v3630
    %v3639 = vsub.f32 1.0, %v3631
    %v3640 = vsub.f32 1.0, %v3632
    %v3641 = vmax.f32 %v3633, 0.0
    %v3642 = vmax.f32 %v3634, 0.0
    %v3643 = vmax.f32 %v3635, 0.0
    %v3644 = vmax.f32 %v3636, 0.0
    %v3645 = vmax.f32 %v3637, 0.0
    %v3646 = vmax.f32 %v3638, 0.0
    %v3647 = vmax.f32 %v3639, 0.0
    %v3648 = vmax.f32 %v3640, 0.0
    %v3649 = vmul.f32 %v3559, %v3641
    %v3650 = vmul.f32 %v3560, %v3642
    %v3651 = vmul.f32 %v3561, %v3643
    %v3652 = vmul.f32 %v3562, %v3644
    %v3653 = vmul.f32 %v3563, %v3645
    %v3654 = vmul.f32 %v3564, %v3646
    %v3655 = vmul.f32 %v3565, %v3647
    %v3656 = vmul.f32 %v3566, %v3648
    %v3657 = vmul.f32 %v3567, %v3641
    %v3658 = vmul.f32 %v3568, %v3642
    %v3659 = vmul.f32 %v3569, %v3643
    %v3660 = vmul.f32 %v3570, %v3644
    %v3661 = vmul.f32 %v3571, %v3645
    %v3662 = vmul.f32 %v3572, %v3646
    %v3663 = vmul.f32 %v3573, %v3647
    %v3664 = vmul.f32 %v3574, %v3648
    %s3665 = scalar_lea.vmem %s1, 448
    %v3666 = vld [vmem:[%s3665] sm:$0xff]
    %v3667 = vld [vmem:[%s3665 + $0x8] sm:$0xff]
    %v3668 = vld [vmem:[%s3665 + $0x10] sm:$0xff]
    %v3669 = vld [vmem:[%s3665 + $0x18] sm:$0xff]
    %v3670 = vld [vmem:[%s3665 + $0x20] sm:$0xff]
    %v3671 = vld [vmem:[%s3665 + $0x28] sm:$0xff]
    %v3672 = vld [vmem:[%s3665 + $0x30] sm:$0xff]
    %v3673 = vld [vmem:[%s3665 + $0x38] sm:$0xff]
    %v3675 = vsel %vm57, %v3666, 0
    %v3678 = vsel %vm57, %v3667, 0
    %v3681 = vsel %vm57, %v3668, 0
    %v3684 = vsel %vm57, %v3669, 0
    %v3687 = vsel %vm57, %v3670, 0
    %v3690 = vsel %vm57, %v3671, 0
    %v3693 = vsel %vm57, %v3672, 0
    %v3696 = vsel %vm57, %v3673, 0
    %3698 = vmatprep.subr.mxu0 %v3650
    %3699 = vmatpush1.msra.mxu0 %v3649
    %3700 = vmatprep.subr.mxu0 %v3652
    %3701 = vmatpush1.msra.mxu0 %v3651
    %3702 = vmatprep.subr.mxu0 %v3654
    %3703 = vmatpush1.msra.mxu0 %v3653
    %3704 = vmatprep.subr.mxu0 %v3656
    %3705 = vmatpush1.msra.mxu0 %v3655
    %3706 = vmatprep.subr.mxu0 %v3658
    %3707 = vmatpush1.msra.mxu0 %v3657
    %3708 = vmatprep.subr.mxu0 %v3660
    %3709 = vmatpush1.msra.mxu0 %v3659
    %3710 = vmatprep.subr.mxu0 %v3662
    %3711 = vmatpush1.msra.mxu0 %v3661
    %3712 = vmatprep.subr.mxu0 %v3664
    %3713 = vmatpush1.msra.mxu0 %v3663
    %3714 = vmatprep.subr.mxu0 0.0
    %3715 = vmatpush1.msra.mxu0 0.0
    %3716 = vmatprep.subr.mxu0 0.0
    %3717 = vmatpush1.msra.mxu0 0.0
    %3718 = vmatprep.subr.mxu0 0.0
    %3719 = vmatpush1.msra.mxu0 0.0
    %3720 = vmatprep.subr.mxu0 0.0
    %3721 = vmatpush1.msra.mxu0 0.0
    %3722 = vmatprep.subr.mxu0 0.0
    %3723 = vmatpush1.msra.mxu0 0.0
    %3724 = vmatprep.subr.mxu0 0.0
    %3725 = vmatpush1.msra.mxu0 0.0
    %3726 = vmatprep.subr.mxu0 0.0
    %3727 = vmatpush1.msra.mxu0 0.0
    %3728 = vmatprep.subr.mxu0 0.0
    %3729 = vmatpush1.msra.mxu0 0.0
    %3730 = vmatprep.subr.mxu0 0.0
    %3731 = vmatpush1.msra.mxu0 0.0
    %3732 = vmatprep.subr.mxu0 0.0
    %3733 = vmatpush1.msra.mxu0 0.0
    %3734 = vmatprep.subr.mxu0 0.0
    %3735 = vmatpush1.msra.mxu0 0.0
    %3736 = vmatprep.subr.mxu0 0.0
    %3737 = vmatpush1.msra.mxu0 0.0
    %3738 = vmatprep.subr.mxu0 0.0
    %3739 = vmatpush1.msra.mxu0 0.0
    %3740 = vmatprep.subr.mxu0 0.0
    %3741 = vmatpush1.msra.mxu0 0.0
    %3742 = vmatprep.subr.mxu0 0.0
    %3743 = vmatpush1.msra.mxu0 0.0
    %3744 = vmatprep.subr.mxu0 0.0
    %3745 = vmatpush1.msra.mxu0 0.0
    %3746 = vmatprep.subr.mxu0 0.0
    %3747 = vmatpush1.msra.mxu0 0.0
    %3748 = vmatprep.subr.mxu0 0.0
    %3749 = vmatpush1.msra.mxu0 0.0
    %3750 = vmatprep.subr.mxu0 0.0
    %3751 = vmatpush1.msra.mxu0 0.0
    %3752 = vmatprep.subr.mxu0 0.0
    %3753 = vmatpush1.msra.mxu0 0.0
    %3754 = vmatprep.subr.mxu0 0.0
    %3755 = vmatpush1.msra.mxu0 0.0
    %3756 = vmatprep.subr.mxu0 0.0
    %3757 = vmatpush1.msra.mxu0 0.0
    %3758 = vmatprep.subr.mxu0 0.0
    %3759 = vmatpush1.msra.mxu0 0.0
    %3760 = vmatprep.subr.mxu0 0.0
    %3761 = vmatpush1.msra.mxu0 0.0
    %3762 = vmatprep.mubr.f32.mxu0 0.0
    %3763 = vmatmul.mubr.f32.gmra.mrb[0].mxu0 %v3675
    %v3764 = vpop.f32.mrb[0].mxu0
    %v3765 = vadd.f32 0.0, %v3764
    %v3766 = vpop.f32.mrb[0].mxu0
    %v3767 = vadd.f32 0.0, %v3766
    %3768 = vmatprep.mubr.f32.mxu0 0.0
    %3769 = vmatmul.mubr.f32.gmra.mrb[0].mxu0 %v3678
    %v3770 = vpop.f32.mrb[0].mxu0
    %v3771 = vadd.f32 0.0, %v3770
    %v3772 = vpop.f32.mrb[0].mxu0
    %v3773 = vadd.f32 0.0, %v3772
    %3774 = vmatprep.mubr.f32.mxu0 0.0
    %3775 = vmatmul.mubr.f32.gmra.mrb[0].mxu0 %v3681
    %v3776 = vpop.f32.mrb[0].mxu0
    %v3777 = vadd.f32 0.0, %v3776
    %v3778 = vpop.f32.mrb[0].mxu0
    %v3779 = vadd.f32 0.0, %v3778
    %3780 = vmatprep.mubr.f32.mxu0 0.0
    %3781 = vmatmul.mubr.f32.gmra.mrb[0].mxu0 %v3684
    %v3782 = vpop.f32.mrb[0].mxu0
    %v3783 = vadd.f32 0.0, %v3782
    %v3784 = vpop.f32.mrb[0].mxu0
    %v3785 = vadd.f32 0.0, %v3784
    %3786 = vmatprep.mubr.f32.mxu0 0.0
    %3787 = vmatmul.mubr.f32.gmra.mrb[0].mxu0 %v3687
    %v3788 = vpop.f32.mrb[0].mxu0
    %v3789 = vadd.f32 0.0, %v3788
    %v3790 = vpop.f32.mrb[0].mxu0
    %v3791 = vadd.f32 0.0, %v3790
    %3792 = vmatprep.mubr.f32.mxu0 0.0
    %3793 = vmatmul.mubr.f32.gmra.mrb[0].mxu0 %v3690
    %v3794 = vpop.f32.mrb[0].mxu0
    %v3795 = vadd.f32 0.0, %v3794
    %v3796 = vpop.f32.mrb[0].mxu0
    %v3797 = vadd.f32 0.0, %v3796
    %3798 = vmatprep.mubr.f32.mxu0 0.0
    %3799 = vmatmul.mubr.f32.gmra.mrb[0].mxu0 %v3693
    %v3800 = vpop.f32.mrb[0].mxu0
    %v3801 = vadd.f32 0.0, %v3800
    %v3802 = vpop.f32.mrb[0].mxu0
    %v3803 = vadd.f32 0.0, %v3802
    %3804 = vmatprep.mubr.f32.mxu0 0.0
    %3805 = vmatmul.mubr.f32.gmra.mrb[0].mxu0 %v3696
    %v3806 = vpop.f32.mrb[0].mxu0
    %v3807 = vadd.f32 0.0, %v3806
    %v3808 = vpop.f32.mrb[0].mxu0
    %v3809 = vadd.f32 0.0, %v3808
    %3810 = vdwg.mxu0
    %s3811 = scalar_lea.vmem %s2, 448
    %v3812 = vld [vmem:[%s3811] sm:$0xff]
    %v3813 = vld [vmem:[%s3811 + $0x8] sm:$0xff]
    %v3814 = vld [vmem:[%s3811 + $0x10] sm:$0xff]
    %v3815 = vld [vmem:[%s3811 + $0x18] sm:$0xff]
    %v3816 = vld [vmem:[%s3811 + $0x20] sm:$0xff]
    %v3817 = vld [vmem:[%s3811 + $0x28] sm:$0xff]
    %v3818 = vld [vmem:[%s3811 + $0x30] sm:$0xff]
    %v3819 = vld [vmem:[%s3811 + $0x38] sm:$0xff]
    %s3820 = scalar_lea.vmem %s3, 448
    %v3821 = vld [vmem:[%s3820] sm:$0xff]
    %v3822 = vld [vmem:[%s3820 + $0x8] sm:$0xff]
    %v3823 = vld [vmem:[%s3820 + $0x10] sm:$0xff]
    %v3824 = vld [vmem:[%s3820 + $0x18] sm:$0xff]
    %v3825 = vld [vmem:[%s3820 + $0x20] sm:$0xff]
    %v3826 = vld [vmem:[%s3820 + $0x28] sm:$0xff]
    %v3827 = vld [vmem:[%s3820 + $0x30] sm:$0xff]
    %v3828 = vld [vmem:[%s3820 + $0x38] sm:$0xff]
    %v3829 = vadd.f32 %v3765, %v3771
    %v3830 = vadd.f32 %v3829, %v3777
    %v3831 = vadd.f32 %v3830, %v3783
    %v3832 = vrot.slane %v3831, 4
    %v3833 = vadd.f32 %v3831, %v3832
    %v3834 = vrot.slane %v3833, 2
    %v3835 = vadd.f32 %v3833, %v3834
    %v3836 = vrot.slane %v3835, 1
    %v3837 = vadd.f32 %v3835, %v3836
    %v3838 = vadd.f32 %v3767, %v3773
    %v3839 = vadd.f32 %v3838, %v3779
    %v3840 = vadd.f32 %v3839, %v3785
    %v3841 = vrot.slane %v3840, 4
    %v3842 = vadd.f32 %v3840, %v3841
    %v3843 = vrot.slane %v3842, 2
    %v3844 = vadd.f32 %v3842, %v3843
    %v3845 = vrot.slane %v3844, 1
    %v3846 = vadd.f32 %v3844, %v3845
    %v3847 = vmul.f32 %v3765, %v3765
    %v3848 = vmul.f32 %v3767, %v3767
    %v3849 = vmul.f32 %v3771, %v3771
    %v3850 = vmul.f32 %v3773, %v3773
    %v3851 = vmul.f32 %v3777, %v3777
    %v3852 = vmul.f32 %v3779, %v3779
    %v3853 = vmul.f32 %v3783, %v3783
    %v3854 = vmul.f32 %v3785, %v3785
    %v3855 = vadd.f32 %v3847, %v3849
    %v3856 = vadd.f32 %v3855, %v3851
    %v3857 = vadd.f32 %v3856, %v3853
    %v3858 = vrot.slane %v3857, 4
    %v3859 = vadd.f32 %v3857, %v3858
    %v3860 = vrot.slane %v3859, 2
    %v3861 = vadd.f32 %v3859, %v3860
    %v3862 = vrot.slane %v3861, 1
    %v3863 = vadd.f32 %v3861, %v3862
    %v3864 = vadd.f32 %v3848, %v3850
    %v3865 = vadd.f32 %v3864, %v3852
    %v3866 = vadd.f32 %v3865, %v3854
    %v3867 = vrot.slane %v3866, 4
    %v3868 = vadd.f32 %v3866, %v3867
    %v3869 = vrot.slane %v3868, 2
    %v3870 = vadd.f32 %v3868, %v3869
    %v3871 = vrot.slane %v3870, 1
    %v3872 = vadd.f32 %v3870, %v3871
    %v3873 = vmul.f32 %v3837, 0.03125
    %v3874 = vmul.f32 %v3846, 0.03125
    %v3875 = vmul.f32 %v3863, 0.03125
    %v3876 = vmul.f32 %v3872, 0.03125
    %v3877 = vmul.f32 %v3873, %v3873
    %v3878 = vmul.f32 %v3874, %v3874
    %v3879 = vsub.f32 %v3875, %v3877
    %v3880 = vsub.f32 %v3876, %v3878
    %v3881 = vsub.f32 %v3765, %v3873
    %v3882 = vsub.f32 %v3767, %v3874
    %v3883 = vsub.f32 %v3771, %v3873
    %v3884 = vsub.f32 %v3773, %v3874
    %v3885 = vsub.f32 %v3777, %v3873
    %v3886 = vsub.f32 %v3779, %v3874
    %v3887 = vsub.f32 %v3783, %v3873
    %v3888 = vsub.f32 %v3785, %v3874
    %v3889 = vadd.f32 %v3879, 1e-05
    %v3890 = vadd.f32 %v3880, 1e-05
    %v3891 = vrsqrt.pop %v3889
    %v3892 = vrsqrt.pop %v3890
    %v3893 = vmul.f32 %v3881, %v3891
    %v3894 = vmul.f32 %v3882, %v3892
    %v3895 = vmul.f32 %v3883, %v3891
    %v3896 = vmul.f32 %v3884, %v3892
    %v3897 = vmul.f32 %v3885, %v3891
    %v3898 = vmul.f32 %v3886, %v3892
    %v3899 = vmul.f32 %v3887, %v3891
    %v3900 = vmul.f32 %v3888, %v3892
    %v3901 = vadd.f32 %v3789, %v3795
    %v3902 = vadd.f32 %v3901, %v3801
    %v3903 = vadd.f32 %v3902, %v3807
    %v3904 = vrot.slane %v3903, 4
    %v3905 = vadd.f32 %v3903, %v3904
    %v3906 = vrot.slane %v3905, 2
    %v3907 = vadd.f32 %v3905, %v3906
    %v3908 = vrot.slane %v3907, 1
    %v3909 = vadd.f32 %v3907, %v3908
    %v3910 = vadd.f32 %v3791, %v3797
    %v3911 = vadd.f32 %v3910, %v3803
    %v3912 = vadd.f32 %v3911, %v3809
    %v3913 = vrot.slane %v3912, 4
    %v3914 = vadd.f32 %v3912, %v3913
    %v3915 = vrot.slane %v3914, 2
    %v3916 = vadd.f32 %v3914, %v3915
    %v3917 = vrot.slane %v3916, 1
    %v3918 = vadd.f32 %v3916, %v3917
    %v3919 = vmul.f32 %v3789, %v3789
    %v3920 = vmul.f32 %v3791, %v3791
    %v3921 = vmul.f32 %v3795, %v3795
    %v3922 = vmul.f32 %v3797, %v3797
    %v3923 = vmul.f32 %v3801, %v3801
    %v3924 = vmul.f32 %v3803, %v3803
    %v3925 = vmul.f32 %v3807, %v3807
    %v3926 = vmul.f32 %v3809, %v3809
    %v3927 = vadd.f32 %v3919, %v3921
    %v3928 = vadd.f32 %v3927, %v3923
    %v3929 = vadd.f32 %v3928, %v3925
    %v3930 = vrot.slane %v3929, 4
    %v3931 = vadd.f32 %v3929, %v3930
    %v3932 = vrot.slane %v3931, 2
    %v3933 = vadd.f32 %v3931, %v3932
    %v3934 = vrot.slane %v3933, 1
    %v3935 = vadd.f32 %v3933, %v3934
    %v3936 = vadd.f32 %v3920, %v3922
    %v3937 = vadd.f32 %v3936, %v3924
    %v3938 = vadd.f32 %v3937, %v3926
    %v3939 = vrot.slane %v3938, 4
    %v3940 = vadd.f32 %v3938, %v3939
    %v3941 = vrot.slane %v3940, 2
    %v3942 = vadd.f32 %v3940, %v3941
    %v3943 = vrot.slane %v3942, 1
    %v3944 = vadd.f32 %v3942, %v3943
    %v3945 = vmul.f32 %v3909, 0.03125
    %v3946 = vmul.f32 %v3918, 0.03125
    %v3947 = vmul.f32 %v3935, 0.03125
    %v3948 = vmul.f32 %v3944, 0.03125
    %v3949 = vmul.f32 %v3945, %v3945
    %v3950 = vmul.f32 %v3946, %v3946
    %v3951 = vsub.f32 %v3947, %v3949
    %v3952 = vsub.f32 %v3948, %v3950
    %v3953 = vsub.f32 %v3789, %v3945
    %v3954 = vsub.f32 %v3791, %v3946
    %v3955 = vsub.f32 %v3795, %v3945
    %v3956 = vsub.f32 %v3797, %v3946
    %v3957 = vsub.f32 %v3801, %v3945
    %v3958 = vsub.f32 %v3803, %v3946
    %v3959 = vsub.f32 %v3807, %v3945
    %v3960 = vsub.f32 %v3809, %v3946
    %v3961 = vadd.f32 %v3951, 1e-05
    %v3962 = vadd.f32 %v3952, 1e-05
    %v3963 = vrsqrt.pop %v3961
    %v3964 = vrsqrt.pop %v3962
    %v3965 = vmul.f32 %v3953, %v3963
    %v3966 = vmul.f32 %v3954, %v3964
    %v3967 = vmul.f32 %v3955, %v3963
    %v3968 = vmul.f32 %v3956, %v3964
    %v3969 = vmul.f32 %v3957, %v3963
    %v3970 = vmul.f32 %v3958, %v3964
    %v3971 = vmul.f32 %v3959, %v3963
    %v3972 = vmul.f32 %v3960, %v3964
    %3974 = vset.pattern.permute.xlu0 0
    %3975 = vperm.xlu0 %3974, %v3812
    %v3976 = vpop.permute.xlu0 %3975
    %3979 = vset.pattern.permute.xlu0 0
    %3980 = vperm.xlu0 %3979, %v3813
    %v3981 = vpop.permute.xlu0 %3980
    %3984 = vset.pattern.permute.xlu0 0
    %3985 = vperm.xlu0 %3984, %v3814
    %v3986 = vpop.permute.xlu0 %3985
    %3989 = vset.pattern.permute.xlu0 0
    %3990 = vperm.xlu0 %3989, %v3815
    %v3991 = vpop.permute.xlu0 %3990
    %3994 = vset.pattern.permute.xlu0 0
    %3995 = vperm.xlu0 %3994, %v3816
    %v3996 = vpop.permute.xlu0 %3995
    %3999 = vset.pattern.permute.xlu0 0
    %4000 = vperm.xlu0 %3999, %v3817
    %v4001 = vpop.permute.xlu0 %4000
    %4004 = vset.pattern.permute.xlu0 0
    %4005 = vperm.xlu0 %4004, %v3818
    %v4006 = vpop.permute.xlu0 %4005
    %4009 = vset.pattern.permute.xlu0 0
    %4010 = vperm.xlu0 %4009, %v3819
    %v4011 = vpop.permute.xlu0 %4010
    %v4013 = vmul.f32 %v3893, %v3976
    %v4014 = vmul.f32 %v3894, %v3976
    %v4015 = vmul.f32 %v3895, %v3981
    %v4016 = vmul.f32 %v3896, %v3981
    %v4017 = vmul.f32 %v3897, %v3986
    %v4018 = vmul.f32 %v3898, %v3986
    %v4019 = vmul.f32 %v3899, %v3991
    %v4020 = vmul.f32 %v3900, %v3991
    %v4021 = vmul.f32 %v3965, %v3996
    %v4022 = vmul.f32 %v3966, %v3996
    %v4023 = vmul.f32 %v3967, %v4001
    %v4024 = vmul.f32 %v3968, %v4001
    %v4025 = vmul.f32 %v3969, %v4006
    %v4026 = vmul.f32 %v3970, %v4006
    %v4027 = vmul.f32 %v3971, %v4011
    %v4028 = vmul.f32 %v3972, %v4011
    %4030 = vset.pattern.permute.xlu0 0
    %4031 = vperm.xlu0 %4030, %v3821
    %v4032 = vpop.permute.xlu0 %4031
    %4035 = vset.pattern.permute.xlu0 0
    %4036 = vperm.xlu0 %4035, %v3822
    %v4037 = vpop.permute.xlu0 %4036
    %4040 = vset.pattern.permute.xlu0 0
    %4041 = vperm.xlu0 %4040, %v3823
    %v4042 = vpop.permute.xlu0 %4041
    %4045 = vset.pattern.permute.xlu0 0
    %4046 = vperm.xlu0 %4045, %v3824
    %v4047 = vpop.permute.xlu0 %4046
    %4050 = vset.pattern.permute.xlu0 0
    %4051 = vperm.xlu0 %4050, %v3825
    %v4052 = vpop.permute.xlu0 %4051
    %4055 = vset.pattern.permute.xlu0 0
    %4056 = vperm.xlu0 %4055, %v3826
    %v4057 = vpop.permute.xlu0 %4056
    %4060 = vset.pattern.permute.xlu0 0
    %4061 = vperm.xlu0 %4060, %v3827
    %v4062 = vpop.permute.xlu0 %4061
    %4065 = vset.pattern.permute.xlu0 0
    %4066 = vperm.xlu0 %4065, %v3828
    %v4067 = vpop.permute.xlu0 %4066
    %v4069 = vadd.f32 %v4013, %v4032
    %v4070 = vadd.f32 %v4014, %v4032
    %v4071 = vadd.f32 %v4015, %v4037
    %v4072 = vadd.f32 %v4016, %v4037
    %v4073 = vadd.f32 %v4017, %v4042
    %v4074 = vadd.f32 %v4018, %v4042
    %v4075 = vadd.f32 %v4019, %v4047
    %v4076 = vadd.f32 %v4020, %v4047
    %v4077 = vadd.f32 %v4021, %v4052
    %v4078 = vadd.f32 %v4022, %v4052
    %v4079 = vadd.f32 %v4023, %v4057
    %v4080 = vadd.f32 %v4024, %v4057
    %v4081 = vadd.f32 %v4025, %v4062
    %v4082 = vadd.f32 %v4026, %v4062
    %v4083 = vadd.f32 %v4027, %v4067
    %v4084 = vadd.f32 %v4028, %v4067
    %v4085 = vadd.f32 %v4069, %v3139
    %v4086 = vadd.f32 %v4070, %v3140
    %v4087 = vadd.f32 %v4071, %v3141
    %v4088 = vadd.f32 %v4072, %v3142
    %v4089 = vadd.f32 %v4073, %v3143
    %v4090 = vadd.f32 %v4074, %v3144
    %v4091 = vadd.f32 %v4075, %v3145
    %v4092 = vadd.f32 %v4076, %v3146
    %v4093 = vadd.f32 %v4077, %v3147
    %v4094 = vadd.f32 %v4078, %v3148
    %v4095 = vadd.f32 %v4079, %v3149
    %v4096 = vadd.f32 %v4080, %v3150
    %v4097 = vadd.f32 %v4081, %v3151
    %v4098 = vadd.f32 %v4082, %v3152
    %v4099 = vadd.f32 %v4083, %v3153
    %v4100 = vadd.f32 %v4084, %v3154
    %s4101 = sld [smem:[#allocation2 + $0x7]]
    %v4102 = vmul.f32 %v4085, %v4085
    %v4103 = vmul.f32 %v4086, %v4086
    %v4104 = vmul.f32 %v4087, %v4087
    %v4105 = vmul.f32 %v4088, %v4088
    %v4106 = vmul.f32 %v4089, %v4089
    %v4107 = vmul.f32 %v4090, %v4090
    %v4108 = vmul.f32 %v4091, %v4091
    %v4109 = vmul.f32 %v4092, %v4092
    %v4110 = vmul.f32 %v4093, %v4093
    %v4111 = vmul.f32 %v4094, %v4094
    %v4112 = vmul.f32 %v4095, %v4095
    %v4113 = vmul.f32 %v4096, %v4096
    %v4114 = vmul.f32 %v4097, %v4097
    %v4115 = vmul.f32 %v4098, %v4098
    %v4116 = vmul.f32 %v4099, %v4099
    %v4117 = vmul.f32 %v4100, %v4100
    %v4118 = vadd.f32 %v4102, %v4110
    %v4119 = vadd.f32 %v4103, %v4111
    %v4120 = vadd.f32 %v4104, %v4112
    %v4121 = vadd.f32 %v4105, %v4113
    %v4122 = vadd.f32 %v4106, %v4114
    %v4123 = vadd.f32 %v4107, %v4115
    %v4124 = vadd.f32 %v4108, %v4116
    %v4125 = vadd.f32 %v4109, %v4117
    %vm4126 = vcmp.gt.f32.partialorder %v4118, 0.0
    %vm4127 = vcmp.gt.f32.partialorder %v4119, 0.0
    %vm4128 = vcmp.gt.f32.partialorder %v4120, 0.0
    %vm4129 = vcmp.gt.f32.partialorder %v4121, 0.0
    %vm4130 = vcmp.gt.f32.partialorder %v4122, 0.0
    %vm4131 = vcmp.gt.f32.partialorder %v4123, 0.0
    %vm4132 = vcmp.gt.f32.partialorder %v4124, 0.0
    %vm4133 = vcmp.gt.f32.partialorder %v4125, 0.0
    %v4134 = vrsqrt.pop %v4118
    %v4135 = vrsqrt.pop %v4119
    %v4136 = vrsqrt.pop %v4120
    %v4137 = vrsqrt.pop %v4121
    %v4138 = vrsqrt.pop %v4122
    %v4139 = vrsqrt.pop %v4123
    %v4140 = vrsqrt.pop %v4124
    %v4141 = vrsqrt.pop %v4125
    %v4142 = vsel %vm4126, %v4134, 0.0
    %v4143 = vsel %vm4127, %v4135, 0.0
    %v4144 = vsel %vm4128, %v4136, 0.0
    %v4145 = vsel %vm4129, %v4137, 0.0
    %v4146 = vsel %vm4130, %v4138, 0.0
    %v4147 = vsel %vm4131, %v4139, 0.0
    %v4148 = vsel %vm4132, %v4140, 0.0
    %v4149 = vsel %vm4133, %v4141, 0.0
    %v4150 = vstv %s4101
    %v4151 = vmul.f32 %v4150, %v4142
    %v4152 = vmul.f32 %v4150, %v4143
    %v4153 = vmul.f32 %v4150, %v4144
    %v4154 = vmul.f32 %v4150, %v4145
    %v4155 = vmul.f32 %v4150, %v4146
    %v4156 = vmul.f32 %v4150, %v4147
    %v4157 = vmul.f32 %v4150, %v4148
    %v4158 = vmul.f32 %v4150, %v4149
    %v4159 = vsub.f32 1.0, %v4151
    %v4160 = vsub.f32 1.0, %v4152
    %v4161 = vsub.f32 1.0, %v4153
    %v4162 = vsub.f32 1.0, %v4154
    %v4163 = vsub.f32 1.0, %v4155
    %v4164 = vsub.f32 1.0, %v4156
    %v4165 = vsub.f32 1.0, %v4157
    %v4166 = vsub.f32 1.0, %v4158
    %v4167 = vmax.f32 %v4159, 0.0
    %v4168 = vmax.f32 %v4160, 0.0
    %v4169 = vmax.f32 %v4161, 0.0
    %v4170 = vmax.f32 %v4162, 0.0
    %v4171 = vmax.f32 %v4163, 0.0
    %v4172 = vmax.f32 %v4164, 0.0
    %v4173 = vmax.f32 %v4165, 0.0
    %v4174 = vmax.f32 %v4166, 0.0
    %v4175 = vmul.f32 %v4085, %v4167
    %v4176 = vmul.f32 %v4086, %v4168
    %v4177 = vmul.f32 %v4087, %v4169
    %v4178 = vmul.f32 %v4088, %v4170
    %v4179 = vmul.f32 %v4089, %v4171
    %v4180 = vmul.f32 %v4090, %v4172
    %v4181 = vmul.f32 %v4091, %v4173
    %v4182 = vmul.f32 %v4092, %v4174
    %v4183 = vmul.f32 %v4093, %v4167
    %v4184 = vmul.f32 %v4094, %v4168
    %v4185 = vmul.f32 %v4095, %v4169
    %v4186 = vmul.f32 %v4096, %v4170
    %v4187 = vmul.f32 %v4097, %v4171
    %v4188 = vmul.f32 %v4098, %v4172
    %v4189 = vmul.f32 %v4099, %v4173
    %v4190 = vmul.f32 %v4100, %v4174
    %4191 = vst [vmem:[%s5] sm:$0xff] %v4175
    %4192 = vst [vmem:[%s5 + $0x8] sm:$0xff] %v4176
    %4193 = vst [vmem:[%s5 + $0x10] sm:$0xff] %v4177
    %4194 = vst [vmem:[%s5 + $0x18] sm:$0xff] %v4178
    %4195 = vst [vmem:[%s5 + $0x20] sm:$0xff] %v4179
    %4196 = vst [vmem:[%s5 + $0x28] sm:$0xff] %v4180
    %4197 = vst [vmem:[%s5 + $0x30] sm:$0xff] %v4181
    %4198 = vst [vmem:[%s5 + $0x38] sm:$0xff] %v4182
    %4199 = vst [vmem:[%s5 + $0x40] sm:$0xff] %v4183
    %4200 = vst [vmem:[%s5 + $0x48] sm:$0xff] %v4184
    %4201 = vst [vmem:[%s5 + $0x50] sm:$0xff] %v4185
    %4202 = vst [vmem:[%s5 + $0x58] sm:$0xff] %v4186
    %4203 = vst [vmem:[%s5 + $0x60] sm:$0xff] %v4187
    %4204 = vst [vmem:[%s5 + $0x68] sm:$0xff] %v4188
    %4205 = vst [vmem:[%s5 + $0x70] sm:$0xff] %v4189
    %4206 = vst [vmem:[%s5 + $0x78] sm:$0xff] %v4190
    // Predicated region
    $region26: #{encoder1_pallas.1} parent=1 // pred_check
      _
    $region27: #{encoder1_pallas.1} parent=1 // pred_check_branch
      %4208 = sbr.rel (0) target = $region29
    $region28: #{encoder1_pallas.1} parent=1 // pred_region
      _
    $region29: #{encoder1_pallas.1} parent=1 // pred_fallthru
      _
    // Predicated region
    $region30: #{encoder1_pallas.1} parent=1 // pred_check
      _
    $region31: #{encoder1_pallas.1} parent=1 // pred_check_branch
      %4210 = sbr.rel (0) target = $region33
    $region32: #{encoder1_pallas.1} parent=1 // pred_region
      _
    $region33: #{encoder1_pallas.1} parent=1 // pred_fallthru
      _
    %4211 = vsyncpa [#allocation3], 1

</llo_original>
